<compile_context>
chip_gen: v7x
topology: tpu7x:2x2x1
jax: 0.10.0
libtpu: 0.0.40
codegen_flags: <defaults>
</compile_context>

<pallas_src>
import functools

import jax
import jax.numpy as jnp
import numpy as np
from jax.experimental import pallas as pl
from jax.experimental.pallas import tpu as pltpu


# ----------------------------- fused Pallas kernel --------------------------

def lenet3_kernel(p1_ref, w1_ref, b1_ref, w2_ref, b2_ref,
                  fc1w_ref, fc1b_ref, fc2w_ref, fc2b_ref,
                  out_ref, s2_ref, rhs_ref, *, batch):
    f32 = jnp.float32
    bh = batch * 144                      # columns per 2x2-tap block (b, i<12, j<12)

    # ---- conv1: one lane-dense MXU matmul over the pre-built patch matrix ----
    y1 = jnp.dot(w1_ref[...], p1_ref[...], preferred_element_type=f32)
    y1 = y1 + b1_ref[...]                 # (10, 4*bh)

    # ---- MaxPool2d(2) + ReLU: the four column blocks are the 4 window taps ----
    pool1 = jnp.maximum(
        jnp.maximum(y1[:, 0:bh], y1[:, bh:2 * bh]),
        jnp.maximum(y1[:, 2 * bh:3 * bh], y1[:, 3 * bh:4 * bh]))
    pool1 = jnp.maximum(pool1, 0.0)       # (10, bh), col = b*144 + 12*i + j

    # ---- conv2: im2col built in VMEM scratch with shifted contiguous slices ----
    s2_ref[...] = jnp.zeros_like(s2_ref)
    for kh in range(5):
        for kw in range(5):
            r = kh * 5 + kw
            s = 12 * kh + kw
            # row block r holds pool1 shifted by s columns; only columns that
            # correspond to valid conv2 outputs are ever read downstream.
            s2_ref[r * 10:(r + 1) * 10, 0:bh - s] = pool1[:, s:bh]

    y2 = jnp.dot(w2_ref[...], s2_ref[...], preferred_element_type=f32)
    y2 = y2 + b2_ref[...]                 # (20, bh); valid col = b*144+12u+v, u,v<8

    # ---- MaxPool2d(2) + ReLU via 4 shifted slices (taps at +0,+1,+12,+13) ----
    pw = bh - 13
    m = jnp.maximum(
        jnp.maximum(y2[:, 0:pw], y2[:, 1:pw + 1]),
        jnp.maximum(y2[:, 12:pw + 12], y2[:, 13:pw + 13]))
    m = jnp.maximum(m, 0.0)               # valid col = b*144 + 24*p + 2*q

    # ---- gather pooled features into fc layout: rows=(p,q,c2), cols=batch ----
    for p in range(4):
        for q in range(4):
            rr = (p * 4 + q) * 20
            for b in range(batch):
                c = b * 144 + 24 * p + 2 * q
                rhs_ref[rr:rr + 20, b:b + 1] = m[:, c:c + 1]

    # ---- fc1 + ReLU -> fc2 -> log_softmax (classes on sublanes, batch on lanes) ----
    h = jnp.dot(fc1w_ref[...], rhs_ref[...], preferred_element_type=f32)
    h = jnp.maximum(h + fc1b_ref[...], 0.0)                    # (50, B)
    logits = jnp.dot(fc2w_ref[...], h, preferred_element_type=f32) + fc2b_ref[...]
    z = logits - jnp.max(logits, axis=0, keepdims=True)
    out_ref[...] = z - jnp.log(jnp.sum(jnp.exp(z), axis=0, keepdims=True))


# ----------------------------- wrapper -------------------------------------

def build_conv1_patches(img):
    """img: (B,1,28,28) NCHW -> (25, 4*B*144) patch matrix.

    Column layout: (di, dj, b, i, j) with i,j in [0,12); block (di,dj) holds
    the conv1 patch whose output pixel is (2i+di, 2j+dj), so the 4 column
    blocks are exactly the 4 taps of each 2x2 max-pool window.
    Row layout: kh*5 + kw  (matches conv1_w.reshape(10, 25))."""
    B = img.shape[0]
    x = img[:, 0]                                            # (B, 28, 28)
    blocks = []
    for di in range(2):
        for dj in range(2):
            rows = []
            for kh in range(5):
                for kw in range(5):
                    sl = x[:, di + kh:di + kh + 23:2, dj + kw:dj + kw + 23:2]
                    rows.append(sl.reshape(1, B * 144))      # (1, B*144)
            blocks.append(jnp.concatenate(rows, axis=0))     # (25, B*144)
    return jnp.concatenate(blocks, axis=1)                   # (25, 4*B*144)


def prepare_params(params):
    """One-time weight layout transforms so the kernel does zero transposes."""
    w1 = params["conv1_w"].reshape(10, 25)                            # rows c1, cols (kh,kw)
    b1 = params["conv1_b"].reshape(10, 1)
    w2 = jnp.transpose(params["conv2_w"], (0, 2, 3, 1)).reshape(20, 250)  # cols (kh,kw,c1)
    b2 = params["conv2_b"].reshape(20, 1)
    # fc1 columns permuted from torch order (c2, p, q) to kernel order (p, q, c2)
    fc1w = params["fc1_w"].reshape(50, 20, 16).transpose(0, 2, 1).reshape(50, 320)
    fc1b = params["fc1_b"].reshape(50, 1)
    fc2w = params["fc2_w"]                                            # (10, 50)
    fc2b = params["fc2_b"].reshape(10, 1)
    return (w1, b1, w2, b2, fc1w, fc1b, fc2w, fc2b)


def lenet3_forward(img, prep):
    B = img.shape[0]
    bh = B * 144
    p1 = build_conv1_patches(img)
    kern = functools.partial(lenet3_kernel, batch=B)
    inputs = (p1,) + tuple(prep)
    in_specs = [pl.BlockSpec(a.shape, lambda i: (0, 0)) for a in inputs]
    out = pl.pallas_call(
        kern,
        out_shape=jax.ShapeDtypeStruct((10, B), jnp.float32),
        grid=(1,),
        in_specs=in_specs,
        out_specs=pl.BlockSpec((10, B), lambda i: (0, 0)),
        scratch_shapes=[pltpu.VMEM((250, bh), jnp.float32),   # conv2 im2col matrix
                        pltpu.VMEM((320, B), jnp.float32)],   # fc1 input (feature, batch)
        compiler_params=pltpu.CompilerParams(
            dimension_semantics=("arbitrary",)),
    )(*inputs)
    return out.T                                              # (B, 10)


# ----------------------------- parameter init -------------------------------

def init_params(key):
    def uinit(k, shape, fan_in):
        bound = 1.0 / np.sqrt(fan_in)
        return jax.random.uniform(k, shape, jnp.float32, -bound, bound)

    ks = jax.random.split(key, 8)
    return {
        "conv1_w": uinit(ks[0], (10, 1, 5, 5), 1 * 5 * 5),
        "conv1_b": uinit(ks[1], (10,), 1 * 5 * 5),
        "conv2_w": uinit(ks[2], (20, 10, 5, 5), 10 * 5 * 5),
        "conv2_b": uinit(ks[3], (20,), 10 * 5 * 5),
        "fc1_w": uinit(ks[4], (50, 320), 320),
        "fc1_b": uinit(ks[5], (50,), 320),
        "fc2_w": uinit(ks[6], (10, 50), 50),
        "fc2_b": uinit(ks[7], (10,), 50),
    }


# ----------------------------- numpy reference (spec check) -----------------

def reference_forward(img, params):
    x = np.asarray(img, np.float64)[:, 0]
    w1 = np.asarray(params["conv1_w"], np.float64)
    b1 = np.asarray(params["conv1_b"], np.float64)
    w2 = np.asarray(params["conv2_w"], np.float64)
    b2 = np.asarray(params["conv2_b"], np.float64)
    f1w = np.asarray(params["fc1_w"], np.float64)
    f1b = np.asarray(params["fc1_b"], np.float64)
    f2w = np.asarray(params["fc2_w"], np.float64)
    f2b = np.asarray(params["fc2_b"], np.float64)
    B = x.shape[0]

    y1 = np.zeros((B, 10, 24, 24))
    for kh in range(5):
        for kw in range(5):
            y1 += w1[None, :, 0, kh, kw, None, None] * x[:, None, kh:kh + 24, kw:kw + 24]
    y1 += b1[None, :, None, None]
    p1 = np.maximum(y1.reshape(B, 10, 12, 2, 12, 2).max(axis=(3, 5)), 0.0)

    y2 = np.zeros((B, 20, 8, 8))
    for kh in range(5):
        for kw in range(5):
            y2 += np.einsum("oc,bchw->bohw", w2[:, :, kh, kw],
                            p1[:, :, kh:kh + 8, kw:kw + 8])
    y2 += b2[None, :, None, None]
    p2 = np.maximum(y2.reshape(B, 20, 4, 2, 4, 2).max(axis=(3, 5)), 0.0)

    feat = p2.reshape(B, 320)
    h = np.maximum(feat @ f1w.T + f1b, 0.0)
    logits = h @ f2w.T + f2b
    z = logits - logits.max(axis=1, keepdims=True)
    return z - np.log(np.exp(z).sum(axis=1, keepdims=True))


if __name__ == "__main__":
    root = jax.random.PRNGKey(0)
    pkey, xkey = jax.random.split(root)
    params = init_params(pkey)
    # LeNet_3 expects 1x28x28 inputs (MNIST) so the flattened feature is 320.
    img = jax.random.normal(xkey, (2, 1, 28, 28), jnp.float32)

    prep = prepare_params(params)
    fwd = jax.jit(lenet3_forward)
    out = jax.block_until_ready(fwd(img, prep))
    out_np = np.asarray(out)

    assert out_np.shape == (2, 10)
    # log-softmax rows must exponentiate-and-sum to ~1
    assert np.allclose(np.exp(out_np).sum(axis=1), 1.0, atol=1e-4)
    # match the PyTorch-spec reference
    ref = reference_forward(img, params)
    assert np.max(np.abs(out_np - ref)) < 5e-2, np.max(np.abs(out_np - ref))
    print("KERNEL_OK")
</pallas_src>

<mosaic_0001>
module attributes {stable_mosaic.version = 11 : i64} {
  func.func @lenet3_kernel(%arg0: i32, %arg1: memref<25x1152xf32, #tpu.memory_space<vmem>>, %arg2: memref<10x25xf32, #tpu.memory_space<vmem>>, %arg3: memref<10x1xf32, #tpu.memory_space<vmem>>, %arg4: memref<20x250xf32, #tpu.memory_space<vmem>>, %arg5: memref<20x1xf32, #tpu.memory_space<vmem>>, %arg6: memref<50x320xf32, #tpu.memory_space<vmem>>, %arg7: memref<50x1xf32, #tpu.memory_space<vmem>>, %arg8: memref<10x50xf32, #tpu.memory_space<vmem>>, %arg9: memref<10x1xf32, #tpu.memory_space<vmem>>, %arg10: memref<10x2xf32, #tpu.memory_space<vmem>>, %arg11: memref<250x288xf32, #tpu.memory_space<vmem>>, %arg12: memref<320x2xf32, #tpu.memory_space<vmem>>) attributes {dimension_semantics = [#tpu.dimension_semantics<arbitrary>], iteration_bounds = array<i64: 1>, scalar_prefetch = 0 : i64, scratch_operands = 2 : i64, tpu.core_type = #tpu.core_type<tc>, window_params = [{pipeline_mode = #tpu.pipeline_mode<synchronous>, transform_indices = @transform_0, window_bounds = array<i64: 25, 1152>}, {pipeline_mode = #tpu.pipeline_mode<synchronous>, transform_indices = @transform_1, window_bounds = array<i64: 10, 25>}, {pipeline_mode = #tpu.pipeline_mode<synchronous>, transform_indices = @transform_2, window_bounds = array<i64: 10, 1>}, {pipeline_mode = #tpu.pipeline_mode<synchronous>, transform_indices = @transform_3, window_bounds = array<i64: 20, 250>}, {pipeline_mode = #tpu.pipeline_mode<synchronous>, transform_indices = @transform_4, window_bounds = array<i64: 20, 1>}, {pipeline_mode = #tpu.pipeline_mode<synchronous>, transform_indices = @transform_5, window_bounds = array<i64: 50, 320>}, {pipeline_mode = #tpu.pipeline_mode<synchronous>, transform_indices = @transform_6, window_bounds = array<i64: 50, 1>}, {pipeline_mode = #tpu.pipeline_mode<synchronous>, transform_indices = @transform_7, window_bounds = array<i64: 10, 50>}, {pipeline_mode = #tpu.pipeline_mode<synchronous>, transform_indices = @transform_8, window_bounds = array<i64: 10, 1>}, {pipeline_mode = #tpu.pipeline_mode<synchronous>, transform_indices = @transform_9, window_bounds = array<i64: 10, 2>}]} {
    %c0 = arith.constant 0 : index
    %c0_0 = arith.constant 0 : index
    %0 = vector.load %arg2[%c0, %c0_0] : memref<10x25xf32, #tpu.memory_space<vmem>>, vector<10x25xf32>
    %c0_1 = arith.constant 0 : index
    %c0_2 = arith.constant 0 : index
    %1 = vector.load %arg1[%c0_1, %c0_2] : memref<25x1152xf32, #tpu.memory_space<vmem>>, vector<25x1152xf32>
    %cst = arith.constant dense<0.000000e+00> : vector<10x1152xf32>
    %2 = tpu.matmul %0, %1, %cst {dimension_numbers = #tpu.dot_dimension_numbers<[1], [0], [0], [1], [0, 0, 1, 1], [], []>} : vector<10x25xf32>, vector<25x1152xf32>, vector<10x1152xf32> -> vector<10x1152xf32>
    %c0_3 = arith.constant 0 : index
    %c0_4 = arith.constant 0 : index
    %3 = vector.load %arg3[%c0_3, %c0_4] : memref<10x1xf32, #tpu.memory_space<vmem>>, vector<10x1xf32>
    %4 = vector.broadcast %3 : vector<10x1xf32> to vector<10x1152xf32>
    %5 = arith.addf %2, %4 : vector<10x1152xf32>
    %6 = vector.extract_strided_slice %5 {offsets = [0, 0], sizes = [10, 288], strides = [1, 1]} : vector<10x1152xf32> to vector<10x288xf32>
    %7 = vector.extract_strided_slice %5 {offsets = [0, 288], sizes = [10, 288], strides = [1, 1]} : vector<10x1152xf32> to vector<10x288xf32>
    %8 = arith.maximumf %6, %7 : vector<10x288xf32>
    %9 = vector.extract_strided_slice %5 {offsets = [0, 576], sizes = [10, 288], strides = [1, 1]} : vector<10x1152xf32> to vector<10x288xf32>
    %10 = vector.extract_strided_slice %5 {offsets = [0, 864], sizes = [10, 288], strides = [1, 1]} : vector<10x1152xf32> to vector<10x288xf32>
    %11 = arith.maximumf %9, %10 : vector<10x288xf32>
    %12 = arith.maximumf %8, %11 : vector<10x288xf32>
    %cst_5 = arith.constant 0.000000e+00 : f32
    %13 = vector.broadcast %cst_5 : f32 to vector<10x288xf32>
    %14 = arith.maximumf %12, %13 : vector<10x288xf32>
    %cst_6 = arith.constant 0.000000e+00 : f32
    %15 = vector.broadcast %cst_6 : f32 to vector<250x288xf32>
    %c0_7 = arith.constant 0 : index
    %c0_8 = arith.constant 0 : index
    %16 = vector.load %arg11[%c0_7, %c0_8] : memref<250x288xf32, #tpu.memory_space<vmem>>, vector<250x288xf32>
    tpu.vector_store %arg11[%c0_7, %c0_8], %15 {strides = array<i32>} : memref<250x288xf32, #tpu.memory_space<vmem>>, vector<250x288xf32>,
    %c0_9 = arith.constant 0 : index
    %c0_10 = arith.constant 0 : index
    %17 = vector.load %arg11[%c0_9, %c0_10] : memref<250x288xf32, #tpu.memory_space<vmem>>, vector<10x288xf32>
    tpu.vector_store %arg11[%c0_9, %c0_10], %14 {strides = array<i32>} : memref<250x288xf32, #tpu.memory_space<vmem>>, vector<10x288xf32>,
    %18 = vector.extract_strided_slice %14 {offsets = [0, 1], sizes = [10, 287], strides = [1, 1]} : vector<10x288xf32> to vector<10x287xf32>
    %c10 = arith.constant 10 : index
    %c0_11 = arith.constant 0 : index
    %19 = vector.load %arg11[%c10, %c0_11] : memref<250x288xf32, #tpu.memory_space<vmem>>, vector<10x287xf32>
    tpu.vector_store %arg11[%c10, %c0_11], %18 {strides = array<i32>} : memref<250x288xf32, #tpu.memory_space<vmem>>, vector<10x287xf32>,
    %20 = vector.extract_strided_slice %14 {offsets = [0, 2], sizes = [10, 286], strides = [1, 1]} : vector<10x288xf32> to vector<10x286xf32>
    %c20 = arith.constant 20 : index
    %c0_12 = arith.constant 0 : index
    %21 = vector.load %arg11[%c20, %c0_12] : memref<250x288xf32, #tpu.memory_space<vmem>>, vector<10x286xf32>
    tpu.vector_store %arg11[%c20, %c0_12], %20 {strides = array<i32>} : memref<250x288xf32, #tpu.memory_space<vmem>>, vector<10x286xf32>,
    %22 = vector.extract_strided_slice %14 {offsets = [0, 3], sizes = [10, 285], strides = [1, 1]} : vector<10x288xf32> to vector<10x285xf32>
    %c30 = arith.constant 30 : index
    %c0_13 = arith.constant 0 : index
    %23 = vector.load %arg11[%c30, %c0_13] : memref<250x288xf32, #tpu.memory_space<vmem>>, vector<10x285xf32>
    tpu.vector_store %arg11[%c30, %c0_13], %22 {strides = array<i32>} : memref<250x288xf32, #tpu.memory_space<vmem>>, vector<10x285xf32>,
    %24 = vector.extract_strided_slice %14 {offsets = [0, 4], sizes = [10, 284], strides = [1, 1]} : vector<10x288xf32> to vector<10x284xf32>
    %c40 = arith.constant 40 : index
    %c0_14 = arith.constant 0 : index
    %25 = vector.load %arg11[%c40, %c0_14] : memref<250x288xf32, #tpu.memory_space<vmem>>, vector<10x284xf32>
    tpu.vector_store %arg11[%c40, %c0_14], %24 {strides = array<i32>} : memref<250x288xf32, #tpu.memory_space<vmem>>, vector<10x284xf32>,
    %26 = vector.extract_strided_slice %14 {offsets = [0, 12], sizes = [10, 276], strides = [1, 1]} : vector<10x288xf32> to vector<10x276xf32>
    %c50 = arith.constant 50 : index
    %c0_15 = arith.constant 0 : index
    %27 = vector.load %arg11[%c50, %c0_15] : memref<250x288xf32, #tpu.memory_space<vmem>>, vector<10x276xf32>
    tpu.vector_store %arg11[%c50, %c0_15], %26 {strides = array<i32>} : memref<250x288xf32, #tpu.memory_space<vmem>>, vector<10x276xf32>,
    %28 = vector.extract_strided_slice %14 {offsets = [0, 13], sizes = [10, 275], strides = [1, 1]} : vector<10x288xf32> to vector<10x275xf32>
    %c60 = arith.constant 60 : index
    %c0_16 = arith.constant 0 : index
    %29 = vector.load %arg11[%c60, %c0_16] : memref<250x288xf32, #tpu.memory_space<vmem>>, vector<10x275xf32>
    tpu.vector_store %arg11[%c60, %c0_16], %28 {strides = array<i32>} : memref<250x288xf32, #tpu.memory_space<vmem>>, vector<10x275xf32>,
    %30 = vector.extract_strided_slice %14 {offsets = [0, 14], sizes = [10, 274], strides = [1, 1]} : vector<10x288xf32> to vector<10x274xf32>
    %c70 = arith.constant 70 : index
    %c0_17 = arith.constant 0 : index
    %31 = vector.load %arg11[%c70, %c0_17] : memref<250x288xf32, #tpu.memory_space<vmem>>, vector<10x274xf32>
    tpu.vector_store %arg11[%c70, %c0_17], %30 {strides = array<i32>} : memref<250x288xf32, #tpu.memory_space<vmem>>, vector<10x274xf32>,
    %32 = vector.extract_strided_slice %14 {offsets = [0, 15], sizes = [10, 273], strides = [1, 1]} : vector<10x288xf32> to vector<10x273xf32>
    %c80 = arith.constant 80 : index
    %c0_18 = arith.constant 0 : index
    %33 = vector.load %arg11[%c80, %c0_18] : memref<250x288xf32, #tpu.memory_space<vmem>>, vector<10x273xf32>
    tpu.vector_store %arg11[%c80, %c0_18], %32 {strides = array<i32>} : memref<250x288xf32, #tpu.memory_space<vmem>>, vector<10x273xf32>,
    %34 = vector.extract_strided_slice %14 {offsets = [0, 16], sizes = [10, 272], strides = [1, 1]} : vector<10x288xf32> to vector<10x272xf32>
    %c90 = arith.constant 90 : index
    %c0_19 = arith.constant 0 : index
    %35 = vector.load %arg11[%c90, %c0_19] : memref<250x288xf32, #tpu.memory_space<vmem>>, vector<10x272xf32>
    tpu.vector_store %arg11[%c90, %c0_19], %34 {strides = array<i32>} : memref<250x288xf32, #tpu.memory_space<vmem>>, vector<10x272xf32>,
    %36 = vector.extract_strided_slice %14 {offsets = [0, 24], sizes = [10, 264], strides = [1, 1]} : vector<10x288xf32> to vector<10x264xf32>
    %c100 = arith.constant 100 : index
    %c0_20 = arith.constant 0 : index
    %37 = vector.load %arg11[%c100, %c0_20] : memref<250x288xf32, #tpu.memory_space<vmem>>, vector<10x264xf32>
    tpu.vector_store %arg11[%c100, %c0_20], %36 {strides = array<i32>} : memref<250x288xf32, #tpu.memory_space<vmem>>, vector<10x264xf32>,
    %38 = vector.extract_strided_slice %14 {offsets = [0, 25], sizes = [10, 263], strides = [1, 1]} : vector<10x288xf32> to vector<10x263xf32>
    %c110 = arith.constant 110 : index
    %c0_21 = arith.constant 0 : index
    %39 = vector.load %arg11[%c110, %c0_21] : memref<250x288xf32, #tpu.memory_space<vmem>>, vector<10x263xf32>
    tpu.vector_store %arg11[%c110, %c0_21], %38 {strides = array<i32>} : memref<250x288xf32, #tpu.memory_space<vmem>>, vector<10x263xf32>,
    %40 = vector.extract_strided_slice %14 {offsets = [0, 26], sizes = [10, 262], strides = [1, 1]} : vector<10x288xf32> to vector<10x262xf32>
    %c120 = arith.constant 120 : index
    %c0_22 = arith.constant 0 : index
    %41 = vector.load %arg11[%c120, %c0_22] : memref<250x288xf32, #tpu.memory_space<vmem>>, vector<10x262xf32>
    tpu.vector_store %arg11[%c120, %c0_22], %40 {strides = array<i32>} : memref<250x288xf32, #tpu.memory_space<vmem>>, vector<10x262xf32>,
    %42 = vector.extract_strided_slice %14 {offsets = [0, 27], sizes = [10, 261], strides = [1, 1]} : vector<10x288xf32> to vector<10x261xf32>
    %c130 = arith.constant 130 : index
    %c0_23 = arith.constant 0 : index
    %43 = vector.load %arg11[%c130, %c0_23] : memref<250x288xf32, #tpu.memory_space<vmem>>, vector<10x261xf32>
    tpu.vector_store %arg11[%c130, %c0_23], %42 {strides = array<i32>} : memref<250x288xf32, #tpu.memory_space<vmem>>, vector<10x261xf32>,
    %44 = vector.extract_strided_slice %14 {offsets = [0, 28], sizes = [10, 260], strides = [1, 1]} : vector<10x288xf32> to vector<10x260xf32>
    %c140 = arith.constant 140 : index
    %c0_24 = arith.constant 0 : index
    %45 = vector.load %arg11[%c140, %c0_24] : memref<250x288xf32, #tpu.memory_space<vmem>>, vector<10x260xf32>
    tpu.vector_store %arg11[%c140, %c0_24], %44 {strides = array<i32>} : memref<250x288xf32, #tpu.memory_space<vmem>>, vector<10x260xf32>,
    %46 = vector.extract_strided_slice %14 {offsets = [0, 36], sizes = [10, 252], strides = [1, 1]} : vector<10x288xf32> to vector<10x252xf32>
    %c150 = arith.constant 150 : index
    %c0_25 = arith.constant 0 : index
    %47 = vector.load %arg11[%c150, %c0_25] : memref<250x288xf32, #tpu.memory_space<vmem>>, vector<10x252xf32>
    tpu.vector_store %arg11[%c150, %c0_25], %46 {strides = array<i32>} : memref<250x288xf32, #tpu.memory_space<vmem>>, vector<10x252xf32>,
    %48 = vector.extract_strided_slice %14 {offsets = [0, 37], sizes = [10, 251], strides = [1, 1]} : vector<10x288xf32> to vector<10x251xf32>
    %c160 = arith.constant 160 : index
    %c0_26 = arith.constant 0 : index
    %49 = vector.load %arg11[%c160, %c0_26] : memref<250x288xf32, #tpu.memory_space<vmem>>, vector<10x251xf32>
    tpu.vector_store %arg11[%c160, %c0_26], %48 {strides = array<i32>} : memref<250x288xf32, #tpu.memory_space<vmem>>, vector<10x251xf32>,
    %50 = vector.extract_strided_slice %14 {offsets = [0, 38], sizes = [10, 250], strides = [1, 1]} : vector<10x288xf32> to vector<10x250xf32>
    %c170 = arith.constant 170 : index
    %c0_27 = arith.constant 0 : index
    %51 = vector.load %arg11[%c170, %c0_27] : memref<250x288xf32, #tpu.memory_space<vmem>>, vector<10x250xf32>
    tpu.vector_store %arg11[%c170, %c0_27], %50 {strides = array<i32>} : memref<250x288xf32, #tpu.memory_space<vmem>>, vector<10x250xf32>,
    %52 = vector.extract_strided_slice %14 {offsets = [0, 39], sizes = [10, 249], strides = [1, 1]} : vector<10x288xf32> to vector<10x249xf32>
    %c180 = arith.constant 180 : index
    %c0_28 = arith.constant 0 : index
    %53 = vector.load %arg11[%c180, %c0_28] : memref<250x288xf32, #tpu.memory_space<vmem>>, vector<10x249xf32>
    tpu.vector_store %arg11[%c180, %c0_28], %52 {strides = array<i32>} : memref<250x288xf32, #tpu.memory_space<vmem>>, vector<10x249xf32>,
    %54 = vector.extract_strided_slice %14 {offsets = [0, 40], sizes = [10, 248], strides = [1, 1]} : vector<10x288xf32> to vector<10x248xf32>
    %c190 = arith.constant 190 : index
    %c0_29 = arith.constant 0 : index
    %55 = vector.load %arg11[%c190, %c0_29] : memref<250x288xf32, #tpu.memory_space<vmem>>, vector<10x248xf32>
    tpu.vector_store %arg11[%c190, %c0_29], %54 {strides = array<i32>} : memref<250x288xf32, #tpu.memory_space<vmem>>, vector<10x248xf32>,
    %56 = vector.extract_strided_slice %14 {offsets = [0, 48], sizes = [10, 240], strides = [1, 1]} : vector<10x288xf32> to vector<10x240xf32>
    %c200 = arith.constant 200 : index
    %c0_30 = arith.constant 0 : index
    %57 = vector.load %arg11[%c200, %c0_30] : memref<250x288xf32, #tpu.memory_space<vmem>>, vector<10x240xf32>
    tpu.vector_store %arg11[%c200, %c0_30], %56 {strides = array<i32>} : memref<250x288xf32, #tpu.memory_space<vmem>>, vector<10x240xf32>,
    %58 = vector.extract_strided_slice %14 {offsets = [0, 49], sizes = [10, 239], strides = [1, 1]} : vector<10x288xf32> to vector<10x239xf32>
    %c210 = arith.constant 210 : index
    %c0_31 = arith.constant 0 : index
    %59 = vector.load %arg11[%c210, %c0_31] : memref<250x288xf32, #tpu.memory_space<vmem>>, vector<10x239xf32>
    tpu.vector_store %arg11[%c210, %c0_31], %58 {strides = array<i32>} : memref<250x288xf32, #tpu.memory_space<vmem>>, vector<10x239xf32>,
    %60 = vector.extract_strided_slice %14 {offsets = [0, 50], sizes = [10, 238], strides = [1, 1]} : vector<10x288xf32> to vector<10x238xf32>
    %c220 = arith.constant 220 : index
    %c0_32 = arith.constant 0 : index
    %61 = vector.load %arg11[%c220, %c0_32] : memref<250x288xf32, #tpu.memory_space<vmem>>, vector<10x238xf32>
    tpu.vector_store %arg11[%c220, %c0_32], %60 {strides = array<i32>} : memref<250x288xf32, #tpu.memory_space<vmem>>, vector<10x238xf32>,
    %62 = vector.extract_strided_slice %14 {offsets = [0, 51], sizes = [10, 237], strides = [1, 1]} : vector<10x288xf32> to vector<10x237xf32>
    %c230 = arith.constant 230 : index
    %c0_33 = arith.constant 0 : index
    %63 = vector.load %arg11[%c230, %c0_33] : memref<250x288xf32, #tpu.memory_space<vmem>>, vector<10x237xf32>
    tpu.vector_store %arg11[%c230, %c0_33], %62 {strides = array<i32>} : memref<250x288xf32, #tpu.memory_space<vmem>>, vector<10x237xf32>,
    %64 = vector.extract_strided_slice %14 {offsets = [0, 52], sizes = [10, 236], strides = [1, 1]} : vector<10x288xf32> to vector<10x236xf32>
    %c240 = arith.constant 240 : index
    %c0_34 = arith.constant 0 : index
    %65 = vector.load %arg11[%c240, %c0_34] : memref<250x288xf32, #tpu.memory_space<vmem>>, vector<10x236xf32>
    tpu.vector_store %arg11[%c240, %c0_34], %64 {strides = array<i32>} : memref<250x288xf32, #tpu.memory_space<vmem>>, vector<10x236xf32>,
    %c0_35 = arith.constant 0 : index
    %c0_36 = arith.constant 0 : index
    %66 = vector.load %arg4[%c0_35, %c0_36] : memref<20x250xf32, #tpu.memory_space<vmem>>, vector<20x250xf32>
    %c0_37 = arith.constant 0 : index
    %c0_38 = arith.constant 0 : index
    %67 = vector.load %arg11[%c0_37, %c0_38] : memref<250x288xf32, #tpu.memory_space<vmem>>, vector<250x288xf32>
    %cst_39 = arith.constant dense<0.000000e+00> : vector<20x288xf32>
    %68 = tpu.matmul %66, %67, %cst_39 {dimension_numbers = #tpu.dot_dimension_numbers<[1], [0], [0], [1], [0, 0, 1, 1], [], []>} : vector<20x250xf32>, vector<250x288xf32>, vector<20x288xf32> -> vector<20x288xf32>
    %c0_40 = arith.constant 0 : index
    %c0_41 = arith.constant 0 : index
    %69 = vector.load %arg5[%c0_40, %c0_41] : memref<20x1xf32, #tpu.memory_space<vmem>>, vector<20x1xf32>
    %70 = vector.broadcast %69 : vector<20x1xf32> to vector<20x288xf32>
    %71 = arith.addf %68, %70 : vector<20x288xf32>
    %72 = vector.extract_strided_slice %71 {offsets = [0, 0], sizes = [20, 275], strides = [1, 1]} : vector<20x288xf32> to vector<20x275xf32>
    %73 = vector.extract_strided_slice %71 {offsets = [0, 1], sizes = [20, 275], strides = [1, 1]} : vector<20x288xf32> to vector<20x275xf32>
    %74 = arith.maximumf %72, %73 : vector<20x275xf32>
    %75 = vector.extract_strided_slice %71 {offsets = [0, 12], sizes = [20, 275], strides = [1, 1]} : vector<20x288xf32> to vector<20x275xf32>
    %76 = vector.extract_strided_slice %71 {offsets = [0, 13], sizes = [20, 275], strides = [1, 1]} : vector<20x288xf32> to vector<20x275xf32>
    %77 = arith.maximumf %75, %76 : vector<20x275xf32>
    %78 = arith.maximumf %74, %77 : vector<20x275xf32>
    %cst_42 = arith.constant 0.000000e+00 : f32
    %79 = vector.broadcast %cst_42 : f32 to vector<20x275xf32>
    %80 = arith.maximumf %78, %79 : vector<20x275xf32>
    %81 = vector.extract_strided_slice %80 {offsets = [0, 0], sizes = [20, 1], strides = [1, 1]} : vector<20x275xf32> to vector<20x1xf32>
    %c0_43 = arith.constant 0 : index
    %c0_44 = arith.constant 0 : index
    %82 = vector.load %arg12[%c0_43, %c0_44] : memref<320x2xf32, #tpu.memory_space<vmem>>, vector<20x1xf32>
    tpu.vector_store %arg12[%c0_43, %c0_44], %81 {strides = array<i32>} : memref<320x2xf32, #tpu.memory_space<vmem>>, vector<20x1xf32>,
    %83 = vector.extract_strided_slice %80 {offsets = [0, 144], sizes = [20, 1], strides = [1, 1]} : vector<20x275xf32> to vector<20x1xf32>
    %c0_45 = arith.constant 0 : index
    %c1 = arith.constant 1 : index
    %84 = vector.load %arg12[%c0_45, %c1] : memref<320x2xf32, #tpu.memory_space<vmem>>, vector<20x1xf32>
    tpu.vector_store %arg12[%c0_45, %c1], %83 {strides = array<i32>} : memref<320x2xf32, #tpu.memory_space<vmem>>, vector<20x1xf32>,
    %85 = vector.extract_strided_slice %80 {offsets = [0, 2], sizes = [20, 1], strides = [1, 1]} : vector<20x275xf32> to vector<20x1xf32>
    %c20_46 = arith.constant 20 : index
    %c0_47 = arith.constant 0 : index
    %86 = vector.load %arg12[%c20_46, %c0_47] : memref<320x2xf32, #tpu.memory_space<vmem>>, vector<20x1xf32>
    tpu.vector_store %arg12[%c20_46, %c0_47], %85 {strides = array<i32>} : memref<320x2xf32, #tpu.memory_space<vmem>>, vector<20x1xf32>,
    %87 = vector.extract_strided_slice %80 {offsets = [0, 146], sizes = [20, 1], strides = [1, 1]} : vector<20x275xf32> to vector<20x1xf32>
    %c20_48 = arith.constant 20 : index
    %c1_49 = arith.constant 1 : index
    %88 = vector.load %arg12[%c20_48, %c1_49] : memref<320x2xf32, #tpu.memory_space<vmem>>, vector<20x1xf32>
    tpu.vector_store %arg12[%c20_48, %c1_49], %87 {strides = array<i32>} : memref<320x2xf32, #tpu.memory_space<vmem>>, vector<20x1xf32>,
    %89 = vector.extract_strided_slice %80 {offsets = [0, 4], sizes = [20, 1], strides = [1, 1]} : vector<20x275xf32> to vector<20x1xf32>
    %c40_50 = arith.constant 40 : index
    %c0_51 = arith.constant 0 : index
    %90 = vector.load %arg12[%c40_50, %c0_51] : memref<320x2xf32, #tpu.memory_space<vmem>>, vector<20x1xf32>
    tpu.vector_store %arg12[%c40_50, %c0_51], %89 {strides = array<i32>} : memref<320x2xf32, #tpu.memory_space<vmem>>, vector<20x1xf32>,
    %91 = vector.extract_strided_slice %80 {offsets = [0, 148], sizes = [20, 1], strides = [1, 1]} : vector<20x275xf32> to vector<20x1xf32>
    %c40_52 = arith.constant 40 : index
    %c1_53 = arith.constant 1 : index
    %92 = vector.load %arg12[%c40_52, %c1_53] : memref<320x2xf32, #tpu.memory_space<vmem>>, vector<20x1xf32>
    tpu.vector_store %arg12[%c40_52, %c1_53], %91 {strides = array<i32>} : memref<320x2xf32, #tpu.memory_space<vmem>>, vector<20x1xf32>,
    %93 = vector.extract_strided_slice %80 {offsets = [0, 6], sizes = [20, 1], strides = [1, 1]} : vector<20x275xf32> to vector<20x1xf32>
    %c60_54 = arith.constant 60 : index
    %c0_55 = arith.constant 0 : index
    %94 = vector.load %arg12[%c60_54, %c0_55] : memref<320x2xf32, #tpu.memory_space<vmem>>, vector<20x1xf32>
    tpu.vector_store %arg12[%c60_54, %c0_55], %93 {strides = array<i32>} : memref<320x2xf32, #tpu.memory_space<vmem>>, vector<20x1xf32>,
    %95 = vector.extract_strided_slice %80 {offsets = [0, 150], sizes = [20, 1], strides = [1, 1]} : vector<20x275xf32> to vector<20x1xf32>
    %c60_56 = arith.constant 60 : index
    %c1_57 = arith.constant 1 : index
    %96 = vector.load %arg12[%c60_56, %c1_57] : memref<320x2xf32, #tpu.memory_space<vmem>>, vector<20x1xf32>
    tpu.vector_store %arg12[%c60_56, %c1_57], %95 {strides = array<i32>} : memref<320x2xf32, #tpu.memory_space<vmem>>, vector<20x1xf32>,
    %97 = vector.extract_strided_slice %80 {offsets = [0, 24], sizes = [20, 1], strides = [1, 1]} : vector<20x275xf32> to vector<20x1xf32>
    %c80_58 = arith.constant 80 : index
    %c0_59 = arith.constant 0 : index
    %98 = vector.load %arg12[%c80_58, %c0_59] : memref<320x2xf32, #tpu.memory_space<vmem>>, vector<20x1xf32>
    tpu.vector_store %arg12[%c80_58, %c0_59], %97 {strides = array<i32>} : memref<320x2xf32, #tpu.memory_space<vmem>>, vector<20x1xf32>,
    %99 = vector.extract_strided_slice %80 {offsets = [0, 168], sizes = [20, 1], strides = [1, 1]} : vector<20x275xf32> to vector<20x1xf32>
    %c80_60 = arith.constant 80 : index
    %c1_61 = arith.constant 1 : index
    %100 = vector.load %arg12[%c80_60, %c1_61] : memref<320x2xf32, #tpu.memory_space<vmem>>, vector<20x1xf32>
    tpu.vector_store %arg12[%c80_60, %c1_61], %99 {strides = array<i32>} : memref<320x2xf32, #tpu.memory_space<vmem>>, vector<20x1xf32>,
    %101 = vector.extract_strided_slice %80 {offsets = [0, 26], sizes = [20, 1], strides = [1, 1]} : vector<20x275xf32> to vector<20x1xf32>
    %c100_62 = arith.constant 100 : index
    %c0_63 = arith.constant 0 : index
    %102 = vector.load %arg12[%c100_62, %c0_63] : memref<320x2xf32, #tpu.memory_space<vmem>>, vector<20x1xf32>
    tpu.vector_store %arg12[%c100_62, %c0_63], %101 {strides = array<i32>} : memref<320x2xf32, #tpu.memory_space<vmem>>, vector<20x1xf32>,
    %103 = vector.extract_strided_slice %80 {offsets = [0, 170], sizes = [20, 1], strides = [1, 1]} : vector<20x275xf32> to vector<20x1xf32>
    %c100_64 = arith.constant 100 : index
    %c1_65 = arith.constant 1 : index
    %104 = vector.load %arg12[%c100_64, %c1_65] : memref<320x2xf32, #tpu.memory_space<vmem>>, vector<20x1xf32>
    tpu.vector_store %arg12[%c100_64, %c1_65], %103 {strides = array<i32>} : memref<320x2xf32, #tpu.memory_space<vmem>>, vector<20x1xf32>,
    %105 = vector.extract_strided_slice %80 {offsets = [0, 28], sizes = [20, 1], strides = [1, 1]} : vector<20x275xf32> to vector<20x1xf32>
    %c120_66 = arith.constant 120 : index
    %c0_67 = arith.constant 0 : index
    %106 = vector.load %arg12[%c120_66, %c0_67] : memref<320x2xf32, #tpu.memory_space<vmem>>, vector<20x1xf32>
    tpu.vector_store %arg12[%c120_66, %c0_67], %105 {strides = array<i32>} : memref<320x2xf32, #tpu.memory_space<vmem>>, vector<20x1xf32>,
    %107 = vector.extract_strided_slice %80 {offsets = [0, 172], sizes = [20, 1], strides = [1, 1]} : vector<20x275xf32> to vector<20x1xf32>
    %c120_68 = arith.constant 120 : index
    %c1_69 = arith.constant 1 : index
    %108 = vector.load %arg12[%c120_68, %c1_69] : memref<320x2xf32, #tpu.memory_space<vmem>>, vector<20x1xf32>
    tpu.vector_store %arg12[%c120_68, %c1_69], %107 {strides = array<i32>} : memref<320x2xf32, #tpu.memory_space<vmem>>, vector<20x1xf32>,
    %109 = vector.extract_strided_slice %80 {offsets = [0, 30], sizes = [20, 1], strides = [1, 1]} : vector<20x275xf32> to vector<20x1xf32>
    %c140_70 = arith.constant 140 : index
    %c0_71 = arith.constant 0 : index
    %110 = vector.load %arg12[%c140_70, %c0_71] : memref<320x2xf32, #tpu.memory_space<vmem>>, vector<20x1xf32>
    tpu.vector_store %arg12[%c140_70, %c0_71], %109 {strides = array<i32>} : memref<320x2xf32, #tpu.memory_space<vmem>>, vector<20x1xf32>,
    %111 = vector.extract_strided_slice %80 {offsets = [0, 174], sizes = [20, 1], strides = [1, 1]} : vector<20x275xf32> to vector<20x1xf32>
    %c140_72 = arith.constant 140 : index
    %c1_73 = arith.constant 1 : index
    %112 = vector.load %arg12[%c140_72, %c1_73] : memref<320x2xf32, #tpu.memory_space<vmem>>, vector<20x1xf32>
    tpu.vector_store %arg12[%c140_72, %c1_73], %111 {strides = array<i32>} : memref<320x2xf32, #tpu.memory_space<vmem>>, vector<20x1xf32>,
    %113 = vector.extract_strided_slice %80 {offsets = [0, 48], sizes = [20, 1], strides = [1, 1]} : vector<20x275xf32> to vector<20x1xf32>
    %c160_74 = arith.constant 160 : index
    %c0_75 = arith.constant 0 : index
    %114 = vector.load %arg12[%c160_74, %c0_75] : memref<320x2xf32, #tpu.memory_space<vmem>>, vector<20x1xf32>
    tpu.vector_store %arg12[%c160_74, %c0_75], %113 {strides = array<i32>} : memref<320x2xf32, #tpu.memory_space<vmem>>, vector<20x1xf32>,
    %115 = vector.extract_strided_slice %80 {offsets = [0, 192], sizes = [20, 1], strides = [1, 1]} : vector<20x275xf32> to vector<20x1xf32>
    %c160_76 = arith.constant 160 : index
    %c1_77 = arith.constant 1 : index
    %116 = vector.load %arg12[%c160_76, %c1_77] : memref<320x2xf32, #tpu.memory_space<vmem>>, vector<20x1xf32>
    tpu.vector_store %arg12[%c160_76, %c1_77], %115 {strides = array<i32>} : memref<320x2xf32, #tpu.memory_space<vmem>>, vector<20x1xf32>,
    %117 = vector.extract_strided_slice %80 {offsets = [0, 50], sizes = [20, 1], strides = [1, 1]} : vector<20x275xf32> to vector<20x1xf32>
    %c180_78 = arith.constant 180 : index
    %c0_79 = arith.constant 0 : index
    %118 = vector.load %arg12[%c180_78, %c0_79] : memref<320x2xf32, #tpu.memory_space<vmem>>, vector<20x1xf32>
    tpu.vector_store %arg12[%c180_78, %c0_79], %117 {strides = array<i32>} : memref<320x2xf32, #tpu.memory_space<vmem>>, vector<20x1xf32>,
    %119 = vector.extract_strided_slice %80 {offsets = [0, 194], sizes = [20, 1], strides = [1, 1]} : vector<20x275xf32> to vector<20x1xf32>
    %c180_80 = arith.constant 180 : index
    %c1_81 = arith.constant 1 : index
    %120 = vector.load %arg12[%c180_80, %c1_81] : memref<320x2xf32, #tpu.memory_space<vmem>>, vector<20x1xf32>
    tpu.vector_store %arg12[%c180_80, %c1_81], %119 {strides = array<i32>} : memref<320x2xf32, #tpu.memory_space<vmem>>, vector<20x1xf32>,
    %121 = vector.extract_strided_slice %80 {offsets = [0, 52], sizes = [20, 1], strides = [1, 1]} : vector<20x275xf32> to vector<20x1xf32>
    %c200_82 = arith.constant 200 : index
    %c0_83 = arith.constant 0 : index
    %122 = vector.load %arg12[%c200_82, %c0_83] : memref<320x2xf32, #tpu.memory_space<vmem>>, vector<20x1xf32>
    tpu.vector_store %arg12[%c200_82, %c0_83], %121 {strides = array<i32>} : memref<320x2xf32, #tpu.memory_space<vmem>>, vector<20x1xf32>,
    %123 = vector.extract_strided_slice %80 {offsets = [0, 196], sizes = [20, 1], strides = [1, 1]} : vector<20x275xf32> to vector<20x1xf32>
    %c200_84 = arith.constant 200 : index
    %c1_85 = arith.constant 1 : index
    %124 = vector.load %arg12[%c200_84, %c1_85] : memref<320x2xf32, #tpu.memory_space<vmem>>, vector<20x1xf32>
    tpu.vector_store %arg12[%c200_84, %c1_85], %123 {strides = array<i32>} : memref<320x2xf32, #tpu.memory_space<vmem>>, vector<20x1xf32>,
    %125 = vector.extract_strided_slice %80 {offsets = [0, 54], sizes = [20, 1], strides = [1, 1]} : vector<20x275xf32> to vector<20x1xf32>
    %c220_86 = arith.constant 220 : index
    %c0_87 = arith.constant 0 : index
    %126 = vector.load %arg12[%c220_86, %c0_87] : memref<320x2xf32, #tpu.memory_space<vmem>>, vector<20x1xf32>
    tpu.vector_store %arg12[%c220_86, %c0_87], %125 {strides = array<i32>} : memref<320x2xf32, #tpu.memory_space<vmem>>, vector<20x1xf32>,
    %127 = vector.extract_strided_slice %80 {offsets = [0, 198], sizes = [20, 1], strides = [1, 1]} : vector<20x275xf32> to vector<20x1xf32>
    %c220_88 = arith.constant 220 : index
    %c1_89 = arith.constant 1 : index
    %128 = vector.load %arg12[%c220_88, %c1_89] : memref<320x2xf32, #tpu.memory_space<vmem>>, vector<20x1xf32>
    tpu.vector_store %arg12[%c220_88, %c1_89], %127 {strides = array<i32>} : memref<320x2xf32, #tpu.memory_space<vmem>>, vector<20x1xf32>,
    %129 = vector.extract_strided_slice %80 {offsets = [0, 72], sizes = [20, 1], strides = [1, 1]} : vector<20x275xf32> to vector<20x1xf32>
    %c240_90 = arith.constant 240 : index
    %c0_91 = arith.constant 0 : index
    %130 = vector.load %arg12[%c240_90, %c0_91] : memref<320x2xf32, #tpu.memory_space<vmem>>, vector<20x1xf32>
    tpu.vector_store %arg12[%c240_90, %c0_91], %129 {strides = array<i32>} : memref<320x2xf32, #tpu.memory_space<vmem>>, vector<20x1xf32>,
    %131 = vector.extract_strided_slice %80 {offsets = [0, 216], sizes = [20, 1], strides = [1, 1]} : vector<20x275xf32> to vector<20x1xf32>
    %c240_92 = arith.constant 240 : index
    %c1_93 = arith.constant 1 : index
    %132 = vector.load %arg12[%c240_92, %c1_93] : memref<320x2xf32, #tpu.memory_space<vmem>>, vector<20x1xf32>
    tpu.vector_store %arg12[%c240_92, %c1_93], %131 {strides = array<i32>} : memref<320x2xf32, #tpu.memory_space<vmem>>, vector<20x1xf32>,
    %133 = vector.extract_strided_slice %80 {offsets = [0, 74], sizes = [20, 1], strides = [1, 1]} : vector<20x275xf32> to vector<20x1xf32>
    %c260 = arith.constant 260 : index
    %c0_94 = arith.constant 0 : index
    %134 = vector.load %arg12[%c260, %c0_94] : memref<320x2xf32, #tpu.memory_space<vmem>>, vector<20x1xf32>
    tpu.vector_store %arg12[%c260, %c0_94], %133 {strides = array<i32>} : memref<320x2xf32, #tpu.memory_space<vmem>>, vector<20x1xf32>,
    %135 = vector.extract_strided_slice %80 {offsets = [0, 218], sizes = [20, 1], strides = [1, 1]} : vector<20x275xf32> to vector<20x1xf32>
    %c260_95 = arith.constant 260 : index
    %c1_96 = arith.constant 1 : index
    %136 = vector.load %arg12[%c260_95, %c1_96] : memref<320x2xf32, #tpu.memory_space<vmem>>, vector<20x1xf32>
    tpu.vector_store %arg12[%c260_95, %c1_96], %135 {strides = array<i32>} : memref<320x2xf32, #tpu.memory_space<vmem>>, vector<20x1xf32>,
    %137 = vector.extract_strided_slice %80 {offsets = [0, 76], sizes = [20, 1], strides = [1, 1]} : vector<20x275xf32> to vector<20x1xf32>
    %c280 = arith.constant 280 : index
    %c0_97 = arith.constant 0 : index
    %138 = vector.load %arg12[%c280, %c0_97] : memref<320x2xf32, #tpu.memory_space<vmem>>, vector<20x1xf32>
    tpu.vector_store %arg12[%c280, %c0_97], %137 {strides = array<i32>} : memref<320x2xf32, #tpu.memory_space<vmem>>, vector<20x1xf32>,
    %139 = vector.extract_strided_slice %80 {offsets = [0, 220], sizes = [20, 1], strides = [1, 1]} : vector<20x275xf32> to vector<20x1xf32>
    %c280_98 = arith.constant 280 : index
    %c1_99 = arith.constant 1 : index
    %140 = vector.load %arg12[%c280_98, %c1_99] : memref<320x2xf32, #tpu.memory_space<vmem>>, vector<20x1xf32>
    tpu.vector_store %arg12[%c280_98, %c1_99], %139 {strides = array<i32>} : memref<320x2xf32, #tpu.memory_space<vmem>>, vector<20x1xf32>,
    %141 = vector.extract_strided_slice %80 {offsets = [0, 78], sizes = [20, 1], strides = [1, 1]} : vector<20x275xf32> to vector<20x1xf32>
    %c300 = arith.constant 300 : index
    %c0_100 = arith.constant 0 : index
    %142 = vector.load %arg12[%c300, %c0_100] : memref<320x2xf32, #tpu.memory_space<vmem>>, vector<20x1xf32>
    tpu.vector_store %arg12[%c300, %c0_100], %141 {strides = array<i32>} : memref<320x2xf32, #tpu.memory_space<vmem>>, vector<20x1xf32>,
    %143 = vector.extract_strided_slice %80 {offsets = [0, 222], sizes = [20, 1], strides = [1, 1]} : vector<20x275xf32> to vector<20x1xf32>
    %c300_101 = arith.constant 300 : index
    %c1_102 = arith.constant 1 : index
    %144 = vector.load %arg12[%c300_101, %c1_102] : memref<320x2xf32, #tpu.memory_space<vmem>>, vector<20x1xf32>
    tpu.vector_store %arg12[%c300_101, %c1_102], %143 {strides = array<i32>} : memref<320x2xf32, #tpu.memory_space<vmem>>, vector<20x1xf32>,
    %c0_103 = arith.constant 0 : index
    %c0_104 = arith.constant 0 : index
    %145 = vector.load %arg6[%c0_103, %c0_104] : memref<50x320xf32, #tpu.memory_space<vmem>>, vector<50x320xf32>
    %c0_105 = arith.constant 0 : index
    %c0_106 = arith.constant 0 : index
    %146 = vector.load %arg12[%c0_105, %c0_106] : memref<320x2xf32, #tpu.memory_space<vmem>>, vector<320x2xf32>
    %cst_107 = arith.constant dense<0.000000e+00> : vector<50x2xf32>
    %147 = tpu.matmul %145, %146, %cst_107 {dimension_numbers = #tpu.dot_dimension_numbers<[1], [0], [0], [1], [0, 0, 1, 1], [], []>} : vector<50x320xf32>, vector<320x2xf32>, vector<50x2xf32> -> vector<50x2xf32>
    %c0_108 = arith.constant 0 : index
    %c0_109 = arith.constant 0 : index
    %148 = vector.load %arg7[%c0_108, %c0_109] : memref<50x1xf32, #tpu.memory_space<vmem>>, vector<50x1xf32>
    %149 = vector.broadcast %148 : vector<50x1xf32> to vector<50x2xf32>
    %150 = arith.addf %147, %149 : vector<50x2xf32>
    %cst_110 = arith.constant 0.000000e+00 : f32
    %151 = vector.broadcast %cst_110 : f32 to vector<50x2xf32>
    %152 = arith.maximumf %150, %151 : vector<50x2xf32>
    %c0_111 = arith.constant 0 : index
    %c0_112 = arith.constant 0 : index
    %153 = vector.load %arg8[%c0_111, %c0_112] : memref<10x50xf32, #tpu.memory_space<vmem>>, vector<10x50xf32>
    %cst_113 = arith.constant dense<0.000000e+00> : vector<10x2xf32>
    %154 = tpu.matmul %153, %152, %cst_113 {dimension_numbers = #tpu.dot_dimension_numbers<[1], [0], [0], [1], [0, 0, 1, 1], [], []>} : vector<10x50xf32>, vector<50x2xf32>, vector<10x2xf32> -> vector<10x2xf32>
    %c0_114 = arith.constant 0 : index
    %c0_115 = arith.constant 0 : index
    %155 = vector.load %arg9[%c0_114, %c0_115] : memref<10x1xf32, #tpu.memory_space<vmem>>, vector<10x1xf32>
    %156 = vector.broadcast %155 : vector<10x1xf32> to vector<10x2xf32>
    %157 = arith.addf %154, %156 : vector<10x2xf32>
    %cst_116 = arith.constant dense<0xFF800000> : vector<2xf32>
    %158 = vector.multi_reduction <maximumf>, %157, %cst_116 [0] : vector<10x2xf32> to vector<2xf32>
    %159 = vector.shape_cast %158 : vector<2xf32> to vector<1x2xf32>
    %160 = vector.broadcast %159 : vector<1x2xf32> to vector<10x2xf32>
    %161 = arith.subf %157, %160 : vector<10x2xf32>
    %162 = math.exp %161 : vector<10x2xf32>
    %cst_117 = arith.constant dense<0.000000e+00> : vector<2xf32>
    %163 = vector.multi_reduction <add>, %162, %cst_117 [0] : vector<10x2xf32> to vector<2xf32>
    %164 = vector.shape_cast %163 : vector<2xf32> to vector<1x2xf32>
    %165 = math.log %164 : vector<1x2xf32>
    %166 = vector.broadcast %165 : vector<1x2xf32> to vector<10x2xf32>
    %167 = arith.subf %161, %166 : vector<10x2xf32>
    %c0_118 = arith.constant 0 : index
    %c0_119 = arith.constant 0 : index
    %168 = vector.load %arg10[%c0_118, %c0_119] : memref<10x2xf32, #tpu.memory_space<vmem>>, vector<10x2xf32>
    tpu.vector_store %arg10[%c0_118, %c0_119], %167 {strides = array<i32>} : memref<10x2xf32, #tpu.memory_space<vmem>>, vector<10x2xf32>,
    return
  }
  func.func @transform_0(%arg0: i32) -> (i32, i32) {
    %c0_i32 = arith.constant 0 : i32
    %c0_i32_0 = arith.constant 0 : i32
    %c0_i32_1 = arith.constant 0 : i32
    return %c0_i32, %c0_i32_0 : i32, i32
  }
  func.func @transform_1(%arg0: i32) -> (i32, i32) {
    %c0_i32 = arith.constant 0 : i32
    %c0_i32_0 = arith.constant 0 : i32
    %c0_i32_1 = arith.constant 0 : i32
    return %c0_i32, %c0_i32_0 : i32, i32
  }
  func.func @transform_2(%arg0: i32) -> (i32, i32) {
    %c0_i32 = arith.constant 0 : i32
    %c0_i32_0 = arith.constant 0 : i32
    %c0_i32_1 = arith.constant 0 : i32
    return %c0_i32, %c0_i32_0 : i32, i32
  }
  func.func @transform_3(%arg0: i32) -> (i32, i32) {
    %c0_i32 = arith.constant 0 : i32
    %c0_i32_0 = arith.constant 0 : i32
    %c0_i32_1 = arith.constant 0 : i32
    return %c0_i32, %c0_i32_0 : i32, i32
  }
  func.func @transform_4(%arg0: i32) -> (i32, i32) {
    %c0_i32 = arith.constant 0 : i32
    %c0_i32_0 = arith.constant 0 : i32
    %c0_i32_1 = arith.constant 0 : i32
    return %c0_i32, %c0_i32_0 : i32, i32
  }
  func.func @transform_5(%arg0: i32) -> (i32, i32) {
    %c0_i32 = arith.constant 0 : i32
    %c0_i32_0 = arith.constant 0 : i32
    %c0_i32_1 = arith.constant 0 : i32
    return %c0_i32, %c0_i32_0 : i32, i32
  }
  func.func @transform_6(%arg0: i32) -> (i32, i32) {
    %c0_i32 = arith.constant 0 : i32
    %c0_i32_0 = arith.constant 0 : i32
    %c0_i32_1 = arith.constant 0 : i32
    return %c0_i32, %c0_i32_0 : i32, i32
  }
  func.func @transform_7(%arg0: i32) -> (i32, i32) {
    %c0_i32 = arith.constant 0 : i32
    %c0_i32_0 = arith.constant 0 : i32
    %c0_i32_1 = arith.constant 0 : i32
    return %c0_i32, %c0_i32_0 : i32, i32
  }
  func.func @transform_8(%arg0: i32) -> (i32, i32) {
    %c0_i32 = arith.constant 0 : i32
    %c0_i32_0 = arith.constant 0 : i32
    %c0_i32_1 = arith.constant 0 : i32
    return %c0_i32, %c0_i32_0 : i32, i32
  }
  func.func @transform_9(%arg0: i32) -> (i32, i32) {
    %c0_i32 = arith.constant 0 : i32
    %c0_i32_0 = arith.constant 0 : i32
    %c0_i32_1 = arith.constant 0 : i32
    return %c0_i32, %c0_i32_0 : i32, i32
  }
}

</mosaic_0001>

<llo_original>
// kernel: lenet3_forward.1
$region0: #{lenet3_forward.1}
  #allocation0 [shape = 'u32[]', space=smem, size = 0x4, offset = 0x4, fixed_abs, tag = 'smem constant byte address 0x4 - core index']
  #allocation1 [shape = 'u32[144,128]{1,0:T(1,128)}', space=vmem, size = 0x12000, scoped, tag = 'internal scratch']
  #allocation2 [shape = 'f32[250,288]{1,0:T(8,128)}', space=vmem, size = 0x60000, scoped, tag = 'scratch operand']
  #allocation3 [shape = 'f32[320,2]{1,0:T(8,128)}', space=vmem, size = 0x28000, scoped, tag = 'scratch operand']
  %s0 = inlined_call_operand.vmem [shape: f32[25,1152], index: 0, kind: input, shape index: {}]
  %s1 = inlined_call_operand.vmem [shape: f32[10,25], index: 1, kind: input, shape index: {}]
  %s2 = inlined_call_operand.vmem [shape: f32[10,1], index: 2, kind: input, shape index: {}]
  %s3 = inlined_call_operand.vmem [shape: f32[20,250], index: 3, kind: input, shape index: {}]
  %s4 = inlined_call_operand.vmem [shape: f32[20,1], index: 4, kind: input, shape index: {}]
  %s5 = inlined_call_operand.vmem [shape: f32[50,320], index: 5, kind: input, shape index: {}]
  %s6 = inlined_call_operand.vmem [shape: f32[50,1], index: 6, kind: input, shape index: {}]
  %s7 = inlined_call_operand.vmem [shape: f32[10,50], index: 7, kind: input, shape index: {}]
  %s8 = inlined_call_operand.vmem [shape: f32[10,1], index: 8, kind: input, shape index: {}]
  %s9 = inlined_call_operand.vmem [shape: f32[10,2], index: 9, kind: output, shape index: {}]
  %s10 = sld [smem:[#allocation0]]
  $region46: #{lenet3_forward.1} parent=0
    _
  %s12 = ssub.s32 1, %s10
  %s13 = scalar_select 0, %s12, %s10
  // Predicated region
  $region2: #{lenet3_forward.1} parent=0 // pred_check
    _
  $region3: #{lenet3_forward.1} parent=0 // pred_check_branch
    %15 = sbr.rel (0) target = $region5
  $region4: #{lenet3_forward.1} parent=0 // pred_region
    _
  $region5: #{lenet3_forward.1} parent=0 // pred_fallthru
    _
  // Predicated region
  $region6: #{lenet3_forward.1} parent=0 // pred_check
    _
  $region7: #{lenet3_forward.1} parent=0 // pred_check_branch
    %17 = sbr.rel (0) target = $region9
  $region8: #{lenet3_forward.1} parent=0 // pred_region
    _
  $region9: #{lenet3_forward.1} parent=0 // pred_fallthru
    _
  // Predicated region
  $region10: #{lenet3_forward.1} parent=0 // pred_check
    _
  $region11: #{lenet3_forward.1} parent=0 // pred_check_branch
    %19 = sbr.rel (0) target = $region13
  $region12: #{lenet3_forward.1} parent=0 // pred_region
    _
  $region13: #{lenet3_forward.1} parent=0 // pred_fallthru
    _
  // Predicated region
  $region14: #{lenet3_forward.1} parent=0 // pred_check
    _
  $region15: #{lenet3_forward.1} parent=0 // pred_check_branch
    %21 = sbr.rel (0) target = $region17
  $region16: #{lenet3_forward.1} parent=0 // pred_region
    _
  $region17: #{lenet3_forward.1} parent=0 // pred_fallthru
    _
  // Predicated region
  $region18: #{lenet3_forward.1} parent=0 // pred_check
    _
  $region19: #{lenet3_forward.1} parent=0 // pred_check_branch
    %23 = sbr.rel (0) target = $region21
  $region20: #{lenet3_forward.1} parent=0 // pred_region
    _
  $region21: #{lenet3_forward.1} parent=0 // pred_fallthru
    _
  // Predicated region
  $region22: #{lenet3_forward.1} parent=0 // pred_check
    _
  $region23: #{lenet3_forward.1} parent=0 // pred_check_branch
    %25 = sbr.rel (0) target = $region25
  $region24: #{lenet3_forward.1} parent=0 // pred_region
    _
  $region25: #{lenet3_forward.1} parent=0 // pred_fallthru
    _
  // Predicated region
  $region26: #{lenet3_forward.1} parent=0 // pred_check
    _
  $region27: #{lenet3_forward.1} parent=0 // pred_check_branch
    %27 = sbr.rel (0) target = $region29
  $region28: #{lenet3_forward.1} parent=0 // pred_region
    _
  $region29: #{lenet3_forward.1} parent=0 // pred_fallthru
    _
  // Predicated region
  $region30: #{lenet3_forward.1} parent=0 // pred_check
    _
  $region31: #{lenet3_forward.1} parent=0 // pred_check_branch
    %29 = sbr.rel (0) target = $region33
  $region32: #{lenet3_forward.1} parent=0 // pred_region
    _
  $region33: #{lenet3_forward.1} parent=0 // pred_fallthru
    _
  // Predicated region
  $region34: #{lenet3_forward.1} parent=0 // pred_check
    _
  $region35: #{lenet3_forward.1} parent=0 // pred_check_branch
    %31 = sbr.rel (0) target = $region37
  $region36: #{lenet3_forward.1} parent=0 // pred_region
    _
  $region37: #{lenet3_forward.1} parent=0 // pred_fallthru
    _
  %v32 = vld [vmem:[%s1] sm:$0xff]
  %v33 = vld [vmem:[%s1 + $0x8] sm:$0x3]
  %v34 = vld [vmem:[%s0] sm:$0xff]
  %v35 = vld [vmem:[%s0 + $0x8] sm:$0xff]
  %v36 = vld [vmem:[%s0 + $0x10] sm:$0xff]
  %v37 = vld [vmem:[%s0 + $0x18] sm:$0xff]
  %v38 = vld [vmem:[%s0 + $0x20] sm:$0xff]
  %v39 = vld [vmem:[%s0 + $0x28] sm:$0xff]
  %v40 = vld [vmem:[%s0 + $0x30] sm:$0xff]
  %v41 = vld [vmem:[%s0 + $0x38] sm:$0xff]
  %v42 = vld [vmem:[%s0 + $0x40] sm:$0xff]
  %v43 = vld [vmem:[%s0 + $0x48] sm:$0xff]
  %v44 = vld [vmem:[%s0 + $0x50] sm:$0xff]
  %v45 = vld [vmem:[%s0 + $0x58] sm:$0xff]
  %v46 = vld [vmem:[%s0 + $0x60] sm:$0xff]
  %v47 = vld [vmem:[%s0 + $0x68] sm:$0xff]
  %v48 = vld [vmem:[%s0 + $0x70] sm:$0xff]
  %v49 = vld [vmem:[%s0 + $0x78] sm:$0xff]
  %v50 = vld [vmem:[%s0 + $0x80] sm:$0xff]
  %v51 = vld [vmem:[%s0 + $0x88] sm:$0xff]
  %v52 = vld [vmem:[%s0 + $0x90] sm:$0xff]
  %v53 = vld [vmem:[%s0 + $0x98] sm:$0xff]
  %v54 = vld [vmem:[%s0 + $0xa0] sm:$0xff]
  %v55 = vld [vmem:[%s0 + $0xa8] sm:$0xff]
  %v56 = vld [vmem:[%s0 + $0xb0] sm:$0xff]
  %v57 = vld [vmem:[%s0 + $0xb8] sm:$0xff]
  %v58 = vld [vmem:[%s0 + $0xc0] sm:$0xff]
  %v59 = vld [vmem:[%s0 + $0xc8] sm:$0xff]
  %v60 = vld [vmem:[%s0 + $0xd0] sm:$0xff]
  %v61 = vld [vmem:[%s0 + $0xd8] sm:$0x1]
  %v62 = vld [vmem:[%s0 + $0xe0] sm:$0x1]
  %v63 = vld [vmem:[%s0 + $0xe8] sm:$0x1]
  %v64 = vld [vmem:[%s0 + $0xf0] sm:$0x1]
  %v65 = vld [vmem:[%s0 + $0xf8] sm:$0x1]
  %v66 = vld [vmem:[%s0 + $0x100] sm:$0x1]
  %v67 = vld [vmem:[%s0 + $0x108] sm:$0x1]
  %v68 = vld [vmem:[%s0 + $0x110] sm:$0x1]
  %v69 = vld [vmem:[%s0 + $0x118] sm:$0x1]
  %v70 = vld [vmem:[%s2] sm:$0xff]
  %v71 = vld [vmem:[%s2 + $0x8] sm:$0x3]
  %73 = vset.pattern.permute.xlu0 0
  %74 = vperm.xlu0 %73, %v70
  %v75 = vpop.permute.xlu0 %74
  %78 = vset.pattern.permute.xlu0 0
  %79 = vperm.xlu0 %78, %v71
  %v80 = vpop.permute.xlu0 %79
  %vm82 = vcmask 203776
  %v84 = vsel %vm82, %v32, 0
  %v87 = vsel %vm82, %v33, 0
  %vm89 = vcmask 1040384
  %v91 = vsel %vm89, %v61, 0
  %v94 = vsel %vm89, %v62, 0
  %v97 = vsel %vm89, %v63, 0
  %v100 = vsel %vm89, %v64, 0
  %v103 = vsel %vm89, %v65, 0
  %v106 = vsel %vm89, %v66, 0
  %v109 = vsel %vm89, %v67, 0
  %v112 = vsel %vm89, %v68, 0
  %v115 = vsel %vm89, %v69, 0
  %117 = vmatprep.subr.mxu0 %v35
  %118 = vmatpush1.msra.mxu0 %v34
  %119 = vmatprep.subr.mxu0 %v44
  %120 = vmatpush1.msra.mxu0 %v43
  %121 = vmatprep.subr.mxu0 %v53
  %122 = vmatpush1.msra.mxu0 %v52
  %123 = vmatprep.subr.mxu0 %v94
  %124 = vmatpush1.msra.mxu0 %v91
  %125 = vmatprep.subr.mxu0 0.0
  %126 = vmatpush1.msra.mxu0 0.0
  %127 = vmatprep.subr.mxu0 0.0
  %128 = vmatpush1.msra.mxu0 0.0
  %129 = vmatprep.subr.mxu0 0.0
  %130 = vmatpush1.msra.mxu0 0.0
  %131 = vmatprep.subr.mxu0 0.0
  %132 = vmatpush1.msra.mxu0 0.0
  %133 = vmatprep.subr.mxu0 0.0
  %134 = vmatpush1.msra.mxu0 0.0
  %135 = vmatprep.subr.mxu0 0.0
  %136 = vmatpush1.msra.mxu0 0.0
  %137 = vmatprep.subr.mxu0 0.0
  %138 = vmatpush1.msra.mxu0 0.0
  %139 = vmatprep.subr.mxu0 0.0
  %140 = vmatpush1.msra.mxu0 0.0
  %141 = vmatprep.subr.mxu0 0.0
  %142 = vmatpush1.msra.mxu0 0.0
  %143 = vmatprep.subr.mxu0 0.0
  %144 = vmatpush1.msra.mxu0 0.0
  %145 = vmatprep.subr.mxu0 0.0
  %146 = vmatpush1.msra.mxu0 0.0
  %147 = vmatprep.subr.mxu0 0.0
  %148 = vmatpush1.msra.mxu0 0.0
  %149 = vmatprep.subr.mxu0 0.0
  %150 = vmatpush1.msra.mxu0 0.0
  %151 = vmatprep.subr.mxu0 0.0
  %152 = vmatpush1.msra.mxu0 0.0
  %153 = vmatprep.subr.mxu0 0.0
  %154 = vmatpush1.msra.mxu0 0.0
  %155 = vmatprep.subr.mxu0 0.0
  %156 = vmatpush1.msra.mxu0 0.0
  %157 = vmatprep.subr.mxu0 0.0
  %158 = vmatpush1.msra.mxu0 0.0
  %159 = vmatprep.subr.mxu0 0.0
  %160 = vmatpush1.msra.mxu0 0.0
  %161 = vmatprep.subr.mxu0 0.0
  %162 = vmatpush1.msra.mxu0 0.0
  %163 = vmatprep.subr.mxu0 0.0
  %164 = vmatpush1.msra.mxu0 0.0
  %165 = vmatprep.subr.mxu0 0.0
  %166 = vmatpush1.msra.mxu0 0.0
  %167 = vmatprep.subr.mxu0 0.0
  %168 = vmatpush1.msra.mxu0 0.0
  %169 = vmatprep.subr.mxu0 0.0
  %170 = vmatpush1.msra.mxu0 0.0
  %171 = vmatprep.subr.mxu0 0.0
  %172 = vmatpush1.msra.mxu0 0.0
  %173 = vmatprep.subr.mxu0 0.0
  %174 = vmatpush1.msra.mxu0 0.0
  %175 = vmatprep.subr.mxu0 0.0
  %176 = vmatpush1.msra.mxu0 0.0
  %177 = vmatprep.subr.mxu0 0.0
  %178 = vmatpush1.msra.mxu0 0.0
  %179 = vmatprep.subr.mxu0 0.0
  %180 = vmatpush1.msra.mxu0 0.0
  %181 = vmatprep.mubr.f32.mxu0 0.0
  %182 = vmatmul.mubr.f32.gmra.mrb[0].mxu0 %v84
  %v183 = vpop.f32.mrb[0].mxu0
  %v184 = vadd.f32 %v75, %v183
  %v185 = vpop.f32.mrb[0].mxu0
  %v186 = vadd.f32 %v75, %v185
  %187 = vmatprep.mubr.f32.mxu0 0.0
  %188 = vmatmul.mubr.f32.gmra.mrb[0].mxu0 %v87
  %v189 = vpop.f32.mrb[0].mxu0
  %v190 = vadd.f32 %v80, %v189
  %v191 = vpop.f32.mrb[0].mxu0
  %v192 = vadd.f32 %v80, %v191
  %193 = vdwg.mxu0
  %194 = vmatprep.subr.mxu0 %v37
  %195 = vmatpush1.msra.mxu0 %v36
  %196 = vmatprep.subr.mxu0 %v46
  %197 = vmatpush1.msra.mxu0 %v45
  %198 = vmatprep.subr.mxu0 %v55
  %199 = vmatpush1.msra.mxu0 %v54
  %200 = vmatprep.subr.mxu0 %v100
  %201 = vmatpush1.msra.mxu0 %v97
  %202 = vmatprep.subr.mxu0 0.0
  %203 = vmatpush1.msra.mxu0 0.0
  %204 = vmatprep.subr.mxu0 0.0
  %205 = vmatpush1.msra.mxu0 0.0
  %206 = vmatprep.subr.mxu0 0.0
  %207 = vmatpush1.msra.mxu0 0.0
  %208 = vmatprep.subr.mxu0 0.0
  %209 = vmatpush1.msra.mxu0 0.0
  %210 = vmatprep.subr.mxu0 0.0
  %211 = vmatpush1.msra.mxu0 0.0
  %212 = vmatprep.subr.mxu0 0.0
  %213 = vmatpush1.msra.mxu0 0.0
  %214 = vmatprep.subr.mxu0 0.0
  %215 = vmatpush1.msra.mxu0 0.0
  %216 = vmatprep.subr.mxu0 0.0
  %217 = vmatpush1.msra.mxu0 0.0
  %218 = vmatprep.subr.mxu0 0.0
  %219 = vmatpush1.msra.mxu0 0.0
  %220 = vmatprep.subr.mxu0 0.0
  %221 = vmatpush1.msra.mxu0 0.0
  %222 = vmatprep.subr.mxu0 0.0
  %223 = vmatpush1.msra.mxu0 0.0
  %224 = vmatprep.subr.mxu0 0.0
  %225 = vmatpush1.msra.mxu0 0.0
  %226 = vmatprep.subr.mxu0 0.0
  %227 = vmatpush1.msra.mxu0 0.0
  %228 = vmatprep.subr.mxu0 0.0
  %229 = vmatpush1.msra.mxu0 0.0
  %230 = vmatprep.subr.mxu0 0.0
  %231 = vmatpush1.msra.mxu0 0.0
  %232 = vmatprep.subr.mxu0 0.0
  %233 = vmatpush1.msra.mxu0 0.0
  %234 = vmatprep.subr.mxu0 0.0
  %235 = vmatpush1.msra.mxu0 0.0
  %236 = vmatprep.subr.mxu0 0.0
  %237 = vmatpush1.msra.mxu0 0.0
  %238 = vmatprep.subr.mxu0 0.0
  %239 = vmatpush1.msra.mxu0 0.0
  %240 = vmatprep.subr.mxu0 0.0
  %241 = vmatpush1.msra.mxu0 0.0
  %242 = vmatprep.subr.mxu0 0.0
  %243 = vmatpush1.msra.mxu0 0.0
  %244 = vmatprep.subr.mxu0 0.0
  %245 = vmatpush1.msra.mxu0 0.0
  %246 = vmatprep.subr.mxu0 0.0
  %247 = vmatpush1.msra.mxu0 0.0
  %248 = vmatprep.subr.mxu0 0.0
  %249 = vmatpush1.msra.mxu0 0.0
  %250 = vmatprep.subr.mxu0 0.0
  %251 = vmatpush1.msra.mxu0 0.0
  %252 = vmatprep.subr.mxu0 0.0
  %253 = vmatpush1.msra.mxu0 0.0
  %254 = vmatprep.subr.mxu0 0.0
  %255 = vmatpush1.msra.mxu0 0.0
  %256 = vmatprep.subr.mxu0 0.0
  %257 = vmatpush1.msra.mxu0 0.0
  %258 = vmatprep.mubr.f32.mxu0 0.0
  %259 = vmatmul.mubr.f32.gmra.mrb[0].mxu0 %v84
  %v260 = vpop.f32.mrb[0].mxu0
  %v261 = vadd.f32 %v75, %v260
  %v262 = vpop.f32.mrb[0].mxu0
  %v263 = vadd.f32 %v75, %v262
  %264 = vmatprep.mubr.f32.mxu0 0.0
  %265 = vmatmul.mubr.f32.gmra.mrb[0].mxu0 %v87
  %v266 = vpop.f32.mrb[0].mxu0
  %v267 = vadd.f32 %v80, %v266
  %v268 = vpop.f32.mrb[0].mxu0
  %v269 = vadd.f32 %v80, %v268
  %270 = vdwg.mxu0
  %271 = vmatprep.subr.mxu0 %v39
  %272 = vmatpush1.msra.mxu0 %v38
  %273 = vmatprep.subr.mxu0 %v48
  %274 = vmatpush1.msra.mxu0 %v47
  %275 = vmatprep.subr.mxu0 %v57
  %276 = vmatpush1.msra.mxu0 %v56
  %277 = vmatprep.subr.mxu0 %v106
  %278 = vmatpush1.msra.mxu0 %v103
  %279 = vmatprep.subr.mxu0 0.0
  %280 = vmatpush1.msra.mxu0 0.0
  %281 = vmatprep.subr.mxu0 0.0
  %282 = vmatpush1.msra.mxu0 0.0
  %283 = vmatprep.subr.mxu0 0.0
  %284 = vmatpush1.msra.mxu0 0.0
  %285 = vmatprep.subr.mxu0 0.0
  %286 = vmatpush1.msra.mxu0 0.0
  %287 = vmatprep.subr.mxu0 0.0
  %288 = vmatpush1.msra.mxu0 0.0
  %289 = vmatprep.subr.mxu0 0.0
  %290 = vmatpush1.msra.mxu0 0.0
  %291 = vmatprep.subr.mxu0 0.0
  %292 = vmatpush1.msra.mxu0 0.0
  %293 = vmatprep.subr.mxu0 0.0
  %294 = vmatpush1.msra.mxu0 0.0
  %295 = vmatprep.subr.mxu0 0.0
  %296 = vmatpush1.msra.mxu0 0.0
  %297 = vmatprep.subr.mxu0 0.0
  %298 = vmatpush1.msra.mxu0 0.0
  %299 = vmatprep.subr.mxu0 0.0
  %300 = vmatpush1.msra.mxu0 0.0
  %301 = vmatprep.subr.mxu0 0.0
  %302 = vmatpush1.msra.mxu0 0.0
  %303 = vmatprep.subr.mxu0 0.0
  %304 = vmatpush1.msra.mxu0 0.0
  %305 = vmatprep.subr.mxu0 0.0
  %306 = vmatpush1.msra.mxu0 0.0
  %307 = vmatprep.subr.mxu0 0.0
  %308 = vmatpush1.msra.mxu0 0.0
  %309 = vmatprep.subr.mxu0 0.0
  %310 = vmatpush1.msra.mxu0 0.0
  %311 = vmatprep.subr.mxu0 0.0
  %312 = vmatpush1.msra.mxu0 0.0
  %313 = vmatprep.subr.mxu0 0.0
  %314 = vmatpush1.msra.mxu0 0.0
  %315 = vmatprep.subr.mxu0 0.0
  %316 = vmatpush1.msra.mxu0 0.0
  %317 = vmatprep.subr.mxu0 0.0
  %318 = vmatpush1.msra.mxu0 0.0
  %319 = vmatprep.subr.mxu0 0.0
  %320 = vmatpush1.msra.mxu0 0.0
  %321 = vmatprep.subr.mxu0 0.0
  %322 = vmatpush1.msra.mxu0 0.0
  %323 = vmatprep.subr.mxu0 0.0
  %324 = vmatpush1.msra.mxu0 0.0
  %325 = vmatprep.subr.mxu0 0.0
  %326 = vmatpush1.msra.mxu0 0.0
  %327 = vmatprep.subr.mxu0 0.0
  %328 = vmatpush1.msra.mxu0 0.0
  %329 = vmatprep.subr.mxu0 0.0
  %330 = vmatpush1.msra.mxu0 0.0
  %331 = vmatprep.subr.mxu0 0.0
  %332 = vmatpush1.msra.mxu0 0.0
  %333 = vmatprep.subr.mxu0 0.0
  %334 = vmatpush1.msra.mxu0 0.0
  %335 = vmatprep.mubr.f32.mxu0 0.0
  %336 = vmatmul.mubr.f32.gmra.mrb[0].mxu0 %v84
  %v337 = vpop.f32.mrb[0].mxu0
  %v338 = vadd.f32 %v75, %v337
  %v339 = vpop.f32.mrb[0].mxu0
  %v340 = vadd.f32 %v75, %v339
  %341 = vmatprep.mubr.f32.mxu0 0.0
  %342 = vmatmul.mubr.f32.gmra.mrb[0].mxu0 %v87
  %v343 = vpop.f32.mrb[0].mxu0
  %v344 = vadd.f32 %v80, %v343
  %v345 = vpop.f32.mrb[0].mxu0
  %v346 = vadd.f32 %v80, %v345
  %347 = vdwg.mxu0
  %348 = vmatprep.subr.mxu0 %v41
  %349 = vmatpush1.msra.mxu0 %v40
  %350 = vmatprep.subr.mxu0 %v50
  %351 = vmatpush1.msra.mxu0 %v49
  %352 = vmatprep.subr.mxu0 %v59
  %353 = vmatpush1.msra.mxu0 %v58
  %354 = vmatprep.subr.mxu0 %v112
  %355 = vmatpush1.msra.mxu0 %v109
  %356 = vmatprep.subr.mxu0 0.0
  %357 = vmatpush1.msra.mxu0 0.0
  %358 = vmatprep.subr.mxu0 0.0
  %359 = vmatpush1.msra.mxu0 0.0
  %360 = vmatprep.subr.mxu0 0.0
  %361 = vmatpush1.msra.mxu0 0.0
  %362 = vmatprep.subr.mxu0 0.0
  %363 = vmatpush1.msra.mxu0 0.0
  %364 = vmatprep.subr.mxu0 0.0
  %365 = vmatpush1.msra.mxu0 0.0
  %366 = vmatprep.subr.mxu0 0.0
  %367 = vmatpush1.msra.mxu0 0.0
  %368 = vmatprep.subr.mxu0 0.0
  %369 = vmatpush1.msra.mxu0 0.0
  %370 = vmatprep.subr.mxu0 0.0
  %371 = vmatpush1.msra.mxu0 0.0
  %372 = vmatprep.subr.mxu0 0.0
  %373 = vmatpush1.msra.mxu0 0.0
  %374 = vmatprep.subr.mxu0 0.0
  %375 = vmatpush1.msra.mxu0 0.0
  %376 = vmatprep.subr.mxu0 0.0
  %377 = vmatpush1.msra.mxu0 0.0
  %378 = vmatprep.subr.mxu0 0.0
  %379 = vmatpush1.msra.mxu0 0.0
  %380 = vmatprep.subr.mxu0 0.0
  %381 = vmatpush1.msra.mxu0 0.0
  %382 = vmatprep.subr.mxu0 0.0
  %383 = vmatpush1.msra.mxu0 0.0
  %384 = vmatprep.subr.mxu0 0.0
  %385 = vmatpush1.msra.mxu0 0.0
  %386 = vmatprep.subr.mxu0 0.0
  %387 = vmatpush1.msra.mxu0 0.0
  %388 = vmatprep.subr.mxu0 0.0
  %389 = vmatpush1.msra.mxu0 0.0
  %390 = vmatprep.subr.mxu0 0.0
  %391 = vmatpush1.msra.mxu0 0.0
  %392 = vmatprep.subr.mxu0 0.0
  %393 = vmatpush1.msra.mxu0 0.0
  %394 = vmatprep.subr.mxu0 0.0
  %395 = vmatpush1.msra.mxu0 0.0
  %396 = vmatprep.subr.mxu0 0.0
  %397 = vmatpush1.msra.mxu0 0.0
  %398 = vmatprep.subr.mxu0 0.0
  %399 = vmatpush1.msra.mxu0 0.0
  %400 = vmatprep.subr.mxu0 0.0
  %401 = vmatpush1.msra.mxu0 0.0
  %402 = vmatprep.subr.mxu0 0.0
  %403 = vmatpush1.msra.mxu0 0.0
  %404 = vmatprep.subr.mxu0 0.0
  %405 = vmatpush1.msra.mxu0 0.0
  %406 = vmatprep.subr.mxu0 0.0
  %407 = vmatpush1.msra.mxu0 0.0
  %408 = vmatprep.subr.mxu0 0.0
  %409 = vmatpush1.msra.mxu0 0.0
  %410 = vmatprep.subr.mxu0 0.0
  %411 = vmatpush1.msra.mxu0 0.0
  %412 = vmatprep.mubr.f32.mxu0 0.0
  %413 = vmatmul.mubr.f32.gmra.mrb[0].mxu0 %v84
  %v414 = vpop.f32.mrb[0].mxu0
  %v415 = vadd.f32 %v75, %v414
  %v416 = vpop.f32.mrb[0].mxu0
  %v417 = vadd.f32 %v75, %v416
  %418 = vmatprep.mubr.f32.mxu0 0.0
  %419 = vmatmul.mubr.f32.gmra.mrb[0].mxu0 %v87
  %v420 = vpop.f32.mrb[0].mxu0
  %v421 = vadd.f32 %v80, %v420
  %v422 = vpop.f32.mrb[0].mxu0
  %v423 = vadd.f32 %v80, %v422
  %424 = vdwg.mxu0
  %425 = vmatprep.subr.mxu0 0.0
  %426 = vmatpush1.msra.mxu0 %v42
  %427 = vmatprep.subr.mxu0 0.0
  %428 = vmatpush1.msra.mxu0 %v51
  %429 = vmatprep.subr.mxu0 0.0
  %430 = vmatpush1.msra.mxu0 %v60
  %431 = vmatprep.subr.mxu0 0.0
  %432 = vmatpush1.msra.mxu0 %v115
  %433 = vmatprep.subr.mxu0 0.0
  %434 = vmatpush1.msra.mxu0 0.0
  %435 = vmatprep.subr.mxu0 0.0
  %436 = vmatpush1.msra.mxu0 0.0
  %437 = vmatprep.subr.mxu0 0.0
  %438 = vmatpush1.msra.mxu0 0.0
  %439 = vmatprep.subr.mxu0 0.0
  %440 = vmatpush1.msra.mxu0 0.0
  %441 = vmatprep.subr.mxu0 0.0
  %442 = vmatpush1.msra.mxu0 0.0
  %443 = vmatprep.subr.mxu0 0.0
  %444 = vmatpush1.msra.mxu0 0.0
  %445 = vmatprep.subr.mxu0 0.0
  %446 = vmatpush1.msra.mxu0 0.0
  %447 = vmatprep.subr.mxu0 0.0
  %448 = vmatpush1.msra.mxu0 0.0
  %449 = vmatprep.subr.mxu0 0.0
  %450 = vmatpush1.msra.mxu0 0.0
  %451 = vmatprep.subr.mxu0 0.0
  %452 = vmatpush1.msra.mxu0 0.0
  %453 = vmatprep.subr.mxu0 0.0
  %454 = vmatpush1.msra.mxu0 0.0
  %455 = vmatprep.subr.mxu0 0.0
  %456 = vmatpush1.msra.mxu0 0.0
  %457 = vmatprep.subr.mxu0 0.0
  %458 = vmatpush1.msra.mxu0 0.0
  %459 = vmatprep.subr.mxu0 0.0
  %460 = vmatpush1.msra.mxu0 0.0
  %461 = vmatprep.subr.mxu0 0.0
  %462 = vmatpush1.msra.mxu0 0.0
  %463 = vmatprep.subr.mxu0 0.0
  %464 = vmatpush1.msra.mxu0 0.0
  %465 = vmatprep.subr.mxu0 0.0
  %466 = vmatpush1.msra.mxu0 0.0
  %467 = vmatprep.subr.mxu0 0.0
  %468 = vmatpush1.msra.mxu0 0.0
  %469 = vmatprep.subr.mxu0 0.0
  %470 = vmatpush1.msra.mxu0 0.0
  %471 = vmatprep.subr.mxu0 0.0
  %472 = vmatpush1.msra.mxu0 0.0
  %473 = vmatprep.subr.mxu0 0.0
  %474 = vmatpush1.msra.mxu0 0.0
  %475 = vmatprep.subr.mxu0 0.0
  %476 = vmatpush1.msra.mxu0 0.0
  %477 = vmatprep.subr.mxu0 0.0
  %478 = vmatpush1.msra.mxu0 0.0
  %479 = vmatprep.subr.mxu0 0.0
  %480 = vmatpush1.msra.mxu0 0.0
  %481 = vmatprep.subr.mxu0 0.0
  %482 = vmatpush1.msra.mxu0 0.0
  %483 = vmatprep.subr.mxu0 0.0
  %484 = vmatpush1.msra.mxu0 0.0
  %485 = vmatprep.subr.mxu0 0.0
  %486 = vmatpush1.msra.mxu0 0.0
  %487 = vmatprep.subr.mxu0 0.0
  %488 = vmatpush1.msra.mxu0 0.0
  %489 = vmatprep.mubr.f32.mxu0 0.0
  %490 = vmatmul.mubr.f32.gmra.mrb[0].mxu0 %v84
  %v491 = vpop.f32.mrb[0].mxu0
  %v492 = vadd.f32 %v75, %v491
  %v493 = vpop.f32.mrb[0].mxu0
  %494 = vmatprep.mubr.f32.mxu0 0.0
  %495 = vmatmul.mubr.f32.gmra.mrb[0].mxu0 %v87
  %v496 = vpop.f32.mrb[0].mxu0
  %v497 = vadd.f32 %v80, %v496
  %v498 = vpop.f32.mrb[0].mxu0
  %499 = vdwg.mxu0
  %506 = vrot.lane.b32.xlu0 %v261, 96
  %v507 = vpop.permute.xlu0 %506
  %508 = vrot.lane.b32.xlu0 %v263, 96
  %v509 = vpop.permute.xlu0 %508
  %510 = vrot.lane.b32.xlu0 %v338, 96
  %v511 = vpop.permute.xlu0 %510
  %512 = vrot.lane.b32.xlu0 %v267, 96
  %v513 = vpop.permute.xlu0 %512
  %514 = vrot.lane.b32.xlu0 %v269, 96
  %v515 = vpop.permute.xlu0 %514
  %516 = vrot.lane.b32.xlu0 %v344, 96
  %v517 = vpop.permute.xlu0 %516
  %vm518 = vcmask 785408
  %v519 = vsel %vm518, %v507, %v509
  %v520 = vsel %vm518, %v509, %v511
  %v521 = vsel %vm518, %v513, %v515
  %v522 = vsel %vm518, %v515, %v517
  %v529 = vmax.f32 %v184, %v519
  %v530 = vmax.f32 %v186, %v520
  %v531 = vmax.f32 %v261, %v511
  %v532 = vmax.f32 %v190, %v521
  %v533 = vmax.f32 %v192, %v522
  %v534 = vmax.f32 %v267, %v517
  %541 = vrot.lane.b32.xlu0 %v415, 96
  %v542 = vpop.permute.xlu0 %541
  %543 = vrot.lane.b32.xlu0 %v417, 96
  %v544 = vpop.permute.xlu0 %543
  %545 = vrot.lane.b32.xlu0 %v492, 96
  %v546 = vpop.permute.xlu0 %545
  %547 = vrot.lane.b32.xlu0 %v421, 96
  %v548 = vpop.permute.xlu0 %547
  %549 = vrot.lane.b32.xlu0 %v423, 96
  %v550 = vpop.permute.xlu0 %549
  %551 = vrot.lane.b32.xlu0 %v497, 96
  %v552 = vpop.permute.xlu0 %551
  %v553 = vsel %vm518, %v542, %v544
  %v554 = vsel %vm518, %v544, %v546
  %v555 = vsel %vm518, %v548, %v550
  %v556 = vsel %vm518, %v550, %v552
  %v563 = vmax.f32 %v338, %v553
  %v564 = vmax.f32 %v340, %v554
  %v565 = vmax.f32 %v415, %v546
  %v566 = vmax.f32 %v344, %v555
  %v567 = vmax.f32 %v346, %v556
  %v568 = vmax.f32 %v421, %v552
  %575 = vrot.lane.b32.xlu0 %v563, 64
  %v576 = vpop.permute.xlu0 %575
  %577 = vrot.lane.b32.xlu0 %v564, 64
  %v578 = vpop.permute.xlu0 %577
  %579 = vrot.lane.b32.xlu0 %v565, 64
  %v580 = vpop.permute.xlu0 %579
  %581 = vrot.lane.b32.xlu0 %v566, 64
  %v582 = vpop.permute.xlu0 %581
  %583 = vrot.lane.b32.xlu0 %v567, 64
  %v584 = vpop.permute.xlu0 %583
  %585 = vrot.lane.b32.xlu0 %v568, 64
  %v586 = vpop.permute.xlu0 %585
  %vm587 = vcmask 523264
  %v588 = vsel %vm587, %v576, %v578
  %v589 = vsel %vm587, %v578, %v580
  %v590 = vsel %vm587, %v582, %v584
  %v591 = vsel %vm587, %v584, %v586
  %v598 = vmax.f32 %v529, %v588
  %v599 = vmax.f32 %v530, %v589
  %v600 = vmax.f32 %v531, %v580
  %v601 = vmax.f32 %v532, %v590
  %v602 = vmax.f32 %v533, %v591
  %v603 = vmax.f32 %v534, %v586
  %v604 = vmax.f32 %v598, 0.0
  %v605 = vmax.f32 %v599, 0.0
  %v606 = vmax.f32 %v600, 0.0
  %v607 = vmax.f32 %v601, 0.0
  %v608 = vmax.f32 %v602, 0.0
  %v609 = vmax.f32 %v603, 0.0
  %610 = vst [vmem:[#allocation2] sm:$0xff] 0.0
  %611 = vst [vmem:[#allocation2 + $0x8] sm:$0xff] 0.0
  %vm612 = vcmask 261120
  %613 = vst.msk [vmem:[#allocation2 + $0x10] sm:$0xff] %vm612, 0.0
  %614 = vst [vmem:[#allocation2 + $0x18] sm:$0xff] 0.0
  %615 = vst [vmem:[#allocation2 + $0x20] sm:$0xff] 0.0
  %616 = vst.msk [vmem:[#allocation2 + $0x28] sm:$0xff] %vm612, 0.0
  %617 = vst [vmem:[#allocation2 + $0x30] sm:$0xff] 0.0
  %618 = vst [vmem:[#allocation2 + $0x38] sm:$0xff] 0.0
  %619 = vst.msk [vmem:[#allocation2 + $0x40] sm:$0xff] %vm612, 0.0
  %620 = vst [vmem:[#allocation2 + $0x48] sm:$0xff] 0.0
  %621 = vst [vmem:[#allocation2 + $0x50] sm:$0xff] 0.0
  %622 = vst.msk [vmem:[#allocation2 + $0x58] sm:$0xff] %vm612, 0.0
  %623 = vst [vmem:[#allocation2 + $0x60] sm:$0xff] 0.0
  %624 = vst [vmem:[#allocation2 + $0x68] sm:$0xff] 0.0
  %625 = vst.msk [vmem:[#allocation2 + $0x70] sm:$0xff] %vm612, 0.0
  %626 = vst [vmem:[#allocation2 + $0x78] sm:$0xff] 0.0
  %627 = vst [vmem:[#allocation2 + $0x80] sm:$0xff] 0.0
  %628 = vst.msk [vmem:[#allocation2 + $0x88] sm:$0xff] %vm612, 0.0
  %629 = vst [vmem:[#allocation2 + $0x90] sm:$0xff] 0.0
  %630 = vst [vmem:[#allocation2 + $0x98] sm:$0xff] 0.0
  %631 = vst.msk [vmem:[#allocation2 + $0xa0] sm:$0xff] %vm612, 0.0
  %632 = vst [vmem:[#allocation2 + $0xa8] sm:$0xff] 0.0
  %633 = vst [vmem:[#allocation2 + $0xb0] sm:$0xff] 0.0
  %634 = vst.msk [vmem:[#allocation2 + $0xb8] sm:$0xff] %vm612, 0.0
  %635 = vst [vmem:[#allocation2 + $0xc0] sm:$0xff] 0.0
  %636 = vst [vmem:[#allocation2 + $0xc8] sm:$0xff] 0.0
  %637 = vst.msk [vmem:[#allocation2 + $0xd0] sm:$0xff] %vm612, 0.0
  %638 = vst [vmem:[#allocation2 + $0xd8] sm:$0xff] 0.0
  %639 = vst [vmem:[#allocation2 + $0xe0] sm:$0xff] 0.0
  %640 = vst.msk [vmem:[#allocation2 + $0xe8] sm:$0xff] %vm612, 0.0
  %641 = vst [vmem:[#allocation2 + $0xf0] sm:$0xff] 0.0
  %642 = vst [vmem:[#allocation2 + $0xf8] sm:$0xff] 0.0
  %643 = vst.msk [vmem:[#allocation2 + $0x100] sm:$0xff] %vm612, 0.0
  %644 = vst [vmem:[#allocation2 + $0x108] sm:$0xff] 0.0
  %645 = vst [vmem:[#allocation2 + $0x110] sm:$0xff] 0.0
  %646 = vst.msk [vmem:[#allocation2 + $0x118] sm:$0xff] %vm612, 0.0
  %647 = vst [vmem:[#allocation2 + $0x120] sm:$0xff] 0.0
  %648 = vst [vmem:[#allocation2 + $0x128] sm:$0xff] 0.0
  %649 = vst.msk [vmem:[#allocation2 + $0x130] sm:$0xff] %vm612, 0.0
  %650 = vst [vmem:[#allocation2 + $0x138] sm:$0xff] 0.0
  %651 = vst [vmem:[#allocation2 + $0x140] sm:$0xff] 0.0
  %652 = vst.msk [vmem:[#allocation2 + $0x148] sm:$0xff] %vm612, 0.0
  %653 = vst [vmem:[#allocation2 + $0x150] sm:$0xff] 0.0
  %654 = vst [vmem:[#allocation2 + $0x158] sm:$0xff] 0.0
  %655 = vst.msk [vmem:[#allocation2 + $0x160] sm:$0xff] %vm612, 0.0
  %656 = vst [vmem:[#allocation2 + $0x168] sm:$0xff] 0.0
  %657 = vst [vmem:[#allocation2 + $0x170] sm:$0xff] 0.0
  %658 = vst.msk [vmem:[#allocation2 + $0x178] sm:$0xff] %vm612, 0.0
  %659 = vst [vmem:[#allocation2 + $0x180] sm:$0xff] 0.0
  %660 = vst [vmem:[#allocation2 + $0x188] sm:$0xff] 0.0
  %661 = vst.msk [vmem:[#allocation2 + $0x190] sm:$0xff] %vm612, 0.0
  %662 = vst [vmem:[#allocation2 + $0x198] sm:$0xff] 0.0
  %663 = vst [vmem:[#allocation2 + $0x1a0] sm:$0xff] 0.0
  %664 = vst.msk [vmem:[#allocation2 + $0x1a8] sm:$0xff] %vm612, 0.0
  %665 = vst [vmem:[#allocation2 + $0x1b0] sm:$0xff] 0.0
  %666 = vst [vmem:[#allocation2 + $0x1b8] sm:$0xff] 0.0
  %667 = vst.msk [vmem:[#allocation2 + $0x1c0] sm:$0xff] %vm612, 0.0
  %668 = vst [vmem:[#allocation2 + $0x1c8] sm:$0xff] 0.0
  %669 = vst [vmem:[#allocation2 + $0x1d0] sm:$0xff] 0.0
  %670 = vst.msk [vmem:[#allocation2 + $0x1d8] sm:$0xff] %vm612, 0.0
  %671 = vst [vmem:[#allocation2 + $0x1e0] sm:$0xff] 0.0
  %672 = vst [vmem:[#allocation2 + $0x1e8] sm:$0xff] 0.0
  %673 = vst.msk [vmem:[#allocation2 + $0x1f0] sm:$0xff] %vm612, 0.0
  %674 = vst [vmem:[#allocation2 + $0x1f8] sm:$0xff] 0.0
  %675 = vst [vmem:[#allocation2 + $0x200] sm:$0xff] 0.0
  %676 = vst.msk [vmem:[#allocation2 + $0x208] sm:$0xff] %vm612, 0.0
  %677 = vst [vmem:[#allocation2 + $0x210] sm:$0xff] 0.0
  %678 = vst [vmem:[#allocation2 + $0x218] sm:$0xff] 0.0
  %679 = vst.msk [vmem:[#allocation2 + $0x220] sm:$0xff] %vm612, 0.0
  %680 = vst [vmem:[#allocation2 + $0x228] sm:$0xff] 0.0
  %681 = vst [vmem:[#allocation2 + $0x230] sm:$0xff] 0.0
  %682 = vst.msk [vmem:[#allocation2 + $0x238] sm:$0xff] %vm612, 0.0
  %683 = vst [vmem:[#allocation2 + $0x240] sm:$0xff] 0.0
  %684 = vst [vmem:[#allocation2 + $0x248] sm:$0xff] 0.0
  %685 = vst.msk [vmem:[#allocation2 + $0x250] sm:$0xff] %vm612, 0.0
  %686 = vst [vmem:[#allocation2 + $0x258] sm:$0xff] 0.0
  %687 = vst [vmem:[#allocation2 + $0x260] sm:$0xff] 0.0
  %688 = vst.msk [vmem:[#allocation2 + $0x268] sm:$0xff] %vm612, 0.0
  %689 = vst [vmem:[#allocation2 + $0x270] sm:$0xff] 0.0
  %690 = vst [vmem:[#allocation2 + $0x278] sm:$0xff] 0.0
  %691 = vst.msk [vmem:[#allocation2 + $0x280] sm:$0xff] %vm612, 0.0
  %692 = vst [vmem:[#allocation2 + $0x288] sm:$0xff] 0.0
  %693 = vst [vmem:[#allocation2 + $0x290] sm:$0xff] 0.0
  %694 = vst.msk [vmem:[#allocation2 + $0x298] sm:$0xff] %vm612, 0.0
  %695 = vst [vmem:[#allocation2 + $0x2a0] sm:$0xff] 0.0
  %696 = vst [vmem:[#allocation2 + $0x2a8] sm:$0xff] 0.0
  %697 = vst.msk [vmem:[#allocation2 + $0x2b0] sm:$0xff] %vm612, 0.0
  %698 = vst [vmem:[#allocation2 + $0x2b8] sm:$0xff] 0.0
  %699 = vst [vmem:[#allocation2 + $0x2c0] sm:$0xff] 0.0
  %700 = vst.msk [vmem:[#allocation2 + $0x2c8] sm:$0xff] %vm612, 0.0
  %701 = vst [vmem:[#allocation2 + $0x2d0] sm:$0xff] 0.0
  %702 = vst [vmem:[#allocation2 + $0x2d8] sm:$0xff] 0.0
  %703 = vst.msk [vmem:[#allocation2 + $0x2e0] sm:$0xff] %vm612, 0.0
  %704 = vst [vmem:[#allocation2 + $0x2e8] sm:$0x3] 0.0
  %705 = vst [vmem:[#allocation2 + $0x2f0] sm:$0x3] 0.0
  %vm706 = vcmask 254976
  %707 = vst.msk [vmem:[#allocation2 + $0x2f8] sm:$0x3] %vm706, 0.0
  %708 = vst [vmem:[#allocation2] sm:$0xff] %v604
  %709 = vst [vmem:[#allocation2 + $0x8] sm:$0xff] %v605
  %710 = vst.msk [vmem:[#allocation2 + $0x10] sm:$0xff] %vm612, %v606
  %711 = vst [vmem:[#allocation2 + $0x18] sm:$0x3] %v607
  %712 = vst [vmem:[#allocation2 + $0x20] sm:$0x3] %v608
  %713 = vst.msk [vmem:[#allocation2 + $0x28] sm:$0x3] %vm706, %v609
  %vm720 = vcmask 1041408
  %v721 = vrot.slane %v604, 6
  %v722 = vrot.slane %v605, 6
  %v723 = vrot.slane %v606, 6
  %v724 = vrot.slane %v607, 6
  %v725 = vsel %vm720, %v721, %v724
  %v726 = vrot.slane %v608, 6
  %v727 = vsel %vm720, %v722, %v726
  %v728 = vrot.slane %v609, 6
  %v729 = vsel %vm720, %v723, %v728
  %730 = vrot.lane.b32.xlu0 %v721, 127
  %v731 = vpop.permute.xlu0 %730
  %732 = vrot.lane.b32.xlu0 %v722, 127
  %v733 = vpop.permute.xlu0 %732
  %734 = vrot.lane.b32.xlu0 %v723, 127
  %v735 = vpop.permute.xlu0 %734
  %736 = vrot.lane.b32.xlu0 %v725, 127
  %v737 = vpop.permute.xlu0 %736
  %738 = vrot.lane.b32.xlu0 %v727, 127
  %v739 = vpop.permute.xlu0 %738
  %740 = vrot.lane.b32.xlu0 %v729, 127
  %v741 = vpop.permute.xlu0 %740
  %vm742 = vcmask 1039360
  %v743 = vsel %vm742, %v731, %v733
  %v744 = vsel %vm742, %v733, %v735
  %v745 = vsel %vm742, %v737, %v739
  %v746 = vsel %vm742, %v739, %v741
  %753 = vst [vmem:[#allocation2 + $0x18] sm:$0xfc] %v743
  %754 = vst [vmem:[#allocation2 + $0x20] sm:$0xfc] %v744
  %vm755 = vcmask 252930
  %756 = vst.msk [vmem:[#allocation2 + $0x28] sm:$0xfc] %vm755, %v735
  %757 = vst [vmem:[#allocation2 + $0x30] sm:$0xf] %v745
  %758 = vst [vmem:[#allocation2 + $0x38] sm:$0xf] %v746
  %vm759 = vcmask 248832
  %760 = vst.msk [vmem:[#allocation2 + $0x40] sm:$0xf] %vm759, %v741
  %vm761 = vcmask 1043456
  %v762 = vrot.slane %v604, 4
  %v763 = vrot.slane %v605, 4
  %v764 = vrot.slane %v606, 4
  %v765 = vrot.slane %v607, 4
  %v766 = vsel %vm761, %v762, %v765
  %v767 = vrot.slane %v608, 4
  %v768 = vsel %vm761, %v763, %v767
  %v769 = vrot.slane %v609, 4
  %v770 = vsel %vm761, %v764, %v769
  %771 = vrot.lane.b32.xlu0 %v762, 126
  %v772 = vpop.permute.xlu0 %771
  %773 = vrot.lane.b32.xlu0 %v763, 126
  %v774 = vpop.permute.xlu0 %773
  %775 = vrot.lane.b32.xlu0 %v764, 126
  %v776 = vpop.permute.xlu0 %775
  %777 = vrot.lane.b32.xlu0 %v766, 126
  %v778 = vpop.permute.xlu0 %777
  %779 = vrot.lane.b32.xlu0 %v768, 126
  %v780 = vpop.permute.xlu0 %779
  %781 = vrot.lane.b32.xlu0 %v770, 126
  %v782 = vpop.permute.xlu0 %781
  %vm783 = vcmask 1031168
  %v784 = vsel %vm783, %v772, %v774
  %v785 = vsel %vm783, %v774, %v776
  %v786 = vsel %vm783, %v778, %v780
  %v787 = vsel %vm783, %v780, %v782
  %794 = vst [vmem:[#allocation2 + $0x30] sm:$0xf0] %v784
  %795 = vst [vmem:[#allocation2 + $0x38] sm:$0xf0] %v785
  %vm796 = vcmask 244740
  %797 = vst.msk [vmem:[#allocation2 + $0x40] sm:$0xf0] %vm796, %v776
  %798 = vst [vmem:[#allocation2 + $0x48] sm:$0x3f] %v786
  %799 = vst [vmem:[#allocation2 + $0x50] sm:$0x3f] %v787
  %vm800 = vcmask 242688
  %801 = vst.msk [vmem:[#allocation2 + $0x58] sm:$0x3f] %vm800, %v782
  %vm802 = vcmask 1045504
  %v803 = vrot.slane %v604, 2
  %v804 = vrot.slane %v605, 2
  %v805 = vrot.slane %v606, 2
  %v806 = vrot.slane %v607, 2
  %v807 = vsel %vm802, %v803, %v806
  %v808 = vrot.slane %v608, 2
  %v809 = vsel %vm802, %v804, %v808
  %v810 = vrot.slane %v609, 2
  %v811 = vsel %vm802, %v805, %v810
  %812 = vrot.lane.b32.xlu0 %v803, 125
  %v813 = vpop.permute.xlu0 %812
  %814 = vrot.lane.b32.xlu0 %v804, 125
  %v815 = vpop.permute.xlu0 %814
  %816 = vrot.lane.b32.xlu0 %v805, 125
  %v817 = vpop.permute.xlu0 %816
  %818 = vrot.lane.b32.xlu0 %v807, 125
  %v819 = vpop.permute.xlu0 %818
  %820 = vrot.lane.b32.xlu0 %v809, 125
  %v821 = vpop.permute.xlu0 %820
  %822 = vrot.lane.b32.xlu0 %v811, 125
  %v823 = vpop.permute.xlu0 %822
  %vm824 = vcmask 1022976
  %v825 = vsel %vm824, %v813, %v815
  %v826 = vsel %vm824, %v815, %v817
  %v827 = vsel %vm824, %v819, %v821
  %v828 = vsel %vm824, %v821, %v823
  %835 = vst [vmem:[#allocation2 + $0x48] sm:$0xc0] %v825
  %836 = vst [vmem:[#allocation2 + $0x50] sm:$0xc0] %v826
  %vm837 = vcmask 236550
  %838 = vst.msk [vmem:[#allocation2 + $0x58] sm:$0xc0] %vm837, %v817
  %839 = vst [vmem:[#allocation2 + $0x60] sm:$0xff] %v827
  %840 = vst [vmem:[#allocation2 + $0x68] sm:$0xff] %v828
  %vm841 = vcmask 236544
  %842 = vst.msk [vmem:[#allocation2 + $0x70] sm:$0xff] %vm841, %v823
  %843 = vrot.lane.b32.xlu0 %v604, 124
  %v844 = vpop.permute.xlu0 %843
  %845 = vrot.lane.b32.xlu0 %v605, 124
  %v846 = vpop.permute.xlu0 %845
  %847 = vrot.lane.b32.xlu0 %v606, 124
  %v848 = vpop.permute.xlu0 %847
  %849 = vrot.lane.b32.xlu0 %v607, 124
  %v850 = vpop.permute.xlu0 %849
  %851 = vrot.lane.b32.xlu0 %v608, 124
  %v852 = vpop.permute.xlu0 %851
  %853 = vrot.lane.b32.xlu0 %v609, 124
  %v854 = vpop.permute.xlu0 %853
  %vm855 = vcmask 1014784
  %v856 = vsel %vm855, %v844, %v846
  %v857 = vsel %vm855, %v846, %v848
  %v858 = vsel %vm855, %v850, %v852
  %v859 = vsel %vm855, %v852, %v854
  %866 = vst [vmem:[#allocation2 + $0x78] sm:$0xff] %v856
  %867 = vst [vmem:[#allocation2 + $0x80] sm:$0xff] %v857
  %vm868 = vcmask 228352
  %869 = vst.msk [vmem:[#allocation2 + $0x88] sm:$0xff] %vm868, %v848
  %870 = vst [vmem:[#allocation2 + $0x90] sm:$0x3] %v858
  %871 = vst [vmem:[#allocation2 + $0x98] sm:$0x3] %v859
  %vm872 = vcmask 222208
  %873 = vst.msk [vmem:[#allocation2 + $0xa0] sm:$0x3] %vm872, %v854
  %874 = vrot.lane.b32.xlu0 %v721, 116
  %v875 = vpop.permute.xlu0 %874
  %876 = vrot.lane.b32.xlu0 %v722, 116
  %v877 = vpop.permute.xlu0 %876
  %878 = vrot.lane.b32.xlu0 %v723, 116
  %v879 = vpop.permute.xlu0 %878
  %880 = vrot.lane.b32.xlu0 %v725, 116
  %v881 = vpop.permute.xlu0 %880
  %882 = vrot.lane.b32.xlu0 %v727, 116
  %v883 = vpop.permute.xlu0 %882
  %884 = vrot.lane.b32.xlu0 %v729, 116
  %v885 = vpop.permute.xlu0 %884
  %vm886 = vcmask 949248
  %v887 = vsel %vm886, %v875, %v877
  %v888 = vsel %vm886, %v877, %v879
  %v889 = vsel %vm886, %v881, %v883
  %v890 = vsel %vm886, %v883, %v885
  %897 = vst [vmem:[#allocation2 + $0x90] sm:$0xfc] %v887
  %898 = vst [vmem:[#allocation2 + $0x98] sm:$0xfc] %v888
  %vm899 = vcmask 162818
  %900 = vst.msk [vmem:[#allocation2 + $0xa0] sm:$0xfc] %vm899, %v879
  %901 = vst [vmem:[#allocation2 + $0xa8] sm:$0xf] %v889
  %902 = vst [vmem:[#allocation2 + $0xb0] sm:$0xf] %v890
  %vm903 = vcmask 158720
  %904 = vst.msk [vmem:[#allocation2 + $0xb8] sm:$0xf] %vm903, %v885
  %905 = vrot.lane.b32.xlu0 %v762, 115
  %v906 = vpop.permute.xlu0 %905
  %907 = vrot.lane.b32.xlu0 %v763, 115
  %v908 = vpop.permute.xlu0 %907
  %909 = vrot.lane.b32.xlu0 %v764, 115
  %v910 = vpop.permute.xlu0 %909
  %911 = vrot.lane.b32.xlu0 %v766, 115
  %v912 = vpop.permute.xlu0 %911
  %913 = vrot.lane.b32.xlu0 %v768, 115
  %v914 = vpop.permute.xlu0 %913
  %915 = vrot.lane.b32.xlu0 %v770, 115
  %v916 = vpop.permute.xlu0 %915
  %vm917 = vcmask 941056
  %v918 = vsel %vm917, %v906, %v908
  %v919 = vsel %vm917, %v908, %v910
  %v920 = vsel %vm917, %v912, %v914
  %v921 = vsel %vm917, %v914, %v916
  %928 = vst [vmem:[#allocation2 + $0xa8] sm:$0xf0] %v918
  %929 = vst [vmem:[#allocation2 + $0xb0] sm:$0xf0] %v919
  %vm930 = vcmask 154628
  %931 = vst.msk [vmem:[#allocation2 + $0xb8] sm:$0xf0] %vm930, %v910
  %932 = vst [vmem:[#allocation2 + $0xc0] sm:$0x3f] %v920
  %933 = vst [vmem:[#allocation2 + $0xc8] sm:$0x3f] %v921
  %vm934 = vcmask 152576
  %935 = vst.msk [vmem:[#allocation2 + $0xd0] sm:$0x3f] %vm934, %v916
  %936 = vrot.lane.b32.xlu0 %v803, 114
  %v937 = vpop.permute.xlu0 %936
  %938 = vrot.lane.b32.xlu0 %v804, 114
  %v939 = vpop.permute.xlu0 %938
  %940 = vrot.lane.b32.xlu0 %v805, 114
  %v941 = vpop.permute.xlu0 %940
  %942 = vrot.lane.b32.xlu0 %v807, 114
  %v943 = vpop.permute.xlu0 %942
  %944 = vrot.lane.b32.xlu0 %v809, 114
  %v945 = vpop.permute.xlu0 %944
  %946 = vrot.lane.b32.xlu0 %v811, 114
  %v947 = vpop.permute.xlu0 %946
  %vm948 = vcmask 932864
  %v949 = vsel %vm948, %v937, %v939
  %v950 = vsel %vm948, %v939, %v941
  %v951 = vsel %vm948, %v943, %v945
  %v952 = vsel %vm948, %v945, %v947
  %959 = vst [vmem:[#allocation2 + $0xc0] sm:$0xc0] %v949
  %960 = vst [vmem:[#allocation2 + $0xc8] sm:$0xc0] %v950
  %vm961 = vcmask 146438
  %962 = vst.msk [vmem:[#allocation2 + $0xd0] sm:$0xc0] %vm961, %v941
  %963 = vst [vmem:[#allocation2 + $0xd8] sm:$0xff] %v951
  %964 = vst [vmem:[#allocation2 + $0xe0] sm:$0xff] %v952
  %vm965 = vcmask 146432
  %966 = vst.msk [vmem:[#allocation2 + $0xe8] sm:$0xff] %vm965, %v947
  %967 = vrot.lane.b32.xlu0 %v604, 113
  %v968 = vpop.permute.xlu0 %967
  %969 = vrot.lane.b32.xlu0 %v605, 113
  %v970 = vpop.permute.xlu0 %969
  %971 = vrot.lane.b32.xlu0 %v606, 113
  %v972 = vpop.permute.xlu0 %971
  %973 = vrot.lane.b32.xlu0 %v607, 113
  %v974 = vpop.permute.xlu0 %973
  %975 = vrot.lane.b32.xlu0 %v608, 113
  %v976 = vpop.permute.xlu0 %975
  %977 = vrot.lane.b32.xlu0 %v609, 113
  %v978 = vpop.permute.xlu0 %977
  %vm979 = vcmask 924672
  %v980 = vsel %vm979, %v968, %v970
  %v981 = vsel %vm979, %v970, %v972
  %v982 = vsel %vm979, %v974, %v976
  %v983 = vsel %vm979, %v976, %v978
  %990 = vst [vmem:[#allocation2 + $0xf0] sm:$0xff] %v980
  %991 = vst [vmem:[#allocation2 + $0xf8] sm:$0xff] %v981
  %vm992 = vcmask 138240
  %993 = vst.msk [vmem:[#allocation2 + $0x100] sm:$0xff] %vm992, %v972
  %994 = vst [vmem:[#allocation2 + $0x108] sm:$0x3] %v982
  %995 = vst [vmem:[#allocation2 + $0x110] sm:$0x3] %v983
  %vm996 = vcmask 132096
  %997 = vst.msk [vmem:[#allocation2 + $0x118] sm:$0x3] %vm996, %v978
  %998 = vrot.lane.b32.xlu0 %v721, 112
  %v999 = vpop.permute.xlu0 %998
  %1000 = vrot.lane.b32.xlu0 %v722, 112
  %v1001 = vpop.permute.xlu0 %1000
  %1002 = vrot.lane.b32.xlu0 %v723, 112
  %v1003 = vpop.permute.xlu0 %1002
  %1004 = vrot.lane.b32.xlu0 %v725, 112
  %v1005 = vpop.permute.xlu0 %1004
  %1006 = vrot.lane.b32.xlu0 %v727, 112
  %v1007 = vpop.permute.xlu0 %1006
  %1008 = vrot.lane.b32.xlu0 %v729, 112
  %v1009 = vpop.permute.xlu0 %1008
  %vm1010 = vcmask 916480
  %v1011 = vsel %vm1010, %v999, %v1001
  %v1012 = vsel %vm1010, %v1001, %v1003
  %v1013 = vsel %vm1010, %v1005, %v1007
  %v1014 = vsel %vm1010, %v1007, %v1009
  %1021 = vst [vmem:[#allocation2 + $0x108] sm:$0xfc] %v1011
  %1022 = vst [vmem:[#allocation2 + $0x110] sm:$0xfc] %v1012
  %vm1023 = vcmask 130050
  %1024 = vst.msk [vmem:[#allocation2 + $0x118] sm:$0xfc] %vm1023, %v1003
  %1025 = vst [vmem:[#allocation2 + $0x120] sm:$0xf] %v1013
  %1026 = vst [vmem:[#allocation2 + $0x128] sm:$0xf] %v1014
  %vm1027 = vcmask 125952
  %1028 = vst.msk [vmem:[#allocation2 + $0x130] sm:$0xf] %vm1027, %v1009
  %1029 = vrot.lane.b32.xlu0 %v762, 104
  %v1030 = vpop.permute.xlu0 %1029
  %1031 = vrot.lane.b32.xlu0 %v763, 104
  %v1032 = vpop.permute.xlu0 %1031
  %1033 = vrot.lane.b32.xlu0 %v764, 104
  %v1034 = vpop.permute.xlu0 %1033
  %1035 = vrot.lane.b32.xlu0 %v766, 104
  %v1036 = vpop.permute.xlu0 %1035
  %1037 = vrot.lane.b32.xlu0 %v768, 104
  %v1038 = vpop.permute.xlu0 %1037
  %1039 = vrot.lane.b32.xlu0 %v770, 104
  %v1040 = vpop.permute.xlu0 %1039
  %vm1041 = vcmask 850944
  %v1042 = vsel %vm1041, %v1030, %v1032
  %v1043 = vsel %vm1041, %v1032, %v1034
  %v1044 = vsel %vm1041, %v1036, %v1038
  %v1045 = vsel %vm1041, %v1038, %v1040
  %1052 = vst [vmem:[#allocation2 + $0x120] sm:$0xf0] %v1042
  %1053 = vst [vmem:[#allocation2 + $0x128] sm:$0xf0] %v1043
  %vm1054 = vcmask 64516
  %1055 = vst.msk [vmem:[#allocation2 + $0x130] sm:$0xf0] %vm1054, %v1034
  %1056 = vst [vmem:[#allocation2 + $0x138] sm:$0x3f] %v1044
  %1057 = vst [vmem:[#allocation2 + $0x140] sm:$0x3f] %v1045
  %vm1058 = vcmask 62464
  %1059 = vst.msk [vmem:[#allocation2 + $0x148] sm:$0x3f] %vm1058, %v1040
  %1060 = vrot.lane.b32.xlu0 %v803, 103
  %v1061 = vpop.permute.xlu0 %1060
  %1062 = vrot.lane.b32.xlu0 %v804, 103
  %v1063 = vpop.permute.xlu0 %1062
  %1064 = vrot.lane.b32.xlu0 %v805, 103
  %v1065 = vpop.permute.xlu0 %1064
  %1066 = vrot.lane.b32.xlu0 %v807, 103
  %v1067 = vpop.permute.xlu0 %1066
  %1068 = vrot.lane.b32.xlu0 %v809, 103
  %v1069 = vpop.permute.xlu0 %1068
  %1070 = vrot.lane.b32.xlu0 %v811, 103
  %v1071 = vpop.permute.xlu0 %1070
  %vm1072 = vcmask 842752
  %v1073 = vsel %vm1072, %v1061, %v1063
  %v1074 = vsel %vm1072, %v1063, %v1065
  %v1075 = vsel %vm1072, %v1067, %v1069
  %v1076 = vsel %vm1072, %v1069, %v1071
  %1083 = vst [vmem:[#allocation2 + $0x138] sm:$0xc0] %v1073
  %1084 = vst [vmem:[#allocation2 + $0x140] sm:$0xc0] %v1074
  %vm1085 = vcmask 56326
  %1086 = vst.msk [vmem:[#allocation2 + $0x148] sm:$0xc0] %vm1085, %v1065
  %1087 = vst [vmem:[#allocation2 + $0x150] sm:$0xff] %v1075
  %1088 = vst [vmem:[#allocation2 + $0x158] sm:$0xff] %v1076
  %vm1089 = vcmask 56320
  %1090 = vst.msk [vmem:[#allocation2 + $0x160] sm:$0xff] %vm1089, %v1071
  %1091 = vrot.lane.b32.xlu0 %v604, 102
  %v1092 = vpop.permute.xlu0 %1091
  %1093 = vrot.lane.b32.xlu0 %v605, 102
  %v1094 = vpop.permute.xlu0 %1093
  %1095 = vrot.lane.b32.xlu0 %v606, 102
  %v1096 = vpop.permute.xlu0 %1095
  %1097 = vrot.lane.b32.xlu0 %v607, 102
  %v1098 = vpop.permute.xlu0 %1097
  %1099 = vrot.lane.b32.xlu0 %v608, 102
  %v1100 = vpop.permute.xlu0 %1099
  %1101 = vrot.lane.b32.xlu0 %v609, 102
  %v1102 = vpop.permute.xlu0 %1101
  %vm1103 = vcmask 834560
  %v1104 = vsel %vm1103, %v1092, %v1094
  %v1105 = vsel %vm1103, %v1094, %v1096
  %v1106 = vsel %vm1103, %v1098, %v1100
  %v1107 = vsel %vm1103, %v1100, %v1102
  %1114 = vst [vmem:[#allocation2 + $0x168] sm:$0xff] %v1104
  %1115 = vst [vmem:[#allocation2 + $0x170] sm:$0xff] %v1105
  %vm1116 = vcmask 48128
  %1117 = vst.msk [vmem:[#allocation2 + $0x178] sm:$0xff] %vm1116, %v1096
  %1118 = vst [vmem:[#allocation2 + $0x180] sm:$0x3] %v1106
  %1119 = vst [vmem:[#allocation2 + $0x188] sm:$0x3] %v1107
  %vm1120 = vcmask 41984
  %1121 = vst.msk [vmem:[#allocation2 + $0x190] sm:$0x3] %vm1120, %v1102
  %1122 = vrot.lane.b32.xlu0 %v721, 101
  %v1123 = vpop.permute.xlu0 %1122
  %1124 = vrot.lane.b32.xlu0 %v722, 101
  %v1125 = vpop.permute.xlu0 %1124
  %1126 = vrot.lane.b32.xlu0 %v723, 101
  %v1127 = vpop.permute.xlu0 %1126
  %1128 = vrot.lane.b32.xlu0 %v725, 101
  %v1129 = vpop.permute.xlu0 %1128
  %1130 = vrot.lane.b32.xlu0 %v727, 101
  %v1131 = vpop.permute.xlu0 %1130
  %1132 = vrot.lane.b32.xlu0 %v729, 101
  %v1133 = vpop.permute.xlu0 %1132
  %vm1134 = vcmask 826368
  %v1135 = vsel %vm1134, %v1123, %v1125
  %v1136 = vsel %vm1134, %v1125, %v1127
  %v1137 = vsel %vm1134, %v1129, %v1131
  %v1138 = vsel %vm1134, %v1131, %v1133
  %1145 = vst [vmem:[#allocation2 + $0x180] sm:$0xfc] %v1135
  %1146 = vst [vmem:[#allocation2 + $0x188] sm:$0xfc] %v1136
  %vm1147 = vcmask 39938
  %1148 = vst.msk [vmem:[#allocation2 + $0x190] sm:$0xfc] %vm1147, %v1127
  %1149 = vst [vmem:[#allocation2 + $0x198] sm:$0xf] %v1137
  %1150 = vst [vmem:[#allocation2 + $0x1a0] sm:$0xf] %v1138
  %vm1151 = vcmask 35840
  %1152 = vst.msk [vmem:[#allocation2 + $0x1a8] sm:$0xf] %vm1151, %v1133
  %1153 = vrot.lane.b32.xlu0 %v762, 100
  %v1154 = vpop.permute.xlu0 %1153
  %1155 = vrot.lane.b32.xlu0 %v763, 100
  %v1156 = vpop.permute.xlu0 %1155
  %1157 = vrot.lane.b32.xlu0 %v764, 100
  %v1158 = vpop.permute.xlu0 %1157
  %1159 = vrot.lane.b32.xlu0 %v766, 100
  %v1160 = vpop.permute.xlu0 %1159
  %1161 = vrot.lane.b32.xlu0 %v768, 100
  %v1162 = vpop.permute.xlu0 %1161
  %1163 = vrot.lane.b32.xlu0 %v770, 100
  %v1164 = vpop.permute.xlu0 %1163
  %vm1165 = vcmask 818176
  %v1166 = vsel %vm1165, %v1154, %v1156
  %v1167 = vsel %vm1165, %v1156, %v1158
  %v1168 = vsel %vm1165, %v1160, %v1162
  %v1169 = vsel %vm1165, %v1162, %v1164
  %1176 = vst [vmem:[#allocation2 + $0x198] sm:$0xf0] %v1166
  %1177 = vst [vmem:[#allocation2 + $0x1a0] sm:$0xf0] %v1167
  %vm1178 = vcmask 31748
  %1179 = vst.msk [vmem:[#allocation2 + $0x1a8] sm:$0xf0] %vm1178, %v1158
  %1180 = vst [vmem:[#allocation2 + $0x1b0] sm:$0x3f] %v1168
  %1181 = vst [vmem:[#allocation2 + $0x1b8] sm:$0x3f] %v1169
  %vm1182 = vcmask 29696
  %1183 = vst.msk [vmem:[#allocation2 + $0x1c0] sm:$0x3f] %vm1182, %v1164
  %1184 = vrot.lane.b32.xlu0 %v803, 92
  %v1185 = vpop.permute.xlu0 %1184
  %1186 = vrot.lane.b32.xlu0 %v804, 92
  %v1187 = vpop.permute.xlu0 %1186
  %1188 = vrot.lane.b32.xlu0 %v805, 92
  %v1189 = vpop.permute.xlu0 %1188
  %1190 = vrot.lane.b32.xlu0 %v807, 92
  %v1191 = vpop.permute.xlu0 %1190
  %1192 = vrot.lane.b32.xlu0 %v809, 92
  %v1193 = vpop.permute.xlu0 %1192
  %1194 = vrot.lane.b32.xlu0 %v811, 92
  %v1195 = vpop.permute.xlu0 %1194
  %vm1196 = vcmask 752640
  %v1197 = vsel %vm1196, %v1185, %v1187
  %v1198 = vsel %vm1196, %v1187, %v1189
  %v1199 = vsel %vm1196, %v1191, %v1193
  %v1200 = vsel %vm1196, %v1193, %v1195
  %1205 = vst [vmem:[#allocation2 + $0x1b0] sm:$0xc0] %v1197
  %vm1206 = vcmask 1014790
  %1207 = vst.msk [vmem:[#allocation2 + $0x1b8] sm:$0xc0] %vm1206, %v1198
  %1208 = vst [vmem:[#allocation2 + $0x1c8] sm:$0xff] %v1199
  %1209 = vst.msk [vmem:[#allocation2 + $0x1d0] sm:$0xff] %vm855, %v1200
  %1210 = vrot.lane.b32.xlu0 %v604, 91
  %v1211 = vpop.permute.xlu0 %1210
  %1212 = vrot.lane.b32.xlu0 %v605, 91
  %v1213 = vpop.permute.xlu0 %1212
  %1214 = vrot.lane.b32.xlu0 %v606, 91
  %v1215 = vpop.permute.xlu0 %1214
  %1216 = vrot.lane.b32.xlu0 %v607, 91
  %v1217 = vpop.permute.xlu0 %1216
  %1218 = vrot.lane.b32.xlu0 %v608, 91
  %v1219 = vpop.permute.xlu0 %1218
  %1220 = vrot.lane.b32.xlu0 %v609, 91
  %v1221 = vpop.permute.xlu0 %1220
  %vm1222 = vcmask 744448
  %v1223 = vsel %vm1222, %v1211, %v1213
  %v1224 = vsel %vm1222, %v1213, %v1215
  %v1225 = vsel %vm1222, %v1217, %v1219
  %v1226 = vsel %vm1222, %v1219, %v1221
  %1231 = vst [vmem:[#allocation2 + $0x1e0] sm:$0xff] %v1223
  %vm1232 = vcmask 1006592
  %1233 = vst.msk [vmem:[#allocation2 + $0x1e8] sm:$0xff] %vm1232, %v1224
  %1234 = vst [vmem:[#allocation2 + $0x1f8] sm:$0x3] %v1225
  %vm1235 = vcmask 1000448
  %1236 = vst.msk [vmem:[#allocation2 + $0x200] sm:$0x3] %vm1235, %v1226
  %1237 = vrot.lane.b32.xlu0 %v721, 90
  %v1238 = vpop.permute.xlu0 %1237
  %1239 = vrot.lane.b32.xlu0 %v722, 90
  %v1240 = vpop.permute.xlu0 %1239
  %1241 = vrot.lane.b32.xlu0 %v723, 90
  %v1242 = vpop.permute.xlu0 %1241
  %1243 = vrot.lane.b32.xlu0 %v725, 90
  %v1244 = vpop.permute.xlu0 %1243
  %1245 = vrot.lane.b32.xlu0 %v727, 90
  %v1246 = vpop.permute.xlu0 %1245
  %1247 = vrot.lane.b32.xlu0 %v729, 90
  %v1248 = vpop.permute.xlu0 %1247
  %vm1249 = vcmask 736256
  %v1250 = vsel %vm1249, %v1238, %v1240
  %v1251 = vsel %vm1249, %v1240, %v1242
  %v1252 = vsel %vm1249, %v1244, %v1246
  %v1253 = vsel %vm1249, %v1246, %v1248
  %1258 = vst [vmem:[#allocation2 + $0x1f8] sm:$0xfc] %v1250
  %vm1259 = vcmask 998402
  %1260 = vst.msk [vmem:[#allocation2 + $0x200] sm:$0xfc] %vm1259, %v1251
  %1261 = vst [vmem:[#allocation2 + $0x210] sm:$0xf] %v1252
  %vm1262 = vcmask 994304
  %1263 = vst.msk [vmem:[#allocation2 + $0x218] sm:$0xf] %vm1262, %v1253
  %1264 = vrot.lane.b32.xlu0 %v762, 89
  %v1265 = vpop.permute.xlu0 %1264
  %1266 = vrot.lane.b32.xlu0 %v763, 89
  %v1267 = vpop.permute.xlu0 %1266
  %1268 = vrot.lane.b32.xlu0 %v764, 89
  %v1269 = vpop.permute.xlu0 %1268
  %1270 = vrot.lane.b32.xlu0 %v766, 89
  %v1271 = vpop.permute.xlu0 %1270
  %1272 = vrot.lane.b32.xlu0 %v768, 89
  %v1273 = vpop.permute.xlu0 %1272
  %1274 = vrot.lane.b32.xlu0 %v770, 89
  %v1275 = vpop.permute.xlu0 %1274
  %vm1276 = vcmask 728064
  %v1277 = vsel %vm1276, %v1265, %v1267
  %v1278 = vsel %vm1276, %v1267, %v1269
  %v1279 = vsel %vm1276, %v1271, %v1273
  %v1280 = vsel %vm1276, %v1273, %v1275
  %1285 = vst [vmem:[#allocation2 + $0x210] sm:$0xf0] %v1277
  %vm1286 = vcmask 990212
  %1287 = vst.msk [vmem:[#allocation2 + $0x218] sm:$0xf0] %vm1286, %v1278
  %1288 = vst [vmem:[#allocation2 + $0x228] sm:$0x3f] %v1279
  %vm1289 = vcmask 988160
  %1290 = vst.msk [vmem:[#allocation2 + $0x230] sm:$0x3f] %vm1289, %v1280
  %1291 = vrot.lane.b32.xlu0 %v803, 88
  %v1292 = vpop.permute.xlu0 %1291
  %1293 = vrot.lane.b32.xlu0 %v804, 88
  %v1294 = vpop.permute.xlu0 %1293
  %1295 = vrot.lane.b32.xlu0 %v805, 88
  %v1296 = vpop.permute.xlu0 %1295
  %1297 = vrot.lane.b32.xlu0 %v807, 88
  %v1298 = vpop.permute.xlu0 %1297
  %1299 = vrot.lane.b32.xlu0 %v809, 88
  %v1300 = vpop.permute.xlu0 %1299
  %1301 = vrot.lane.b32.xlu0 %v811, 88
  %v1302 = vpop.permute.xlu0 %1301
  %vm1303 = vcmask 719872
  %v1304 = vsel %vm1303, %v1292, %v1294
  %v1305 = vsel %vm1303, %v1294, %v1296
  %v1306 = vsel %vm1303, %v1298, %v1300
  %v1307 = vsel %vm1303, %v1300, %v1302
  %1312 = vst [vmem:[#allocation2 + $0x228] sm:$0xc0] %v1304
  %vm1313 = vcmask 982022
  %1314 = vst.msk [vmem:[#allocation2 + $0x230] sm:$0xc0] %vm1313, %v1305
  %1315 = vst [vmem:[#allocation2 + $0x240] sm:$0xff] %v1306
  %vm1316 = vcmask 982016
  %1317 = vst.msk [vmem:[#allocation2 + $0x248] sm:$0xff] %vm1316, %v1307
  %1318 = vrot.lane.b32.xlu0 %v604, 80
  %v1319 = vpop.permute.xlu0 %1318
  %1320 = vrot.lane.b32.xlu0 %v605, 80
  %v1321 = vpop.permute.xlu0 %1320
  %1322 = vrot.lane.b32.xlu0 %v606, 80
  %v1323 = vpop.permute.xlu0 %1322
  %1324 = vrot.lane.b32.xlu0 %v607, 80
  %v1325 = vpop.permute.xlu0 %1324
  %1326 = vrot.lane.b32.xlu0 %v608, 80
  %v1327 = vpop.permute.xlu0 %1326
  %1328 = vrot.lane.b32.xlu0 %v609, 80
  %v1329 = vpop.permute.xlu0 %1328
  %vm1330 = vcmask 654336
  %v1331 = vsel %vm1330, %v1319, %v1321
  %v1332 = vsel %vm1330, %v1321, %v1323
  %v1333 = vsel %vm1330, %v1325, %v1327
  %v1334 = vsel %vm1330, %v1327, %v1329
  %1339 = vst [vmem:[#allocation2 + $0x258] sm:$0xff] %v1331
  %1340 = vst.msk [vmem:[#allocation2 + $0x260] sm:$0xff] %vm1010, %v1332
  %1341 = vst [vmem:[#allocation2 + $0x270] sm:$0x3] %v1333
  %vm1342 = vcmask 910336
  %1343 = vst.msk [vmem:[#allocation2 + $0x278] sm:$0x3] %vm1342, %v1334
  %1344 = vrot.lane.b32.xlu0 %v721, 79
  %v1345 = vpop.permute.xlu0 %1344
  %1346 = vrot.lane.b32.xlu0 %v722, 79
  %v1347 = vpop.permute.xlu0 %1346
  %1348 = vrot.lane.b32.xlu0 %v723, 79
  %v1349 = vpop.permute.xlu0 %1348
  %1350 = vrot.lane.b32.xlu0 %v725, 79
  %v1351 = vpop.permute.xlu0 %1350
  %1352 = vrot.lane.b32.xlu0 %v727, 79
  %v1353 = vpop.permute.xlu0 %1352
  %1354 = vrot.lane.b32.xlu0 %v729, 79
  %v1355 = vpop.permute.xlu0 %1354
  %vm1356 = vcmask 646144
  %v1357 = vsel %vm1356, %v1345, %v1347
  %v1358 = vsel %vm1356, %v1347, %v1349
  %v1359 = vsel %vm1356, %v1351, %v1353
  %v1360 = vsel %vm1356, %v1353, %v1355
  %1365 = vst [vmem:[#allocation2 + $0x270] sm:$0xfc] %v1357
  %vm1366 = vcmask 908290
  %1367 = vst.msk [vmem:[#allocation2 + $0x278] sm:$0xfc] %vm1366, %v1358
  %1368 = vst [vmem:[#allocation2 + $0x288] sm:$0xf] %v1359
  %vm1369 = vcmask 904192
  %1370 = vst.msk [vmem:[#allocation2 + $0x290] sm:$0xf] %vm1369, %v1360
  %1371 = vrot.lane.b32.xlu0 %v762, 78
  %v1372 = vpop.permute.xlu0 %1371
  %1373 = vrot.lane.b32.xlu0 %v763, 78
  %v1374 = vpop.permute.xlu0 %1373
  %1375 = vrot.lane.b32.xlu0 %v764, 78
  %v1376 = vpop.permute.xlu0 %1375
  %1377 = vrot.lane.b32.xlu0 %v766, 78
  %v1378 = vpop.permute.xlu0 %1377
  %1379 = vrot.lane.b32.xlu0 %v768, 78
  %v1380 = vpop.permute.xlu0 %1379
  %1381 = vrot.lane.b32.xlu0 %v770, 78
  %v1382 = vpop.permute.xlu0 %1381
  %vm1383 = vcmask 637952
  %v1384 = vsel %vm1383, %v1372, %v1374
  %v1385 = vsel %vm1383, %v1374, %v1376
  %v1386 = vsel %vm1383, %v1378, %v1380
  %v1387 = vsel %vm1383, %v1380, %v1382
  %1392 = vst [vmem:[#allocation2 + $0x288] sm:$0xf0] %v1384
  %vm1393 = vcmask 900100
  %1394 = vst.msk [vmem:[#allocation2 + $0x290] sm:$0xf0] %vm1393, %v1385
  %1395 = vst [vmem:[#allocation2 + $0x2a0] sm:$0x3f] %v1386
  %vm1396 = vcmask 898048
  %1397 = vst.msk [vmem:[#allocation2 + $0x2a8] sm:$0x3f] %vm1396, %v1387
  %1398 = vrot.lane.b32.xlu0 %v803, 77
  %v1399 = vpop.permute.xlu0 %1398
  %1400 = vrot.lane.b32.xlu0 %v804, 77
  %v1401 = vpop.permute.xlu0 %1400
  %1402 = vrot.lane.b32.xlu0 %v805, 77
  %v1403 = vpop.permute.xlu0 %1402
  %1404 = vrot.lane.b32.xlu0 %v807, 77
  %v1405 = vpop.permute.xlu0 %1404
  %1406 = vrot.lane.b32.xlu0 %v809, 77
  %v1407 = vpop.permute.xlu0 %1406
  %1408 = vrot.lane.b32.xlu0 %v811, 77
  %v1409 = vpop.permute.xlu0 %1408
  %vm1410 = vcmask 629760
  %v1411 = vsel %vm1410, %v1399, %v1401
  %v1412 = vsel %vm1410, %v1401, %v1403
  %v1413 = vsel %vm1410, %v1405, %v1407
  %v1414 = vsel %vm1410, %v1407, %v1409
  %1419 = vst [vmem:[#allocation2 + $0x2a0] sm:$0xc0] %v1411
  %vm1420 = vcmask 891910
  %1421 = vst.msk [vmem:[#allocation2 + $0x2a8] sm:$0xc0] %vm1420, %v1412
  %1422 = vst [vmem:[#allocation2 + $0x2b8] sm:$0xff] %v1413
  %vm1423 = vcmask 891904
  %1424 = vst.msk [vmem:[#allocation2 + $0x2c0] sm:$0xff] %vm1423, %v1414
  %1425 = vrot.lane.b32.xlu0 %v604, 76
  %v1426 = vpop.permute.xlu0 %1425
  %1427 = vrot.lane.b32.xlu0 %v605, 76
  %v1428 = vpop.permute.xlu0 %1427
  %1429 = vrot.lane.b32.xlu0 %v606, 76
  %v1430 = vpop.permute.xlu0 %1429
  %1431 = vrot.lane.b32.xlu0 %v607, 76
  %v1432 = vpop.permute.xlu0 %1431
  %1433 = vrot.lane.b32.xlu0 %v608, 76
  %v1434 = vpop.permute.xlu0 %1433
  %1435 = vrot.lane.b32.xlu0 %v609, 76
  %v1436 = vpop.permute.xlu0 %1435
  %vm1437 = vcmask 621568
  %v1438 = vsel %vm1437, %v1426, %v1428
  %v1439 = vsel %vm1437, %v1428, %v1430
  %v1440 = vsel %vm1437, %v1432, %v1434
  %v1441 = vsel %vm1437, %v1434, %v1436
  %1446 = vst [vmem:[#allocation2 + $0x2d0] sm:$0xff] %v1438
  %vm1447 = vcmask 883712
  %1448 = vst.msk [vmem:[#allocation2 + $0x2d8] sm:$0xff] %vm1447, %v1439
  %1449 = vst [vmem:[#allocation2 + $0x2e8] sm:$0x3] %v1440
  %vm1450 = vcmask 877568
  %1451 = vst.msk [vmem:[#allocation2 + $0x2f0] sm:$0x3] %vm1450, %v1441
  %v1452 = vld [vmem:[%s3] sm:$0xff]
  %v1453 = vld [vmem:[%s3 + $0x8] sm:$0xff]
  %v1454 = vld [vmem:[%s3 + $0x10] sm:$0xff]
  %v1455 = vld [vmem:[%s3 + $0x18] sm:$0xff]
  %v1456 = vld [vmem:[%s3 + $0x20] sm:$0xf]
  %v1457 = vld [vmem:[%s3 + $0x28] sm:$0xf]
  %v1458 = vld [vmem:[#allocation2] sm:$0xff]
  %v1459 = vld [vmem:[#allocation2 + $0x8] sm:$0xff]
  %v1460 = vld [vmem:[#allocation2 + $0x10] sm:$0xff]
  %v1461 = vld [vmem:[#allocation2 + $0x18] sm:$0xff]
  %v1462 = vld [vmem:[#allocation2 + $0x20] sm:$0xff]
  %v1463 = vld [vmem:[#allocation2 + $0x28] sm:$0xff]
  %v1464 = vld [vmem:[#allocation2 + $0x30] sm:$0xff]
  %v1465 = vld [vmem:[#allocation2 + $0x38] sm:$0xff]
  %v1466 = vld [vmem:[#allocation2 + $0x40] sm:$0xff]
  %v1467 = vld [vmem:[#allocation2 + $0x48] sm:$0xff]
  %v1468 = vld [vmem:[#allocation2 + $0x50] sm:$0xff]
  %v1469 = vld [vmem:[#allocation2 + $0x58] sm:$0xff]
  %v1470 = vld [vmem:[#allocation2 + $0x60] sm:$0xff]
  %v1471 = vld [vmem:[#allocation2 + $0x68] sm:$0xff]
  %v1472 = vld [vmem:[#allocation2 + $0x70] sm:$0xff]
  %v1473 = vld [vmem:[#allocation2 + $0x78] sm:$0xff]
  %v1474 = vld [vmem:[#allocation2 + $0x80] sm:$0xff]
  %v1475 = vld [vmem:[#allocation2 + $0x88] sm:$0xff]
  %v1476 = vld [vmem:[#allocation2 + $0x90] sm:$0xff]
  %v1477 = vld [vmem:[#allocation2 + $0x98] sm:$0xff]
  %v1478 = vld [vmem:[#allocation2 + $0xa0] sm:$0xff]
  %v1479 = vld [vmem:[#allocation2 + $0xa8] sm:$0xff]
  %v1480 = vld [vmem:[#allocation2 + $0xb0] sm:$0xff]
  %v1481 = vld [vmem:[#allocation2 + $0xb8] sm:$0xff]
  %v1482 = vld [vmem:[#allocation2 + $0xc0] sm:$0xff]
  %v1483 = vld [vmem:[#allocation2 + $0xc8] sm:$0xff]
  %v1484 = vld [vmem:[#allocation2 + $0xd0] sm:$0xff]
  %v1485 = vld [vmem:[#allocation2 + $0xd8] sm:$0xff]
  %v1486 = vld [vmem:[#allocation2 + $0xe0] sm:$0xff]
  %v1487 = vld [vmem:[#allocation2 + $0xe8] sm:$0xff]
  %v1488 = vld [vmem:[#allocation2 + $0xf0] sm:$0xff]
  %v1489 = vld [vmem:[#allocation2 + $0xf8] sm:$0xff]
  %v1490 = vld [vmem:[#allocation2 + $0x100] sm:$0xff]
  %v1491 = vld [vmem:[#allocation2 + $0x108] sm:$0xff]
  %v1492 = vld [vmem:[#allocation2 + $0x110] sm:$0xff]
  %v1493 = vld [vmem:[#allocation2 + $0x118] sm:$0xff]
  %v1494 = vld [vmem:[#allocation2 + $0x120] sm:$0xff]
  %v1495 = vld [vmem:[#allocation2 + $0x128] sm:$0xff]
  %v1496 = vld [vmem:[#allocation2 + $0x130] sm:$0xff]
  %v1497 = vld [vmem:[#allocation2 + $0x138] sm:$0xff]
  %v1498 = vld [vmem:[#allocation2 + $0x140] sm:$0xff]
  %v1499 = vld [vmem:[#allocation2 + $0x148] sm:$0xff]
  %v1500 = vld [vmem:[#allocation2 + $0x150] sm:$0xff]
  %v1501 = vld [vmem:[#allocation2 + $0x158] sm:$0xff]
  %v1502 = vld [vmem:[#allocation2 + $0x160] sm:$0xff]
  %v1503 = vld [vmem:[#allocation2 + $0x168] sm:$0xff]
  %v1504 = vld [vmem:[#allocation2 + $0x170] sm:$0xff]
  %v1505 = vld [vmem:[#allocation2 + $0x178] sm:$0xff]
  %v1506 = vld [vmem:[#allocation2 + $0x180] sm:$0xff]
  %v1507 = vld [vmem:[#allocation2 + $0x188] sm:$0xff]
  %v1508 = vld [vmem:[#allocation2 + $0x190] sm:$0xff]
  %v1509 = vld [vmem:[#allocation2 + $0x198] sm:$0xff]
  %v1510 = vld [vmem:[#allocation2 + $0x1a0] sm:$0xff]
  %v1511 = vld [vmem:[#allocation2 + $0x1a8] sm:$0xff]
  %v1512 = vld [vmem:[#allocation2 + $0x1b0] sm:$0xff]
  %v1513 = vld [vmem:[#allocation2 + $0x1b8] sm:$0xff]
  %v1514 = vld [vmem:[#allocation2 + $0x1c0] sm:$0xff]
  %v1515 = vld [vmem:[#allocation2 + $0x1c8] sm:$0xff]
  %v1516 = vld [vmem:[#allocation2 + $0x1d0] sm:$0xff]
  %v1517 = vld [vmem:[#allocation2 + $0x1d8] sm:$0xff]
  %v1518 = vld [vmem:[#allocation2 + $0x1e0] sm:$0xff]
  %v1519 = vld [vmem:[#allocation2 + $0x1e8] sm:$0xff]
  %v1520 = vld [vmem:[#allocation2 + $0x1f0] sm:$0xff]
  %v1521 = vld [vmem:[#allocation2 + $0x1f8] sm:$0xff]
  %v1522 = vld [vmem:[#allocation2 + $0x200] sm:$0xff]
  %v1523 = vld [vmem:[#allocation2 + $0x208] sm:$0xff]
  %v1524 = vld [vmem:[#allocation2 + $0x210] sm:$0xff]
  %v1525 = vld [vmem:[#allocation2 + $0x218] sm:$0xff]
  %v1526 = vld [vmem:[#allocation2 + $0x220] sm:$0xff]
  %v1527 = vld [vmem:[#allocation2 + $0x228] sm:$0xff]
  %v1528 = vld [vmem:[#allocation2 + $0x230] sm:$0xff]
  %v1529 = vld [vmem:[#allocation2 + $0x238] sm:$0xff]
  %v1530 = vld [vmem:[#allocation2 + $0x240] sm:$0xff]
  %v1531 = vld [vmem:[#allocation2 + $0x248] sm:$0xff]
  %v1532 = vld [vmem:[#allocation2 + $0x250] sm:$0xff]
  %v1533 = vld [vmem:[#allocation2 + $0x258] sm:$0xff]
  %v1534 = vld [vmem:[#allocation2 + $0x260] sm:$0xff]
  %v1535 = vld [vmem:[#allocation2 + $0x268] sm:$0xff]
  %v1536 = vld [vmem:[#allocation2 + $0x270] sm:$0xff]
  %v1537 = vld [vmem:[#allocation2 + $0x278] sm:$0xff]
  %v1538 = vld [vmem:[#allocation2 + $0x280] sm:$0xff]
  %v1539 = vld [vmem:[#allocation2 + $0x288] sm:$0xff]
  %v1540 = vld [vmem:[#allocation2 + $0x290] sm:$0xff]
  %v1541 = vld [vmem:[#allocation2 + $0x298] sm:$0xff]
  %v1542 = vld [vmem:[#allocation2 + $0x2a0] sm:$0xff]
  %v1543 = vld [vmem:[#allocation2 + $0x2a8] sm:$0xff]
  %v1544 = vld [vmem:[#allocation2 + $0x2b0] sm:$0xff]
  %v1545 = vld [vmem:[#allocation2 + $0x2b8] sm:$0xff]
  %v1546 = vld [vmem:[#allocation2 + $0x2c0] sm:$0xff]
  %v1547 = vld [vmem:[#allocation2 + $0x2c8] sm:$0xff]
  %v1548 = vld [vmem:[#allocation2 + $0x2d0] sm:$0xff]
  %v1549 = vld [vmem:[#allocation2 + $0x2d8] sm:$0xff]
  %v1550 = vld [vmem:[#allocation2 + $0x2e0] sm:$0xff]
  %v1551 = vld [vmem:[#allocation2 + $0x2e8] sm:$0x3]
  %v1552 = vld [vmem:[#allocation2 + $0x2f0] sm:$0x3]
  %v1553 = vld [vmem:[#allocation2 + $0x2f8] sm:$0x3]
  %v1554 = vld [vmem:[%s4] sm:$0xff]
  %v1555 = vld [vmem:[%s4 + $0x8] sm:$0xff]
  %v1556 = vld [vmem:[%s4 + $0x10] sm:$0xf]
  %1558 = vset.pattern.permute.xlu0 0
  %1559 = vperm.xlu0 %1558, %v1554
  %v1560 = vpop.permute.xlu0 %1559
  %1563 = vset.pattern.permute.xlu0 0
  %1564 = vperm.xlu0 %1563, %v1555
  %v1565 = vpop.permute.xlu0 %1564
  %1568 = vset.pattern.permute.xlu0 0
  %1569 = vperm.xlu0 %1568, %v1556
  %v1570 = vpop.permute.xlu0 %1569
  %vm1572 = vcmask 998400
  %v1574 = vsel %vm1572, %v1453, 0
  %v1577 = vsel %vm1572, %v1455, 0
  %v1580 = vsel %vm1572, %v1457, 0
  %v1583 = vsel %vm720, %v1551, 0
  %v1586 = vsel %vm720, %v1552, 0
  %v1589 = vsel %vm720, %v1553, 0
  %1591 = vmatprep.subr.mxu0 %v1459
  %1592 = vmatpush1.msra.mxu0 %v1458
  %1593 = vmatprep.subr.mxu0 %v1462
  %1594 = vmatpush1.msra.mxu0 %v1461
  %1595 = vmatprep.subr.mxu0 %v1465
  %1596 = vmatpush1.msra.mxu0 %v1464
  %1597 = vmatprep.subr.mxu0 %v1468
  %1598 = vmatpush1.msra.mxu0 %v1467
  %1599 = vmatprep.subr.mxu0 %v1471
  %1600 = vmatpush1.msra.mxu0 %v1470
  %1601 = vmatprep.subr.mxu0 %v1474
  %1602 = vmatpush1.msra.mxu0 %v1473
  %1603 = vmatprep.subr.mxu0 %v1477
  %1604 = vmatpush1.msra.mxu0 %v1476
  %1605 = vmatprep.subr.mxu0 %v1480
  %1606 = vmatpush1.msra.mxu0 %v1479
  %1607 = vmatprep.subr.mxu0 %v1483
  %1608 = vmatpush1.msra.mxu0 %v1482
  %1609 = vmatprep.subr.mxu0 %v1486
  %1610 = vmatpush1.msra.mxu0 %v1485
  %1611 = vmatprep.subr.mxu0 %v1489
  %1612 = vmatpush1.msra.mxu0 %v1488
  %1613 = vmatprep.subr.mxu0 %v1492
  %1614 = vmatpush1.msra.mxu0 %v1491
  %1615 = vmatprep.subr.mxu0 %v1495
  %1616 = vmatpush1.msra.mxu0 %v1494
  %1617 = vmatprep.subr.mxu0 %v1498
  %1618 = vmatpush1.msra.mxu0 %v1497
  %1619 = vmatprep.subr.mxu0 %v1501
  %1620 = vmatpush1.msra.mxu0 %v1500
  %1621 = vmatprep.subr.mxu0 %v1504
  %1622 = vmatpush1.msra.mxu0 %v1503
  %1623 = vmatprep.subr.mxu0 %v1507
  %1624 = vmatpush1.msra.mxu0 %v1506
  %1625 = vmatprep.subr.mxu0 %v1510
  %1626 = vmatpush1.msra.mxu0 %v1509
  %1627 = vmatprep.subr.mxu0 %v1513
  %1628 = vmatpush1.msra.mxu0 %v1512
  %1629 = vmatprep.subr.mxu0 %v1516
  %1630 = vmatpush1.msra.mxu0 %v1515
  %1631 = vmatprep.subr.mxu0 %v1519
  %1632 = vmatpush1.msra.mxu0 %v1518
  %1633 = vmatprep.subr.mxu0 %v1522
  %1634 = vmatpush1.msra.mxu0 %v1521
  %1635 = vmatprep.subr.mxu0 %v1525
  %1636 = vmatpush1.msra.mxu0 %v1524
  %1637 = vmatprep.subr.mxu0 %v1528
  %1638 = vmatpush1.msra.mxu0 %v1527
  %1639 = vmatprep.subr.mxu0 %v1531
  %1640 = vmatpush1.msra.mxu0 %v1530
  %1641 = vmatprep.subr.mxu0 %v1534
  %1642 = vmatpush1.msra.mxu0 %v1533
  %1643 = vmatprep.subr.mxu0 %v1537
  %1644 = vmatpush1.msra.mxu0 %v1536
  %1645 = vmatprep.subr.mxu0 %v1540
  %1646 = vmatpush1.msra.mxu0 %v1539
  %1647 = vmatprep.subr.mxu0 %v1543
  %1648 = vmatpush1.msra.mxu0 %v1542
  %1649 = vmatprep.subr.mxu0 %v1546
  %1650 = vmatpush1.msra.mxu0 %v1545
  %1651 = vmatprep.subr.mxu0 %v1549
  %1652 = vmatpush1.msra.mxu0 %v1548
  %1653 = vmatprep.subr.mxu0 %v1586
  %1654 = vmatpush1.msra.mxu0 %v1583
  %1655 = vmatprep.mubr.f32.mxu0 %v1574
  %1656 = vmatmul.mubr.f32.gmra.mrb[0].mxu0 %v1452
  %v1657 = vpop.f32.mrb[0].mxu0
  %v1658 = vadd.f32 %v1560, %v1657
  %v1659 = vpop.f32.mrb[0].mxu0
  %v1660 = vadd.f32 %v1560, %v1659
  %1661 = vmatprep.mubr.f32.mxu0 %v1577
  %1662 = vmatmul.mubr.f32.gmra.mrb[0].mxu0 %v1454
  %v1663 = vpop.f32.mrb[0].mxu0
  %v1664 = vadd.f32 %v1565, %v1663
  %v1665 = vpop.f32.mrb[0].mxu0
  %v1666 = vadd.f32 %v1565, %v1665
  %1667 = vmatprep.mubr.f32.mxu0 %v1580
  %1668 = vmatmul.mubr.f32.gmra.mrb[0].mxu0 %v1456
  %v1669 = vpop.f32.mrb[0].mxu0
  %v1670 = vadd.f32 %v1570, %v1669
  %v1671 = vpop.f32.mrb[0].mxu0
  %v1672 = vadd.f32 %v1570, %v1671
  %1673 = vdwg.mxu0
  %1674 = vmatprep.subr.mxu0 0.0
  %1675 = vmatpush1.msra.mxu0 %v1460
  %1676 = vmatprep.subr.mxu0 0.0
  %1677 = vmatpush1.msra.mxu0 %v1463
  %1678 = vmatprep.subr.mxu0 0.0
  %1679 = vmatpush1.msra.mxu0 %v1466
  %1680 = vmatprep.subr.mxu0 0.0
  %1681 = vmatpush1.msra.mxu0 %v1469
  %1682 = vmatprep.subr.mxu0 0.0
  %1683 = vmatpush1.msra.mxu0 %v1472
  %1684 = vmatprep.subr.mxu0 0.0
  %1685 = vmatpush1.msra.mxu0 %v1475
  %1686 = vmatprep.subr.mxu0 0.0
  %1687 = vmatpush1.msra.mxu0 %v1478
  %1688 = vmatprep.subr.mxu0 0.0
  %1689 = vmatpush1.msra.mxu0 %v1481
  %1690 = vmatprep.subr.mxu0 0.0
  %1691 = vmatpush1.msra.mxu0 %v1484
  %1692 = vmatprep.subr.mxu0 0.0
  %1693 = vmatpush1.msra.mxu0 %v1487
  %1694 = vmatprep.subr.mxu0 0.0
  %1695 = vmatpush1.msra.mxu0 %v1490
  %1696 = vmatprep.subr.mxu0 0.0
  %1697 = vmatpush1.msra.mxu0 %v1493
  %1698 = vmatprep.subr.mxu0 0.0
  %1699 = vmatpush1.msra.mxu0 %v1496
  %1700 = vmatprep.subr.mxu0 0.0
  %1701 = vmatpush1.msra.mxu0 %v1499
  %1702 = vmatprep.subr.mxu0 0.0
  %1703 = vmatpush1.msra.mxu0 %v1502
  %1704 = vmatprep.subr.mxu0 0.0
  %1705 = vmatpush1.msra.mxu0 %v1505
  %1706 = vmatprep.subr.mxu0 0.0
  %1707 = vmatpush1.msra.mxu0 %v1508
  %1708 = vmatprep.subr.mxu0 0.0
  %1709 = vmatpush1.msra.mxu0 %v1511
  %1710 = vmatprep.subr.mxu0 0.0
  %1711 = vmatpush1.msra.mxu0 %v1514
  %1712 = vmatprep.subr.mxu0 0.0
  %1713 = vmatpush1.msra.mxu0 %v1517
  %1714 = vmatprep.subr.mxu0 0.0
  %1715 = vmatpush1.msra.mxu0 %v1520
  %1716 = vmatprep.subr.mxu0 0.0
  %1717 = vmatpush1.msra.mxu0 %v1523
  %1718 = vmatprep.subr.mxu0 0.0
  %1719 = vmatpush1.msra.mxu0 %v1526
  %1720 = vmatprep.subr.mxu0 0.0
  %1721 = vmatpush1.msra.mxu0 %v1529
  %1722 = vmatprep.subr.mxu0 0.0
  %1723 = vmatpush1.msra.mxu0 %v1532
  %1724 = vmatprep.subr.mxu0 0.0
  %1725 = vmatpush1.msra.mxu0 %v1535
  %1726 = vmatprep.subr.mxu0 0.0
  %1727 = vmatpush1.msra.mxu0 %v1538
  %1728 = vmatprep.subr.mxu0 0.0
  %1729 = vmatpush1.msra.mxu0 %v1541
  %1730 = vmatprep.subr.mxu0 0.0
  %1731 = vmatpush1.msra.mxu0 %v1544
  %1732 = vmatprep.subr.mxu0 0.0
  %1733 = vmatpush1.msra.mxu0 %v1547
  %1734 = vmatprep.subr.mxu0 0.0
  %1735 = vmatpush1.msra.mxu0 %v1550
  %1736 = vmatprep.subr.mxu0 0.0
  %1737 = vmatpush1.msra.mxu0 %v1589
  %1738 = vmatprep.mubr.f32.mxu0 %v1574
  %1739 = vmatmul.mubr.f32.gmra.mrb[0].mxu0 %v1452
  %v1740 = vpop.f32.mrb[0].mxu0
  %v1741 = vadd.f32 %v1560, %v1740
  %v1742 = vpop.f32.mrb[0].mxu0
  %1743 = vmatprep.mubr.f32.mxu0 %v1577
  %1744 = vmatmul.mubr.f32.gmra.mrb[0].mxu0 %v1454
  %v1745 = vpop.f32.mrb[0].mxu0
  %v1746 = vadd.f32 %v1565, %v1745
  %v1747 = vpop.f32.mrb[0].mxu0
  %1748 = vmatprep.mubr.f32.mxu0 %v1580
  %1749 = vmatmul.mubr.f32.gmra.mrb[0].mxu0 %v1456
  %v1750 = vpop.f32.mrb[0].mxu0
  %v1751 = vadd.f32 %v1570, %v1750
  %v1752 = vpop.f32.mrb[0].mxu0
  %1753 = vdwg.mxu0
  %1763 = vrot.lane.b32.xlu0 %v1658, 127
  %v1764 = vpop.permute.xlu0 %1763
  %1765 = vrot.lane.b32.xlu0 %v1660, 127
  %v1766 = vpop.permute.xlu0 %1765
  %1767 = vrot.lane.b32.xlu0 %v1741, 127
  %v1768 = vpop.permute.xlu0 %1767
  %1769 = vrot.lane.b32.xlu0 %v1664, 127
  %v1770 = vpop.permute.xlu0 %1769
  %1771 = vrot.lane.b32.xlu0 %v1666, 127
  %v1772 = vpop.permute.xlu0 %1771
  %1773 = vrot.lane.b32.xlu0 %v1746, 127
  %v1774 = vpop.permute.xlu0 %1773
  %1775 = vrot.lane.b32.xlu0 %v1670, 127
  %v1776 = vpop.permute.xlu0 %1775
  %1777 = vrot.lane.b32.xlu0 %v1672, 127
  %v1778 = vpop.permute.xlu0 %1777
  %1779 = vrot.lane.b32.xlu0 %v1751, 127
  %v1780 = vpop.permute.xlu0 %1779
  %v1781 = vsel %vm742, %v1764, %v1766
  %v1782 = vsel %vm742, %v1766, %v1768
  %v1783 = vsel %vm742, %v1770, %v1772
  %v1784 = vsel %vm742, %v1772, %v1774
  %v1785 = vsel %vm742, %v1776, %v1778
  %v1786 = vsel %vm742, %v1778, %v1780
  %v1793 = vmax.f32 %v1658, %v1781
  %v1794 = vmax.f32 %v1660, %v1782
  %v1795 = vmax.f32 %v1664, %v1783
  %v1796 = vmax.f32 %v1666, %v1784
  %v1797 = vmax.f32 %v1670, %v1785
  %v1798 = vmax.f32 %v1672, %v1786
  %v1802 = vmax.f32 %v1741, %v1768
  %v1803 = vmax.f32 %v1746, %v1774
  %v1804 = vmax.f32 %v1751, %v1780
  %1814 = vrot.lane.b32.xlu0 %v1793, 116
  %v1815 = vpop.permute.xlu0 %1814
  %1816 = vrot.lane.b32.xlu0 %v1794, 116
  %v1817 = vpop.permute.xlu0 %1816
  %1818 = vrot.lane.b32.xlu0 %v1802, 116
  %v1819 = vpop.permute.xlu0 %1818
  %1820 = vrot.lane.b32.xlu0 %v1795, 116
  %v1821 = vpop.permute.xlu0 %1820
  %1822 = vrot.lane.b32.xlu0 %v1796, 116
  %v1823 = vpop.permute.xlu0 %1822
  %1824 = vrot.lane.b32.xlu0 %v1803, 116
  %v1825 = vpop.permute.xlu0 %1824
  %1826 = vrot.lane.b32.xlu0 %v1797, 116
  %v1827 = vpop.permute.xlu0 %1826
  %1828 = vrot.lane.b32.xlu0 %v1798, 116
  %v1829 = vpop.permute.xlu0 %1828
  %1830 = vrot.lane.b32.xlu0 %v1804, 116
  %v1831 = vpop.permute.xlu0 %1830
  %v1832 = vsel %vm886, %v1815, %v1817
  %v1833 = vsel %vm886, %v1817, %v1819
  %v1834 = vsel %vm886, %v1821, %v1823
  %v1835 = vsel %vm886, %v1823, %v1825
  %v1836 = vsel %vm886, %v1827, %v1829
  %v1837 = vsel %vm886, %v1829, %v1831
  %v1844 = vmax.f32 %v1793, %v1832
  %v1845 = vmax.f32 %v1794, %v1833
  %v1846 = vmax.f32 %v1795, %v1834
  %v1847 = vmax.f32 %v1796, %v1835
  %v1848 = vmax.f32 %v1797, %v1836
  %v1849 = vmax.f32 %v1798, %v1837
  %v1850 = vmax.f32 %v1844, 0.0
  %v1851 = vmax.f32 %v1845, 0.0
  %v1852 = vmax.f32 %v1846, 0.0
  %v1853 = vmax.f32 %v1847, 0.0
  %v1854 = vmax.f32 %v1848, 0.0
  %v1855 = vmax.f32 %v1849, 0.0
  %vm1856 = vcmask 7168
  %1857 = vst.msk [vmem:[#allocation3] sm:$0xff] %vm1856, %v1850
  %1858 = vst.msk [vmem:[#allocation3 + $0x8] sm:$0xff] %vm1856, %v1852
  %vm1859 = vcmask 3072
  %1860 = vst.msk [vmem:[#allocation3 + $0x10] sm:$0xf] %vm1859, %v1854
  %1864 = vrot.lane.b32.xlu0 %v1851, 113
  %v1865 = vpop.permute.xlu0 %1864
  %1866 = vrot.lane.b32.xlu0 %v1853, 113
  %v1867 = vpop.permute.xlu0 %1866
  %1868 = vrot.lane.b32.xlu0 %v1855, 113
  %v1869 = vpop.permute.xlu0 %1868
  %vm1873 = vcmask 15368
  %1874 = vst.msk [vmem:[#allocation3] sm:$0xff] %vm1873, %v1865
  %1875 = vst.msk [vmem:[#allocation3 + $0x8] sm:$0xff] %vm1873, %v1867
  %vm1876 = vcmask 11272
  %1877 = vst.msk [vmem:[#allocation3 + $0x10] sm:$0xf] %vm1876, %v1869
  %1881 = vrot.lane.b32.xlu0 %v1850, 126
  %v1882 = vpop.permute.xlu0 %1881
  %1883 = vrot.lane.b32.xlu0 %v1852, 126
  %v1884 = vpop.permute.xlu0 %1883
  %1885 = vrot.lane.b32.xlu0 %v1854, 126
  %v1886 = vpop.permute.xlu0 %1885
  %1890 = vst.msk [vmem:[#allocation3 + $0x14] sm:$0xff] %vm1856, %v1882
  %1891 = vst.msk [vmem:[#allocation3 + $0x1c] sm:$0xff] %vm1856, %v1884
  %1892 = vst.msk [vmem:[#allocation3 + $0x24] sm:$0xf] %vm1859, %v1886
  %1893 = vrot.lane.b32.xlu0 %v1851, 111
  %v1894 = vpop.permute.xlu0 %1893
  %1895 = vrot.lane.b32.xlu0 %v1853, 111
  %v1896 = vpop.permute.xlu0 %1895
  %1897 = vrot.lane.b32.xlu0 %v1855, 111
  %v1898 = vpop.permute.xlu0 %1897
  %1902 = vst.msk [vmem:[#allocation3 + $0x14] sm:$0xff] %vm1873, %v1894
  %1903 = vst.msk [vmem:[#allocation3 + $0x1c] sm:$0xff] %vm1873, %v1896
  %1904 = vst.msk [vmem:[#allocation3 + $0x24] sm:$0xf] %vm1876, %v1898
  %1905 = vrot.lane.b32.xlu0 %v1850, 124
  %v1906 = vpop.permute.xlu0 %1905
  %1907 = vrot.lane.b32.xlu0 %v1852, 124
  %v1908 = vpop.permute.xlu0 %1907
  %1909 = vrot.lane.b32.xlu0 %v1854, 124
  %v1910 = vpop.permute.xlu0 %1909
  %1914 = vst.msk [vmem:[#allocation3 + $0x28] sm:$0xff] %vm1856, %v1906
  %1915 = vst.msk [vmem:[#allocation3 + $0x30] sm:$0xff] %vm1856, %v1908
  %1916 = vst.msk [vmem:[#allocation3 + $0x38] sm:$0xf] %vm1859, %v1910
  %1917 = vrot.lane.b32.xlu0 %v1851, 109
  %v1918 = vpop.permute.xlu0 %1917
  %1919 = vrot.lane.b32.xlu0 %v1853, 109
  %v1920 = vpop.permute.xlu0 %1919
  %1921 = vrot.lane.b32.xlu0 %v1855, 109
  %v1922 = vpop.permute.xlu0 %1921
  %1926 = vst.msk [vmem:[#allocation3 + $0x28] sm:$0xff] %vm1873, %v1918
  %1927 = vst.msk [vmem:[#allocation3 + $0x30] sm:$0xff] %vm1873, %v1920
  %1928 = vst.msk [vmem:[#allocation3 + $0x38] sm:$0xf] %vm1876, %v1922
  %1929 = vrot.lane.b32.xlu0 %v1850, 122
  %v1930 = vpop.permute.xlu0 %1929
  %1931 = vrot.lane.b32.xlu0 %v1852, 122
  %v1932 = vpop.permute.xlu0 %1931
  %1933 = vrot.lane.b32.xlu0 %v1854, 122
  %v1934 = vpop.permute.xlu0 %1933
  %1938 = vst.msk [vmem:[#allocation3 + $0x3c] sm:$0xff] %vm1856, %v1930
  %1939 = vst.msk [vmem:[#allocation3 + $0x44] sm:$0xff] %vm1856, %v1932
  %1940 = vst.msk [vmem:[#allocation3 + $0x4c] sm:$0xf] %vm1859, %v1934
  %1941 = vrot.lane.b32.xlu0 %v1851, 107
  %v1942 = vpop.permute.xlu0 %1941
  %1943 = vrot.lane.b32.xlu0 %v1853, 107
  %v1944 = vpop.permute.xlu0 %1943
  %1945 = vrot.lane.b32.xlu0 %v1855, 107
  %v1946 = vpop.permute.xlu0 %1945
  %1950 = vst.msk [vmem:[#allocation3 + $0x3c] sm:$0xff] %vm1873, %v1942
  %1951 = vst.msk [vmem:[#allocation3 + $0x44] sm:$0xff] %vm1873, %v1944
  %1952 = vst.msk [vmem:[#allocation3 + $0x4c] sm:$0xf] %vm1876, %v1946
  %1953 = vrot.lane.b32.xlu0 %v1850, 104
  %v1954 = vpop.permute.xlu0 %1953
  %1955 = vrot.lane.b32.xlu0 %v1852, 104
  %v1956 = vpop.permute.xlu0 %1955
  %1957 = vrot.lane.b32.xlu0 %v1854, 104
  %v1958 = vpop.permute.xlu0 %1957
  %1962 = vst.msk [vmem:[#allocation3 + $0x50] sm:$0xff] %vm1856, %v1954
  %1963 = vst.msk [vmem:[#allocation3 + $0x58] sm:$0xff] %vm1856, %v1956
  %1964 = vst.msk [vmem:[#allocation3 + $0x60] sm:$0xf] %vm1859, %v1958
  %1965 = vrot.lane.b32.xlu0 %v1851, 89
  %v1966 = vpop.permute.xlu0 %1965
  %1967 = vrot.lane.b32.xlu0 %v1853, 89
  %v1968 = vpop.permute.xlu0 %1967
  %1969 = vrot.lane.b32.xlu0 %v1855, 89
  %v1970 = vpop.permute.xlu0 %1969
  %1974 = vst.msk [vmem:[#allocation3 + $0x50] sm:$0xff] %vm1873, %v1966
  %1975 = vst.msk [vmem:[#allocation3 + $0x58] sm:$0xff] %vm1873, %v1968
  %1976 = vst.msk [vmem:[#allocation3 + $0x60] sm:$0xf] %vm1876, %v1970
  %1977 = vrot.lane.b32.xlu0 %v1850, 102
  %v1978 = vpop.permute.xlu0 %1977
  %1979 = vrot.lane.b32.xlu0 %v1852, 102
  %v1980 = vpop.permute.xlu0 %1979
  %1981 = vrot.lane.b32.xlu0 %v1854, 102
  %v1982 = vpop.permute.xlu0 %1981
  %1986 = vst.msk [vmem:[#allocation3 + $0x64] sm:$0xff] %vm1856, %v1978
  %1987 = vst.msk [vmem:[#allocation3 + $0x6c] sm:$0xff] %vm1856, %v1980
  %1988 = vst.msk [vmem:[#allocation3 + $0x74] sm:$0xf] %vm1859, %v1982
  %1989 = vrot.lane.b32.xlu0 %v1851, 87
  %v1990 = vpop.permute.xlu0 %1989
  %1991 = vrot.lane.b32.xlu0 %v1853, 87
  %v1992 = vpop.permute.xlu0 %1991
  %1993 = vrot.lane.b32.xlu0 %v1855, 87
  %v1994 = vpop.permute.xlu0 %1993
  %1998 = vst.msk [vmem:[#allocation3 + $0x64] sm:$0xff] %vm1873, %v1990
  %1999 = vst.msk [vmem:[#allocation3 + $0x6c] sm:$0xff] %vm1873, %v1992
  %2000 = vst.msk [vmem:[#allocation3 + $0x74] sm:$0xf] %vm1876, %v1994
  %2001 = vrot.lane.b32.xlu0 %v1850, 100
  %v2002 = vpop.permute.xlu0 %2001
  %2003 = vrot.lane.b32.xlu0 %v1852, 100
  %v2004 = vpop.permute.xlu0 %2003
  %2005 = vrot.lane.b32.xlu0 %v1854, 100
  %v2006 = vpop.permute.xlu0 %2005
  %2010 = vst.msk [vmem:[#allocation3 + $0x78] sm:$0xff] %vm1856, %v2002
  %2011 = vst.msk [vmem:[#allocation3 + $0x80] sm:$0xff] %vm1856, %v2004
  %2012 = vst.msk [vmem:[#allocation3 + $0x88] sm:$0xf] %vm1859, %v2006
  %2013 = vrot.lane.b32.xlu0 %v1851, 85
  %v2014 = vpop.permute.xlu0 %2013
  %2015 = vrot.lane.b32.xlu0 %v1853, 85
  %v2016 = vpop.permute.xlu0 %2015
  %2017 = vrot.lane.b32.xlu0 %v1855, 85
  %v2018 = vpop.permute.xlu0 %2017
  %2022 = vst.msk [vmem:[#allocation3 + $0x78] sm:$0xff] %vm1873, %v2014
  %2023 = vst.msk [vmem:[#allocation3 + $0x80] sm:$0xff] %vm1873, %v2016
  %2024 = vst.msk [vmem:[#allocation3 + $0x88] sm:$0xf] %vm1876, %v2018
  %2025 = vrot.lane.b32.xlu0 %v1850, 98
  %v2026 = vpop.permute.xlu0 %2025
  %2027 = vrot.lane.b32.xlu0 %v1852, 98
  %v2028 = vpop.permute.xlu0 %2027
  %2029 = vrot.lane.b32.xlu0 %v1854, 98
  %v2030 = vpop.permute.xlu0 %2029
  %2034 = vst.msk [vmem:[#allocation3 + $0x8c] sm:$0xff] %vm1856, %v2026
  %2035 = vst.msk [vmem:[#allocation3 + $0x94] sm:$0xff] %vm1856, %v2028
  %2036 = vst.msk [vmem:[#allocation3 + $0x9c] sm:$0xf] %vm1859, %v2030
  %2037 = vrot.lane.b32.xlu0 %v1851, 83
  %v2038 = vpop.permute.xlu0 %2037
  %2039 = vrot.lane.b32.xlu0 %v1853, 83
  %v2040 = vpop.permute.xlu0 %2039
  %2041 = vrot.lane.b32.xlu0 %v1855, 83
  %v2042 = vpop.permute.xlu0 %2041
  %2046 = vst.msk [vmem:[#allocation3 + $0x8c] sm:$0xff] %vm1873, %v2038
  %2047 = vst.msk [vmem:[#allocation3 + $0x94] sm:$0xff] %vm1873, %v2040
  %2048 = vst.msk [vmem:[#allocation3 + $0x9c] sm:$0xf] %vm1876, %v2042
  %2049 = vrot.lane.b32.xlu0 %v1850, 80
  %v2050 = vpop.permute.xlu0 %2049
  %2051 = vrot.lane.b32.xlu0 %v1852, 80
  %v2052 = vpop.permute.xlu0 %2051
  %2053 = vrot.lane.b32.xlu0 %v1854, 80
  %v2054 = vpop.permute.xlu0 %2053
  %2058 = vst.msk [vmem:[#allocation3 + $0xa0] sm:$0xff] %vm1856, %v2050
  %2059 = vst.msk [vmem:[#allocation3 + $0xa8] sm:$0xff] %vm1856, %v2052
  %2060 = vst.msk [vmem:[#allocation3 + $0xb0] sm:$0xf] %vm1859, %v2054
  %2061 = vrot.lane.b32.xlu0 %v1851, 65
  %v2062 = vpop.permute.xlu0 %2061
  %2063 = vrot.lane.b32.xlu0 %v1853, 65
  %v2064 = vpop.permute.xlu0 %2063
  %2065 = vrot.lane.b32.xlu0 %v1855, 65
  %v2066 = vpop.permute.xlu0 %2065
  %2070 = vst.msk [vmem:[#allocation3 + $0xa0] sm:$0xff] %vm1873, %v2062
  %2071 = vst.msk [vmem:[#allocation3 + $0xa8] sm:$0xff] %vm1873, %v2064
  %2072 = vst.msk [vmem:[#allocation3 + $0xb0] sm:$0xf] %vm1876, %v2066
  %2073 = vrot.lane.b32.xlu0 %v1850, 78
  %v2074 = vpop.permute.xlu0 %2073
  %2075 = vrot.lane.b32.xlu0 %v1852, 78
  %v2076 = vpop.permute.xlu0 %2075
  %2077 = vrot.lane.b32.xlu0 %v1854, 78
  %v2078 = vpop.permute.xlu0 %2077
  %2082 = vst.msk [vmem:[#allocation3 + $0xb4] sm:$0xff] %vm1856, %v2074
  %2083 = vst.msk [vmem:[#allocation3 + $0xbc] sm:$0xff] %vm1856, %v2076
  %2084 = vst.msk [vmem:[#allocation3 + $0xc4] sm:$0xf] %vm1859, %v2078
  %2085 = vrot.lane.b32.xlu0 %v1851, 63
  %v2086 = vpop.permute.xlu0 %2085
  %2087 = vrot.lane.b32.xlu0 %v1853, 63
  %v2088 = vpop.permute.xlu0 %2087
  %2089 = vrot.lane.b32.xlu0 %v1855, 63
  %v2090 = vpop.permute.xlu0 %2089
  %2094 = vst.msk [vmem:[#allocation3 + $0xb4] sm:$0xff] %vm1873, %v2086
  %2095 = vst.msk [vmem:[#allocation3 + $0xbc] sm:$0xff] %vm1873, %v2088
  %2096 = vst.msk [vmem:[#allocation3 + $0xc4] sm:$0xf] %vm1876, %v2090
  %2097 = vrot.lane.b32.xlu0 %v1850, 76
  %v2098 = vpop.permute.xlu0 %2097
  %2099 = vrot.lane.b32.xlu0 %v1852, 76
  %v2100 = vpop.permute.xlu0 %2099
  %2101 = vrot.lane.b32.xlu0 %v1854, 76
  %v2102 = vpop.permute.xlu0 %2101
  %2106 = vst.msk [vmem:[#allocation3 + $0xc8] sm:$0xff] %vm1856, %v2098
  %2107 = vst.msk [vmem:[#allocation3 + $0xd0] sm:$0xff] %vm1856, %v2100
  %2108 = vst.msk [vmem:[#allocation3 + $0xd8] sm:$0xf] %vm1859, %v2102
  %2109 = vrot.lane.b32.xlu0 %v1851, 61
  %v2110 = vpop.permute.xlu0 %2109
  %2111 = vrot.lane.b32.xlu0 %v1853, 61
  %v2112 = vpop.permute.xlu0 %2111
  %2113 = vrot.lane.b32.xlu0 %v1855, 61
  %v2114 = vpop.permute.xlu0 %2113
  %2118 = vst.msk [vmem:[#allocation3 + $0xc8] sm:$0xff] %vm1873, %v2110
  %2119 = vst.msk [vmem:[#allocation3 + $0xd0] sm:$0xff] %vm1873, %v2112
  %2120 = vst.msk [vmem:[#allocation3 + $0xd8] sm:$0xf] %vm1876, %v2114
  %2121 = vrot.lane.b32.xlu0 %v1850, 74
  %v2122 = vpop.permute.xlu0 %2121
  %2123 = vrot.lane.b32.xlu0 %v1852, 74
  %v2124 = vpop.permute.xlu0 %2123
  %2125 = vrot.lane.b32.xlu0 %v1854, 74
  %v2126 = vpop.permute.xlu0 %2125
  %2130 = vst.msk [vmem:[#allocation3 + $0xdc] sm:$0xff] %vm1856, %v2122
  %2131 = vst.msk [vmem:[#allocation3 + $0xe4] sm:$0xff] %vm1856, %v2124
  %2132 = vst.msk [vmem:[#allocation3 + $0xec] sm:$0xf] %vm1859, %v2126
  %2133 = vrot.lane.b32.xlu0 %v1851, 59
  %v2134 = vpop.permute.xlu0 %2133
  %2135 = vrot.lane.b32.xlu0 %v1853, 59
  %v2136 = vpop.permute.xlu0 %2135
  %2137 = vrot.lane.b32.xlu0 %v1855, 59
  %v2138 = vpop.permute.xlu0 %2137
  %2142 = vst.msk [vmem:[#allocation3 + $0xdc] sm:$0xff] %vm1873, %v2134
  %2143 = vst.msk [vmem:[#allocation3 + $0xe4] sm:$0xff] %vm1873, %v2136
  %2144 = vst.msk [vmem:[#allocation3 + $0xec] sm:$0xf] %vm1876, %v2138
  %2145 = vrot.lane.b32.xlu0 %v1850, 56
  %v2146 = vpop.permute.xlu0 %2145
  %2147 = vrot.lane.b32.xlu0 %v1852, 56
  %v2148 = vpop.permute.xlu0 %2147
  %2149 = vrot.lane.b32.xlu0 %v1854, 56
  %v2150 = vpop.permute.xlu0 %2149
  %2154 = vst.msk [vmem:[#allocation3 + $0xf0] sm:$0xff] %vm1856, %v2146
  %2155 = vst.msk [vmem:[#allocation3 + $0xf8] sm:$0xff] %vm1856, %v2148
  %2156 = vst.msk [vmem:[#allocation3 + $0x100] sm:$0xf] %vm1859, %v2150
  %2157 = vrot.lane.b32.xlu0 %v1851, 41
  %v2158 = vpop.permute.xlu0 %2157
  %2159 = vrot.lane.b32.xlu0 %v1853, 41
  %v2160 = vpop.permute.xlu0 %2159
  %2161 = vrot.lane.b32.xlu0 %v1855, 41
  %v2162 = vpop.permute.xlu0 %2161
  %2166 = vst.msk [vmem:[#allocation3 + $0xf0] sm:$0xff] %vm1873, %v2158
  %2167 = vst.msk [vmem:[#allocation3 + $0xf8] sm:$0xff] %vm1873, %v2160
  %2168 = vst.msk [vmem:[#allocation3 + $0x100] sm:$0xf] %vm1876, %v2162
  %2169 = vrot.lane.b32.xlu0 %v1850, 54
  %v2170 = vpop.permute.xlu0 %2169
  %2171 = vrot.lane.b32.xlu0 %v1852, 54
  %v2172 = vpop.permute.xlu0 %2171
  %2173 = vrot.lane.b32.xlu0 %v1854, 54
  %v2174 = vpop.permute.xlu0 %2173
  %2178 = vst.msk [vmem:[#allocation3 + $0x104] sm:$0xff] %vm1856, %v2170
  %2179 = vst.msk [vmem:[#allocation3 + $0x10c] sm:$0xff] %vm1856, %v2172
  %2180 = vst.msk [vmem:[#allocation3 + $0x114] sm:$0xf] %vm1859, %v2174
  %2181 = vrot.lane.b32.xlu0 %v1851, 39
  %v2182 = vpop.permute.xlu0 %2181
  %2183 = vrot.lane.b32.xlu0 %v1853, 39
  %v2184 = vpop.permute.xlu0 %2183
  %2185 = vrot.lane.b32.xlu0 %v1855, 39
  %v2186 = vpop.permute.xlu0 %2185
  %2190 = vst.msk [vmem:[#allocation3 + $0x104] sm:$0xff] %vm1873, %v2182
  %2191 = vst.msk [vmem:[#allocation3 + $0x10c] sm:$0xff] %vm1873, %v2184
  %2192 = vst.msk [vmem:[#allocation3 + $0x114] sm:$0xf] %vm1876, %v2186
  %2193 = vrot.lane.b32.xlu0 %v1850, 52
  %v2194 = vpop.permute.xlu0 %2193
  %2195 = vrot.lane.b32.xlu0 %v1852, 52
  %v2196 = vpop.permute.xlu0 %2195
  %2197 = vrot.lane.b32.xlu0 %v1854, 52
  %v2198 = vpop.permute.xlu0 %2197
  %2202 = vst.msk [vmem:[#allocation3 + $0x118] sm:$0xff] %vm1856, %v2194
  %2203 = vst.msk [vmem:[#allocation3 + $0x120] sm:$0xff] %vm1856, %v2196
  %2204 = vst.msk [vmem:[#allocation3 + $0x128] sm:$0xf] %vm1859, %v2198
  %2205 = vrot.lane.b32.xlu0 %v1851, 37
  %v2206 = vpop.permute.xlu0 %2205
  %2207 = vrot.lane.b32.xlu0 %v1853, 37
  %v2208 = vpop.permute.xlu0 %2207
  %2209 = vrot.lane.b32.xlu0 %v1855, 37
  %v2210 = vpop.permute.xlu0 %2209
  %2214 = vst.msk [vmem:[#allocation3 + $0x118] sm:$0xff] %vm1873, %v2206
  %2215 = vst.msk [vmem:[#allocation3 + $0x120] sm:$0xff] %vm1873, %v2208
  %2216 = vst.msk [vmem:[#allocation3 + $0x128] sm:$0xf] %vm1876, %v2210
  %2217 = vrot.lane.b32.xlu0 %v1850, 50
  %v2218 = vpop.permute.xlu0 %2217
  %2219 = vrot.lane.b32.xlu0 %v1852, 50
  %v2220 = vpop.permute.xlu0 %2219
  %2221 = vrot.lane.b32.xlu0 %v1854, 50
  %v2222 = vpop.permute.xlu0 %2221
  %2226 = vst.msk [vmem:[#allocation3 + $0x12c] sm:$0xff] %vm1856, %v2218
  %2227 = vst.msk [vmem:[#allocation3 + $0x134] sm:$0xff] %vm1856, %v2220
  %2228 = vst.msk [vmem:[#allocation3 + $0x13c] sm:$0xf] %vm1859, %v2222
  %2229 = vrot.lane.b32.xlu0 %v1851, 35
  %v2230 = vpop.permute.xlu0 %2229
  %2231 = vrot.lane.b32.xlu0 %v1853, 35
  %v2232 = vpop.permute.xlu0 %2231
  %2233 = vrot.lane.b32.xlu0 %v1855, 35
  %v2234 = vpop.permute.xlu0 %2233
  %2238 = vst.msk [vmem:[#allocation3 + $0x12c] sm:$0xff] %vm1873, %v2230
  %2239 = vst.msk [vmem:[#allocation3 + $0x134] sm:$0xff] %vm1873, %v2232
  %2240 = vst.msk [vmem:[#allocation3 + $0x13c] sm:$0xf] %vm1876, %v2234
  %v2241 = vld [vmem:[%s5] sm:$0xff]
  %v2242 = vld [vmem:[%s5 + $0x8] sm:$0xff]
  %v2243 = vld [vmem:[%s5 + $0x10] sm:$0xff]
  %v2244 = vld [vmem:[%s5 + $0x18] sm:$0xff]
  %v2245 = vld [vmem:[%s5 + $0x20] sm:$0xff]
  %v2246 = vld [vmem:[%s5 + $0x28] sm:$0xff]
  %v2247 = vld [vmem:[%s5 + $0x30] sm:$0xff]
  %v2248 = vld [vmem:[%s5 + $0x38] sm:$0xff]
  %v2249 = vld [vmem:[%s5 + $0x40] sm:$0xff]
  %v2250 = vld [vmem:[%s5 + $0x48] sm:$0xff]
  %v2251 = vld [vmem:[%s5 + $0x50] sm:$0xff]
  %v2252 = vld [vmem:[%s5 + $0x58] sm:$0xff]
  %v2253 = vld [vmem:[%s5 + $0x60] sm:$0xff]
  %v2254 = vld [vmem:[%s5 + $0x68] sm:$0xff]
  %v2255 = vld [vmem:[%s5 + $0x70] sm:$0xff]
  %v2256 = vld [vmem:[%s5 + $0x78] sm:$0xff]
  %v2257 = vld [vmem:[%s5 + $0x80] sm:$0xff]
  %v2258 = vld [vmem:[%s5 + $0x88] sm:$0xff]
  %v2259 = vld [vmem:[%s5 + $0x90] sm:$0x3]
  %v2260 = vld [vmem:[%s5 + $0x98] sm:$0x3]
  %v2261 = vld [vmem:[%s5 + $0xa0] sm:$0x3]
  %v2262 = vld [vmem:[#allocation3] sm:$0xff]
  %v2263 = vld [vmem:[#allocation3 + $0x8] sm:$0xff]
  %v2264 = vld [vmem:[#allocation3 + $0x10] sm:$0xff]
  %v2265 = vld [vmem:[#allocation3 + $0x18] sm:$0xff]
  %v2266 = vld [vmem:[#allocation3 + $0x20] sm:$0xff]
  %v2267 = vld [vmem:[#allocation3 + $0x28] sm:$0xff]
  %v2268 = vld [vmem:[#allocation3 + $0x30] sm:$0xff]
  %v2269 = vld [vmem:[#allocation3 + $0x38] sm:$0xff]
  %v2270 = vld [vmem:[#allocation3 + $0x40] sm:$0xff]
  %v2271 = vld [vmem:[#allocation3 + $0x48] sm:$0xff]
  %v2272 = vld [vmem:[#allocation3 + $0x50] sm:$0xff]
  %v2273 = vld [vmem:[#allocation3 + $0x58] sm:$0xff]
  %v2274 = vld [vmem:[#allocation3 + $0x60] sm:$0xff]
  %v2275 = vld [vmem:[#allocation3 + $0x68] sm:$0xff]
  %v2276 = vld [vmem:[#allocation3 + $0x70] sm:$0xff]
  %v2277 = vld [vmem:[#allocation3 + $0x78] sm:$0xff]
  %v2278 = vld [vmem:[#allocation3 + $0x80] sm:$0xff]
  %v2279 = vld [vmem:[#allocation3 + $0x88] sm:$0xff]
  %v2280 = vld [vmem:[#allocation3 + $0x90] sm:$0xff]
  %v2281 = vld [vmem:[#allocation3 + $0x98] sm:$0xff]
  %v2282 = vld [vmem:[#allocation3 + $0xa0] sm:$0xff]
  %v2283 = vld [vmem:[#allocation3 + $0xa8] sm:$0xff]
  %v2284 = vld [vmem:[#allocation3 + $0xb0] sm:$0xff]
  %v2285 = vld [vmem:[#allocation3 + $0xb8] sm:$0xff]
  %v2286 = vld [vmem:[#allocation3 + $0xc0] sm:$0xff]
  %v2287 = vld [vmem:[#allocation3 + $0xc8] sm:$0xff]
  %v2288 = vld [vmem:[#allocation3 + $0xd0] sm:$0xff]
  %v2289 = vld [vmem:[#allocation3 + $0xd8] sm:$0xff]
  %v2290 = vld [vmem:[#allocation3 + $0xe0] sm:$0xff]
  %v2291 = vld [vmem:[#allocation3 + $0xe8] sm:$0xff]
  %v2292 = vld [vmem:[#allocation3 + $0xf0] sm:$0xff]
  %v2293 = vld [vmem:[#allocation3 + $0xf8] sm:$0xff]
  %v2294 = vld [vmem:[#allocation3 + $0x100] sm:$0xff]
  %v2295 = vld [vmem:[#allocation3 + $0x108] sm:$0xff]
  %v2296 = vld [vmem:[#allocation3 + $0x110] sm:$0xff]
  %v2297 = vld [vmem:[#allocation3 + $0x118] sm:$0xff]
  %v2298 = vld [vmem:[#allocation3 + $0x120] sm:$0xff]
  %v2299 = vld [vmem:[#allocation3 + $0x128] sm:$0xff]
  %v2300 = vld [vmem:[#allocation3 + $0x130] sm:$0xff]
  %v2301 = vld [vmem:[#allocation3 + $0x138] sm:$0xff]
  %v2302 = vld [vmem:[%s6] sm:$0xff]
  %v2303 = vld [vmem:[%s6 + $0x8] sm:$0xff]
  %v2304 = vld [vmem:[%s6 + $0x10] sm:$0xff]
  %v2305 = vld [vmem:[%s6 + $0x18] sm:$0xff]
  %v2306 = vld [vmem:[%s6 + $0x20] sm:$0xff]
  %v2307 = vld [vmem:[%s6 + $0x28] sm:$0xff]
  %v2308 = vld [vmem:[%s6 + $0x30] sm:$0x3]
  %2310 = vset.pattern.permute.xlu0 0
  %2311 = vperm.xlu0 %2310, %v2302
  %v2312 = vpop.permute.xlu0 %2311
  %2315 = vset.pattern.permute.xlu0 0
  %2316 = vperm.xlu0 %2315, %v2303
  %v2317 = vpop.permute.xlu0 %2316
  %2320 = vset.pattern.permute.xlu0 0
  %2321 = vperm.xlu0 %2320, %v2304
  %v2322 = vpop.permute.xlu0 %2321
  %2325 = vset.pattern.permute.xlu0 0
  %2326 = vperm.xlu0 %2325, %v2305
  %v2327 = vpop.permute.xlu0 %2326
  %2330 = vset.pattern.permute.xlu0 0
  %2331 = vperm.xlu0 %2330, %v2306
  %v2332 = vpop.permute.xlu0 %2331
  %2335 = vset.pattern.permute.xlu0 0
  %2336 = vperm.xlu0 %2335, %v2307
  %v2337 = vpop.permute.xlu0 %2336
  %2340 = vset.pattern.permute.xlu0 0
  %2341 = vperm.xlu0 %2340, %v2308
  %v2342 = vpop.permute.xlu0 %2341
  %v2345 = vsel %vm587, %v2243, 0
  %v2348 = vsel %vm587, %v2246, 0
  %v2351 = vsel %vm587, %v2249, 0
  %v2354 = vsel %vm587, %v2252, 0
  %v2357 = vsel %vm587, %v2255, 0
  %v2360 = vsel %vm587, %v2258, 0
  %v2363 = vsel %vm587, %v2261, 0
  %2365 = vmatprep.subr.mxu0 0.0
  %2366 = vmatpush1.msra.mxu0 %v2262
  %2367 = vmatprep.subr.mxu0 0.0
  %2368 = vmatpush1.msra.mxu0 %v2263
  %2369 = vmatprep.subr.mxu0 0.0
  %2370 = vmatpush1.msra.mxu0 %v2264
  %2371 = vmatprep.subr.mxu0 0.0
  %2372 = vmatpush1.msra.mxu0 %v2265
  %2373 = vmatprep.subr.mxu0 0.0
  %2374 = vmatpush1.msra.mxu0 %v2266
  %2375 = vmatprep.subr.mxu0 0.0
  %2376 = vmatpush1.msra.mxu0 %v2267
  %2377 = vmatprep.subr.mxu0 0.0
  %2378 = vmatpush1.msra.mxu0 %v2268
  %2379 = vmatprep.subr.mxu0 0.0
  %2380 = vmatpush1.msra.mxu0 %v2269
  %2381 = vmatprep.subr.mxu0 0.0
  %2382 = vmatpush1.msra.mxu0 %v2270
  %2383 = vmatprep.subr.mxu0 0.0
  %2384 = vmatpush1.msra.mxu0 %v2271
  %2385 = vmatprep.subr.mxu0 0.0
  %2386 = vmatpush1.msra.mxu0 %v2272
  %2387 = vmatprep.subr.mxu0 0.0
  %2388 = vmatpush1.msra.mxu0 %v2273
  %2389 = vmatprep.subr.mxu0 0.0
  %2390 = vmatpush1.msra.mxu0 %v2274
  %2391 = vmatprep.subr.mxu0 0.0
  %2392 = vmatpush1.msra.mxu0 %v2275
  %2393 = vmatprep.subr.mxu0 0.0
  %2394 = vmatpush1.msra.mxu0 %v2276
  %2395 = vmatprep.subr.mxu0 0.0
  %2396 = vmatpush1.msra.mxu0 %v2277
  %2397 = vmatprep.subr.mxu0 0.0
  %2398 = vmatpush1.msra.mxu0 %v2278
  %2399 = vmatprep.subr.mxu0 0.0
  %2400 = vmatpush1.msra.mxu0 %v2279
  %2401 = vmatprep.subr.mxu0 0.0
  %2402 = vmatpush1.msra.mxu0 %v2280
  %2403 = vmatprep.subr.mxu0 0.0
  %2404 = vmatpush1.msra.mxu0 %v2281
  %2405 = vmatprep.subr.mxu0 0.0
  %2406 = vmatpush1.msra.mxu0 %v2282
  %2407 = vmatprep.subr.mxu0 0.0
  %2408 = vmatpush1.msra.mxu0 %v2283
  %2409 = vmatprep.subr.mxu0 0.0
  %2410 = vmatpush1.msra.mxu0 %v2284
  %2411 = vmatprep.subr.mxu0 0.0
  %2412 = vmatpush1.msra.mxu0 %v2285
  %2413 = vmatprep.subr.mxu0 0.0
  %2414 = vmatpush1.msra.mxu0 %v2286
  %2415 = vmatprep.subr.mxu0 0.0
  %2416 = vmatpush1.msra.mxu0 %v2287
  %2417 = vmatprep.subr.mxu0 0.0
  %2418 = vmatpush1.msra.mxu0 %v2288
  %2419 = vmatprep.subr.mxu0 0.0
  %2420 = vmatpush1.msra.mxu0 %v2289
  %2421 = vmatprep.subr.mxu0 0.0
  %2422 = vmatpush1.msra.mxu0 %v2290
  %2423 = vmatprep.subr.mxu0 0.0
  %2424 = vmatpush1.msra.mxu0 %v2291
  %2425 = vmatprep.subr.mxu0 0.0
  %2426 = vmatpush1.msra.mxu0 %v2292
  %2427 = vmatprep.subr.mxu0 0.0
  %2428 = vmatpush1.msra.mxu0 %v2293
  %2429 = vmatprep.mubr.f32.mxu0 %v2242
  %2430 = vmatmul.mubr.f32.gmra.mrb[0].mxu0 %v2241
  %v2431 = vpop.f32.mrb[0].mxu0
  %v2432 = vadd.f32 %v2312, %v2431
  %v2433 = vpop.f32.mrb[0].mxu0
  %2434 = vmatprep.mubr.f32.mxu0 %v2245
  %2435 = vmatmul.mubr.f32.gmra.mrb[0].mxu0 %v2244
  %v2436 = vpop.f32.mrb[0].mxu0
  %v2437 = vadd.f32 %v2317, %v2436
  %v2438 = vpop.f32.mrb[0].mxu0
  %2439 = vmatprep.mubr.f32.mxu0 %v2248
  %2440 = vmatmul.mubr.f32.gmra.mrb[0].mxu0 %v2247
  %v2441 = vpop.f32.mrb[0].mxu0
  %v2442 = vadd.f32 %v2322, %v2441
  %v2443 = vpop.f32.mrb[0].mxu0
  %2444 = vmatprep.mubr.f32.mxu0 %v2251
  %2445 = vmatmul.mubr.f32.gmra.mrb[0].mxu0 %v2250
  %v2446 = vpop.f32.mrb[0].mxu0
  %v2447 = vadd.f32 %v2327, %v2446
  %v2448 = vpop.f32.mrb[0].mxu0
  %2449 = vmatprep.mubr.f32.mxu0 %v2254
  %2450 = vmatmul.mubr.f32.gmra.mrb[0].mxu0 %v2253
  %v2451 = vpop.f32.mrb[0].mxu0
  %v2452 = vadd.f32 %v2332, %v2451
  %v2453 = vpop.f32.mrb[0].mxu0
  %2454 = vmatprep.mubr.f32.mxu0 %v2257
  %2455 = vmatmul.mubr.f32.gmra.mrb[0].mxu0 %v2256
  %v2456 = vpop.f32.mrb[0].mxu0
  %v2457 = vadd.f32 %v2337, %v2456
  %v2458 = vpop.f32.mrb[0].mxu0
  %2459 = vmatprep.mubr.f32.mxu0 %v2260
  %2460 = vmatmul.mubr.f32.gmra.mrb[0].mxu0 %v2259
  %v2461 = vpop.f32.mrb[0].mxu0
  %v2462 = vadd.f32 %v2342, %v2461
  %v2463 = vpop.f32.mrb[0].mxu0
  %2464 = vdwg.mxu0
  %2465 = vmatprep.subr.mxu0 0.0
  %2466 = vmatpush1.msra.mxu0 %v2294
  %2467 = vmatprep.subr.mxu0 0.0
  %2468 = vmatpush1.msra.mxu0 %v2295
  %2469 = vmatprep.subr.mxu0 0.0
  %2470 = vmatpush1.msra.mxu0 %v2296
  %2471 = vmatprep.subr.mxu0 0.0
  %2472 = vmatpush1.msra.mxu0 %v2297
  %2473 = vmatprep.subr.mxu0 0.0
  %2474 = vmatpush1.msra.mxu0 %v2298
  %2475 = vmatprep.subr.mxu0 0.0
  %2476 = vmatpush1.msra.mxu0 %v2299
  %2477 = vmatprep.subr.mxu0 0.0
  %2478 = vmatpush1.msra.mxu0 %v2300
  %2479 = vmatprep.subr.mxu0 0.0
  %2480 = vmatpush1.msra.mxu0 %v2301
  %2481 = vmatprep.subr.mxu0 0.0
  %2482 = vmatpush1.msra.mxu0 0.0
  %2483 = vmatprep.subr.mxu0 0.0
  %2484 = vmatpush1.msra.mxu0 0.0
  %2485 = vmatprep.subr.mxu0 0.0
  %2486 = vmatpush1.msra.mxu0 0.0
  %2487 = vmatprep.subr.mxu0 0.0
  %2488 = vmatpush1.msra.mxu0 0.0
  %2489 = vmatprep.subr.mxu0 0.0
  %2490 = vmatpush1.msra.mxu0 0.0
  %2491 = vmatprep.subr.mxu0 0.0
  %2492 = vmatpush1.msra.mxu0 0.0
  %2493 = vmatprep.subr.mxu0 0.0
  %2494 = vmatpush1.msra.mxu0 0.0
  %2495 = vmatprep.subr.mxu0 0.0
  %2496 = vmatpush1.msra.mxu0 0.0
  %2497 = vmatprep.subr.mxu0 0.0
  %2498 = vmatpush1.msra.mxu0 0.0
  %2499 = vmatprep.subr.mxu0 0.0
  %2500 = vmatpush1.msra.mxu0 0.0
  %2501 = vmatprep.subr.mxu0 0.0
  %2502 = vmatpush1.msra.mxu0 0.0
  %2503 = vmatprep.subr.mxu0 0.0
  %2504 = vmatpush1.msra.mxu0 0.0
  %2505 = vmatprep.subr.mxu0 0.0
  %2506 = vmatpush1.msra.mxu0 0.0
  %2507 = vmatprep.subr.mxu0 0.0
  %2508 = vmatpush1.msra.mxu0 0.0
  %2509 = vmatprep.subr.mxu0 0.0
  %2510 = vmatpush1.msra.mxu0 0.0
  %2511 = vmatprep.subr.mxu0 0.0
  %2512 = vmatpush1.msra.mxu0 0.0
  %2513 = vmatprep.subr.mxu0 0.0
  %2514 = vmatpush1.msra.mxu0 0.0
  %2515 = vmatprep.subr.mxu0 0.0
  %2516 = vmatpush1.msra.mxu0 0.0
  %2517 = vmatprep.subr.mxu0 0.0
  %2518 = vmatpush1.msra.mxu0 0.0
  %2519 = vmatprep.subr.mxu0 0.0
  %2520 = vmatpush1.msra.mxu0 0.0
  %2521 = vmatprep.subr.mxu0 0.0
  %2522 = vmatpush1.msra.mxu0 0.0
  %2523 = vmatprep.subr.mxu0 0.0
  %2524 = vmatpush1.msra.mxu0 0.0
  %2525 = vmatprep.subr.mxu0 0.0
  %2526 = vmatpush1.msra.mxu0 0.0
  %2527 = vmatprep.subr.mxu0 0.0
  %2528 = vmatpush1.msra.mxu0 0.0
  %2529 = vmatprep.mubr.f32.mxu0 0.0
  %2530 = vmatmul.mubr.f32.gmra.mrb[0].mxu0 %v2345
  %v2531 = vpop.f32.mrb[0].mxu0
  %v2532 = vadd.f32 %v2432, %v2531
  %v2533 = vpop.f32.mrb[0].mxu0
  %2534 = vmatprep.mubr.f32.mxu0 0.0
  %2535 = vmatmul.mubr.f32.gmra.mrb[0].mxu0 %v2348
  %v2536 = vpop.f32.mrb[0].mxu0
  %v2537 = vadd.f32 %v2437, %v2536
  %v2538 = vpop.f32.mrb[0].mxu0
  %2539 = vmatprep.mubr.f32.mxu0 0.0
  %2540 = vmatmul.mubr.f32.gmra.mrb[0].mxu0 %v2351
  %v2541 = vpop.f32.mrb[0].mxu0
  %v2542 = vadd.f32 %v2442, %v2541
  %v2543 = vpop.f32.mrb[0].mxu0
  %2544 = vmatprep.mubr.f32.mxu0 0.0
  %2545 = vmatmul.mubr.f32.gmra.mrb[0].mxu0 %v2354
  %v2546 = vpop.f32.mrb[0].mxu0
  %v2547 = vadd.f32 %v2447, %v2546
  %v2548 = vpop.f32.mrb[0].mxu0
  %2549 = vmatprep.mubr.f32.mxu0 0.0
  %2550 = vmatmul.mubr.f32.gmra.mrb[0].mxu0 %v2357
  %v2551 = vpop.f32.mrb[0].mxu0
  %v2552 = vadd.f32 %v2452, %v2551
  %v2553 = vpop.f32.mrb[0].mxu0
  %2554 = vmatprep.mubr.f32.mxu0 0.0
  %2555 = vmatmul.mubr.f32.gmra.mrb[0].mxu0 %v2360
  %v2556 = vpop.f32.mrb[0].mxu0
  %v2557 = vadd.f32 %v2457, %v2556
  %v2558 = vpop.f32.mrb[0].mxu0
  %2559 = vmatprep.mubr.f32.mxu0 0.0
  %2560 = vmatmul.mubr.f32.gmra.mrb[0].mxu0 %v2363
  %v2561 = vpop.f32.mrb[0].mxu0
  %v2562 = vadd.f32 %v2462, %v2561
  %v2563 = vpop.f32.mrb[0].mxu0
  %2564 = vdwg.mxu0
  %v2565 = vmax.f32 %v2532, 0.0
  %v2566 = vmax.f32 %v2537, 0.0
  %v2567 = vmax.f32 %v2542, 0.0
  %v2568 = vmax.f32 %v2547, 0.0
  %v2569 = vmax.f32 %v2552, 0.0
  %v2570 = vmax.f32 %v2557, 0.0
  %v2571 = vmax.f32 %v2562, 0.0
  %v2572 = vld [vmem:[%s7] sm:$0xff]
  %v2573 = vld [vmem:[%s7 + $0x8] sm:$0x3]
  %v2574 = vld [vmem:[%s8] sm:$0xff]
  %v2575 = vld [vmem:[%s8 + $0x8] sm:$0x3]
  %2577 = vset.pattern.permute.xlu0 0
  %2578 = vperm.xlu0 %2577, %v2574
  %v2579 = vpop.permute.xlu0 %2578
  %2582 = vset.pattern.permute.xlu0 0
  %2583 = vperm.xlu0 %2582, %v2575
  %v2584 = vpop.permute.xlu0 %2583
  %vm2586 = vcmask 408576
  %v2588 = vsel %vm2586, %v2572, 0
  %v2591 = vsel %vm2586, %v2573, 0
  %v2594 = vsel %vm720, %v2571, 0
  %2596 = vmatprep.subr.mxu0 0.0
  %2597 = vmatpush1.msra.mxu0 %v2565
  %2598 = vmatprep.subr.mxu0 0.0
  %2599 = vmatpush1.msra.mxu0 %v2566
  %2600 = vmatprep.subr.mxu0 0.0
  %2601 = vmatpush1.msra.mxu0 %v2567
  %2602 = vmatprep.subr.mxu0 0.0
  %2603 = vmatpush1.msra.mxu0 %v2568
  %2604 = vmatprep.subr.mxu0 0.0
  %2605 = vmatpush1.msra.mxu0 %v2569
  %2606 = vmatprep.subr.mxu0 0.0
  %2607 = vmatpush1.msra.mxu0 %v2570
  %2608 = vmatprep.subr.mxu0 0.0
  %2609 = vmatpush1.msra.mxu0 %v2594
  %2610 = vmatprep.subr.mxu0 0.0
  %2611 = vmatpush1.msra.mxu0 0.0
  %2612 = vmatprep.subr.mxu0 0.0
  %2613 = vmatpush1.msra.mxu0 0.0
  %2614 = vmatprep.subr.mxu0 0.0
  %2615 = vmatpush1.msra.mxu0 0.0
  %2616 = vmatprep.subr.mxu0 0.0
  %2617 = vmatpush1.msra.mxu0 0.0
  %2618 = vmatprep.subr.mxu0 0.0
  %2619 = vmatpush1.msra.mxu0 0.0
  %2620 = vmatprep.subr.mxu0 0.0
  %2621 = vmatpush1.msra.mxu0 0.0
  %2622 = vmatprep.subr.mxu0 0.0
  %2623 = vmatpush1.msra.mxu0 0.0
  %2624 = vmatprep.subr.mxu0 0.0
  %2625 = vmatpush1.msra.mxu0 0.0
  %2626 = vmatprep.subr.mxu0 0.0
  %2627 = vmatpush1.msra.mxu0 0.0
  %2628 = vmatprep.subr.mxu0 0.0
  %2629 = vmatpush1.msra.mxu0 0.0
  %2630 = vmatprep.subr.mxu0 0.0
  %2631 = vmatpush1.msra.mxu0 0.0
  %2632 = vmatprep.subr.mxu0 0.0
  %2633 = vmatpush1.msra.mxu0 0.0
  %2634 = vmatprep.subr.mxu0 0.0
  %2635 = vmatpush1.msra.mxu0 0.0
  %2636 = vmatprep.subr.mxu0 0.0
  %2637 = vmatpush1.msra.mxu0 0.0
  %2638 = vmatprep.subr.mxu0 0.0
  %2639 = vmatpush1.msra.mxu0 0.0
  %2640 = vmatprep.subr.mxu0 0.0
  %2641 = vmatpush1.msra.mxu0 0.0
  %2642 = vmatprep.subr.mxu0 0.0
  %2643 = vmatpush1.msra.mxu0 0.0
  %2644 = vmatprep.subr.mxu0 0.0
  %2645 = vmatpush1.msra.mxu0 0.0
  %2646 = vmatprep.subr.mxu0 0.0
  %2647 = vmatpush1.msra.mxu0 0.0
  %2648 = vmatprep.subr.mxu0 0.0
  %2649 = vmatpush1.msra.mxu0 0.0
  %2650 = vmatprep.subr.mxu0 0.0
  %2651 = vmatpush1.msra.mxu0 0.0
  %2652 = vmatprep.subr.mxu0 0.0
  %2653 = vmatpush1.msra.mxu0 0.0
  %2654 = vmatprep.subr.mxu0 0.0
  %2655 = vmatpush1.msra.mxu0 0.0
  %2656 = vmatprep.subr.mxu0 0.0
  %2657 = vmatpush1.msra.mxu0 0.0
  %2658 = vmatprep.subr.mxu0 0.0
  %2659 = vmatpush1.msra.mxu0 0.0
  %2660 = vmatprep.mubr.f32.mxu0 0.0
  %2661 = vmatmul.mubr.f32.gmra.mrb[0].mxu0 %v2588
  %v2662 = vpop.f32.mrb[0].mxu0
  %v2663 = vadd.f32 %v2579, %v2662
  %v2664 = vpop.f32.mrb[0].mxu0
  %2665 = vmatprep.mubr.f32.mxu0 0.0
  %2666 = vmatmul.mubr.f32.gmra.mrb[0].mxu0 %v2591
  %v2667 = vpop.f32.mrb[0].mxu0
  %v2668 = vadd.f32 %v2584, %v2667
  %v2669 = vpop.f32.mrb[0].mxu0
  %2670 = vdwg.mxu0
  %vm2671 = vcmask 15360
  %v2672 = vsel %vm2671, %v2663, -inf
  %vm2673 = vcmask 9216
  %v2674 = vsel %vm2673, %v2668, -inf
  %v2675 = vmax.f32 %v2672, %v2674
  %v2676 = vrot.slane %v2675, 4
  %v2677 = vmax.f32 %v2675, %v2676
  %v2678 = vrot.slane %v2677, 2
  %v2679 = vmax.f32 %v2677, %v2678
  %v2680 = vrot.slane %v2679, 1
  %v2681 = vmax.f32 %v2679, %v2680
  %v2682 = vsub.f32 %v2663, %v2681
  %v2683 = vsub.f32 %v2668, %v2681
  %v2684 = vmul.f32 %v2682, 1.442695
  %v2685 = vpow.pop %v2684
  %v2686 = vmul.f32 %v2683, 1.442695
  %v2687 = vpow.pop %v2686
  %v2688 = vsel %vm2671, %v2685, 0.0
  %v2689 = vsel %vm2673, %v2687, 0.0
  %v2690 = vadd.f32 %v2688, %v2689
  %v2691 = vrot.slane %v2690, 4
  %v2692 = vadd.f32 %v2690, %v2691
  %v2693 = vrot.slane %v2692, 2
  %v2694 = vadd.f32 %v2692, %v2693
  %v2695 = vrot.slane %v2694, 1
  %v2696 = vadd.f32 %v2694, %v2695
  %v2697 = vlog2.pop %v2696
  %v2698 = vmul.f32 %v2697, 0.6931472
  %v2699 = vsub.f32 %v2682, %v2698
  %v2700 = vsub.f32 %v2683, %v2698
  %2701 = vst.msk [vmem:[%s9] sm:$0xff] %vm2671, %v2699
  %2702 = vst.msk [vmem:[%s9 + $0x8] sm:$0x3] %vm2673, %v2700
  // Predicated region
  $region38: #{lenet3_forward.1} parent=0 // pred_check
    _
  $region39: #{lenet3_forward.1} parent=0 // pred_check_branch
    %2704 = sbr.rel (0) target = $region41
  $region40: #{lenet3_forward.1} parent=0 // pred_region
    _
  $region41: #{lenet3_forward.1} parent=0 // pred_fallthru
    _
  // Predicated region
  $region42: #{lenet3_forward.1} parent=0 // pred_check
    _
  $region43: #{lenet3_forward.1} parent=0 // pred_check_branch
    %2706 = sbr.rel (0) target = $region45
  $region44: #{lenet3_forward.1} parent=0 // pred_region
    _
  $region45: #{lenet3_forward.1} parent=0 // pred_fallthru
    _

</llo_original>
